<compile_context>
chip_gen: v7x
topology: tpu7x:2x2x1
jax: 0.10.0
libtpu: 0.0.40
codegen_flags: <defaults>
</compile_context>

<pallas_src>
import math

import jax
import jax.numpy as jnp
from jax.experimental import pallas as pl
from jax.experimental.pallas import tpu as pltpu

# ----------------------------- configuration ------------------------------- #
B = 2            # batch
T = 8            # episode length (timesteps per trajectory window)
STATE_DIM = 11
ACTION_DIM = 3
N_EMBD = 32
N_HEAD = 2
N_LAYER = 2
MAX_EP_LEN = 64
HEAD_DIM = N_EMBD // N_HEAD
S = 3 * T        # stacked sequence length (return, state, action per timestep)
LN_EPS = 1e-5
NEG_INF = -1e9
GELU_C = math.sqrt(2.0 / math.pi)
ATT_SCALE = 1.0 / math.sqrt(HEAD_DIM)

# fused feature-slab layout (single embedder matmul input, K padded to 128 lanes)
IN_CAT = 1 + STATE_DIM + ACTION_DIM + 3          # raw features + token-type one-hot
COL_TIME0 = IN_CAT                               # timestep one-hot columns
COL_POS0 = IN_CAT + MAX_EP_LEN                   # position one-hot columns
SLAB_K = ((COL_POS0 + S + 127) // 128) * 128     # = 128 for this config

# lane-dense fused head output layout
OUT_W = 128
ACT_COL0 = 1 + STATE_DIM                         # action-head columns start at 12

# consolidated gain/bias vector slab (one row per vector, 128 lanes each)
R_ELN_G, R_ELN_B, R_LNF_G, R_LNF_B, R_HEAD_B = 0, 1, 2, 3, 4
LAYER_ROW0 = 5                                   # 8 rows per layer after this
VEC_W = 128
VEC_ROWS = ((LAYER_ROW0 + 8 * N_LAYER + 7) // 8) * 8   # 21 -> 24

# MXU operand dtype (f32 accumulation always).  False -> exact f32 reference math.
MATMUL_IN_BF16 = True
MM_DTYPE = jnp.bfloat16 if MATMUL_IN_BF16 else jnp.float32


def mm(a, b):
    """MXU matmul: MM_DTYPE operands, f32 accumulation."""
    return jnp.dot(a.astype(MM_DTYPE), b.astype(MM_DTYPE),
                   preferred_element_type=jnp.float32)


def mm_nt(a, b):
    """a @ b.T without materializing the transpose (contract last dims of both)."""
    return jax.lax.dot_general(a.astype(MM_DTYPE), b.astype(MM_DTYPE),
                               dimension_numbers=(((1,), (1,)), ((), ())),
                               preferred_element_type=jnp.float32)


def _tensorcores_per_chip():
    """Best-effort TC-per-chip detection: v7x -> 2, v5e/v6e (and unknown) -> 1."""
    try:
        kind = jax.devices()[0].device_kind.lower()
    except Exception:
        return 1
    return 2 if ("v7" in kind or "tpu7" in kind or "7x" in kind) else 1


# ------------------------------- fused kernel ------------------------------- #
def _dtrans_fused_kernel(slab_ref, bias_ref, emb_w_ref, vecs_ref,
                         attn_w_ref, cproj_w_ref, fc_w_ref, mproj_w_ref,
                         head_w_ref, out_ref):
    def vrow(r, width):
        # static row slice of the consolidated vector slab -> [1, width] broadcast row
        return vecs_ref[r:r + 1, 0:width]

    def layer_norm(x, g, b):
        mu = jnp.mean(x, axis=-1, keepdims=True)
        xc = x - mu
        var = jnp.mean(xc * xc, axis=-1, keepdims=True)
        return xc * jax.lax.rsqrt(var + LN_EPS) * g + b

    def gelu_new(x):
        return 0.5 * x * (1.0 + jnp.tanh(GELU_C * (x + 0.044715 * x * x * x)))

    # ONE matmul fuses: return/state/action embedders (+ their biases via the type
    # one-hot), the timestep-embedding gather (via a 64-wide one-hot) and the GPT2
    # positional embedding (via a position one-hot).  Output cols [0,E) are the
    # pre-embed_ln sum; cols [E,2E) are wpe, added AFTER embed_ln (reference order).
    e = mm(slab_ref[...], emb_w_ref[...])                                  # [BS, 2E]
    h = layer_norm(e[:, :N_EMBD], vrow(R_ELN_G, N_EMBD),
                   vrow(R_ELN_B, N_EMBD)) + e[:, N_EMBD:]

    bias = bias_ref[...]        # additive: causal + key padding + batch block-diag

    for l in range(N_LAYER):
        base = LAYER_ROW0 + 8 * l
        # ----- attention block -----
        x1 = layer_norm(h, vrow(base + 0, N_EMBD), vrow(base + 1, N_EMBD))
        qkv = mm(x1, attn_w_ref[l]) + vrow(base + 2, 3 * N_EMBD)           # [BS, 3E]
        cw = cproj_w_ref[l]                                                # [E, E]
        attn = None
        for hh in range(N_HEAD):
            lo = hh * HEAD_DIM
            q = qkv[:, lo:lo + HEAD_DIM]
            k = qkv[:, N_EMBD + lo:N_EMBD + lo + HEAD_DIM]
            v = qkv[:, 2 * N_EMBD + lo:2 * N_EMBD + lo + HEAD_DIM]
            s = mm_nt(q, k) * ATT_SCALE + bias                             # no k.T
            mx = jnp.max(s, axis=-1, keepdims=True)
            p = jnp.exp(s - mx)
            p = p / jnp.sum(p, axis=-1, keepdims=True)                     # exact softmax
            hv = mm(p, v)                                                  # [BS, HD]
            part = mm(hv, cw[lo:lo + HEAD_DIM, :])        # c_proj folded per head
            attn = part if attn is None else attn + part
        h = h + attn + vrow(base + 3, N_EMBD)
        # ----- MLP block -----
        x2 = layer_norm(h, vrow(base + 4, N_EMBD), vrow(base + 5, N_EMBD))
        f = gelu_new(mm(x2, fc_w_ref[l]) + vrow(base + 6, 4 * N_EMBD))
        h = h + mm(f, mproj_w_ref[l]) + vrow(base + 7, N_EMBD)

    hf = layer_norm(h, vrow(R_LNF_G, N_EMBD), vrow(R_LNF_B, N_EMBD))       # ln_f

    # fused prediction heads -> single lane-dense [BS, 128] store
    o = mm(hf, head_w_ref[...]) + vrow(R_HEAD_B, OUT_W)
    lane = jax.lax.broadcasted_iota(jnp.int32, (1, OUT_W), 1)
    is_act = (lane >= ACT_COL0) & (lane < ACT_COL0 + ACTION_DIM)
    out_ref[...] = jnp.where(is_act, jnp.tanh(o), o).astype(out_ref.dtype)


def _dtrans_fused(slab, bias, *weights):
    nstep, bbs, _ = slab.shape

    def per_step(a):
        nrest = a.ndim - 1
        return pl.BlockSpec((None,) + tuple(a.shape[1:]),
                            lambda b, _n=nrest: (b,) + (0,) * _n)

    def shared(a):
        return pl.BlockSpec(a.shape, lambda b, _n=a.ndim: (0,) * _n)

    in_specs = [per_step(slab), per_step(bias)] + [shared(w) for w in weights]
    out_shape = jax.ShapeDtypeStruct((nstep, bbs, OUT_W), jnp.float32)
    out_specs = pl.BlockSpec((None, bbs, OUT_W), lambda b: (b, 0, 0))

    return pl.pallas_call(
        _dtrans_fused_kernel,
        grid=(nstep,),
        in_specs=in_specs,
        out_specs=out_specs,
        out_shape=out_shape,
        compiler_params=pltpu.CompilerParams(
            dimension_semantics=("parallel",)),
    )(slab, bias, *weights)


# ------------------------------ parameter init ------------------------------ #
def init_params(key):
    p = {}
    std = 0.02

    def nrm(k, shape):
        return jax.random.normal(k, shape, jnp.float32) * std

    keys = iter(jax.random.split(key, 64))
    # embedders
    p["embed_timestep"] = nrm(next(keys), (MAX_EP_LEN, N_EMBD))
    p["embed_return_w"] = nrm(next(keys), (1, N_EMBD))
    p["embed_return_b"] = jnp.zeros((N_EMBD,), jnp.float32)
    p["embed_state_w"] = nrm(next(keys), (STATE_DIM, N_EMBD))
    p["embed_state_b"] = jnp.zeros((N_EMBD,), jnp.float32)
    p["embed_action_w"] = nrm(next(keys), (ACTION_DIM, N_EMBD))
    p["embed_action_b"] = jnp.zeros((N_EMBD,), jnp.float32)
    p["embed_ln_g"] = jnp.ones((N_EMBD,), jnp.float32)
    p["embed_ln_b"] = jnp.zeros((N_EMBD,), jnp.float32)
    # GPT2 backbone
    p["wpe"] = nrm(next(keys), (1024, N_EMBD))
    p["layers"] = []
    for _ in range(N_LAYER):
        lp = {
            "ln1_g": jnp.ones((N_EMBD,), jnp.float32),
            "ln1_b": jnp.zeros((N_EMBD,), jnp.float32),
            "c_attn_w": nrm(next(keys), (N_EMBD, 3 * N_EMBD)),
            "c_attn_b": jnp.zeros((3 * N_EMBD,), jnp.float32),
            "c_proj_w": nrm(next(keys), (N_EMBD, N_EMBD)),
            "c_proj_b": jnp.zeros((N_EMBD,), jnp.float32),
            "ln2_g": jnp.ones((N_EMBD,), jnp.float32),
            "ln2_b": jnp.zeros((N_EMBD,), jnp.float32),
            "mlp_fc_w": nrm(next(keys), (N_EMBD, 4 * N_EMBD)),
            "mlp_fc_b": jnp.zeros((4 * N_EMBD,), jnp.float32),
            "mlp_proj_w": nrm(next(keys), (4 * N_EMBD, N_EMBD)),
            "mlp_proj_b": jnp.zeros((N_EMBD,), jnp.float32),
        }
        p["layers"].append(lp)
    p["ln_f_g"] = jnp.ones((N_EMBD,), jnp.float32)
    p["ln_f_b"] = jnp.zeros((N_EMBD,), jnp.float32)
    # heads
    p["predict_state_w"] = nrm(next(keys), (N_EMBD, STATE_DIM))
    p["predict_state_b"] = jnp.zeros((STATE_DIM,), jnp.float32)
    p["predict_action_w"] = nrm(next(keys), (N_EMBD, ACTION_DIM))
    p["predict_action_b"] = jnp.zeros((ACTION_DIM,), jnp.float32)
    p["predict_return_w"] = nrm(next(keys), (N_EMBD, 1))
    p["predict_return_b"] = jnp.zeros((1,), jnp.float32)
    return p


def pack_params(p):
    """Pack params into the fused layout (9 input streams total for the kernel)."""
    f32 = jnp.float32
    E = N_EMBD

    # fused embedder weight [SLAB_K, 2E]: features + type-one-hot biases + timestep
    # table (cols :E, pre-embed_ln) and wpe rows (cols E:, post-embed_ln).
    emb_w = jnp.zeros((SLAB_K, 2 * E), f32)
    emb_w = emb_w.at[0:1, :E].set(p["embed_return_w"])
    emb_w = emb_w.at[1:1 + STATE_DIM, :E].set(p["embed_state_w"])
    emb_w = emb_w.at[1 + STATE_DIM:1 + STATE_DIM + ACTION_DIM, :E].set(p["embed_action_w"])
    emb_w = emb_w.at[IN_CAT - 3, :E].set(p["embed_return_b"])
    emb_w = emb_w.at[IN_CAT - 2, :E].set(p["embed_state_b"])
    emb_w = emb_w.at[IN_CAT - 1, :E].set(p["embed_action_b"])
    emb_w = emb_w.at[COL_TIME0:COL_TIME0 + MAX_EP_LEN, :E].set(p["embed_timestep"])
    emb_w = emb_w.at[COL_POS0:COL_POS0 + S, E:].set(p["wpe"][:S])

    # consolidated gain/bias vector slab [VEC_ROWS, 128]
    vecs = jnp.zeros((VEC_ROWS, VEC_W), f32)

    def setrow(slab, r, vec):
        vec = jnp.asarray(vec, f32).reshape(-1)
        return slab.at[r, :vec.shape[0]].set(vec)

    vecs = setrow(vecs, R_ELN_G, p["embed_ln_g"])
    vecs = setrow(vecs, R_ELN_B, p["embed_ln_b"])
    vecs = setrow(vecs, R_LNF_G, p["ln_f_g"])
    vecs = setrow(vecs, R_LNF_B, p["ln_f_b"])
    head_b = jnp.zeros((VEC_W,), f32)
    head_b = head_b.at[0:1].set(p["predict_return_b"])
    head_b = head_b.at[1:1 + STATE_DIM].set(p["predict_state_b"])
    head_b = head_b.at[ACT_COL0:ACT_COL0 + ACTION_DIM].set(p["predict_action_b"])
    vecs = setrow(vecs, R_HEAD_B, head_b)
    for l, lp in enumerate(p["layers"]):
        base = LAYER_ROW0 + 8 * l
        vecs = setrow(vecs, base + 0, lp["ln1_g"])
        vecs = setrow(vecs, base + 1, lp["ln1_b"])
        vecs = setrow(vecs, base + 2, lp["c_attn_b"])
        vecs = setrow(vecs, base + 3, lp["c_proj_b"])
        vecs = setrow(vecs, base + 4, lp["ln2_g"])
        vecs = setrow(vecs, base + 5, lp["ln2_b"])
        vecs = setrow(vecs, base + 6, lp["mlp_fc_b"])
        vecs = setrow(vecs, base + 7, lp["mlp_proj_b"])

    attn_w = jnp.stack([lp["c_attn_w"] for lp in p["layers"]])
    cproj_w = jnp.stack([lp["c_proj_w"] for lp in p["layers"]])
    fc_w = jnp.stack([lp["mlp_fc_w"] for lp in p["layers"]])
    mproj_w = jnp.stack([lp["mlp_proj_w"] for lp in p["layers"]])

    # fused, lane-dense prediction head weight [E, 128]
    head_w = jnp.zeros((E, OUT_W), f32)
    head_w = head_w.at[:, 0:1].set(p["predict_return_w"])
    head_w = head_w.at[:, 1:1 + STATE_DIM].set(p["predict_state_w"])
    head_w = head_w.at[:, ACT_COL0:ACT_COL0 + ACTION_DIM].set(p["predict_action_w"])

    cast = lambda w: w.astype(MM_DTYPE)     # MXU operands only; vecs stay f32
    return (cast(emb_w), vecs, cast(attn_w), cast(cproj_w), cast(fc_w),
            cast(mproj_w), cast(head_w))


# ------------------------------- forward pass ------------------------------- #
def dtrans_forward(params, states, actions, rewards, returns_to_go, timesteps,
                   attention_mask=None):
    del rewards  # unused in the reference forward
    f32 = jnp.float32
    batch, seq = states.shape[0], states.shape[1]
    seq_len = 3 * seq
    assert seq == T and seq_len == S, "module constants are baked for T timesteps"
    if attention_mask is None:
        attention_mask = jnp.ones((batch, seq), f32)
    attention_mask = attention_mask.astype(f32)

    weights = pack_params(params)

    # ---- glue: per-token feature slab (features + type/timestep/position one-hots)
    z1 = jnp.zeros((batch, seq, 1), f32)
    zs = jnp.zeros((batch, seq, STATE_DIM), f32)
    za = jnp.zeros((batch, seq, ACTION_DIM), f32)
    eye3 = jnp.eye(3, dtype=f32)
    oh = lambda i: jnp.broadcast_to(eye3[i], (batch, seq, 3))
    row_r = jnp.concatenate([returns_to_go.astype(f32), zs, za, oh(0)], axis=-1)
    row_s = jnp.concatenate([z1, states.astype(f32), za, oh(1)], axis=-1)
    row_a = jnp.concatenate([z1, zs, actions.astype(f32), oh(2)], axis=-1)
    feat = jnp.stack([row_r, row_s, row_a], axis=2).reshape(batch, seq_len, IN_CAT)
    t_oh = jax.nn.one_hot(timesteps, MAX_EP_LEN, dtype=f32)          # [B, T, 64]
    t_oh = jnp.repeat(t_oh, 3, axis=1)                               # [B, 3T, 64]
    pos_oh = jnp.broadcast_to(jnp.eye(seq_len, dtype=f32)[None],
                              (batch, seq_len, seq_len))             # [B, 3T, 3T]
    parts = [feat, t_oh, pos_oh]
    pad_w = SLAB_K - (IN_CAT + MAX_EP_LEN + seq_len)
    if pad_w:
        parts.append(jnp.zeros((batch, seq_len, pad_w), f32))
    slab = jnp.concatenate(parts, axis=-1)                           # [B, 3T, SLAB_K]

    # ---- grid layout: fold batch into matmul rows; one grid step per TensorCore
    tc = _tensorcores_per_chip()
    nstep = tc if (tc > 1 and batch % tc == 0) else 1
    bb = batch // nstep
    bbs = bb * seq_len
    slab = slab.reshape(nstep, bbs, SLAB_K)

    # ---- additive attention bias: causal + key padding + block-diagonal over batch
    mask3 = jnp.repeat(attention_mask, 3, axis=1).reshape(nstep, bbs)    # key validity
    ridx = jnp.arange(bbs)
    same_b = (ridx[:, None] // seq_len) == (ridx[None, :] // seq_len)
    causal = ridx[None, :] <= ridx[:, None]
    keep = (same_b & causal)[None, :, :] & (mask3[:, None, :] > 0.5)
    bias = jnp.where(keep, 0.0, NEG_INF).astype(f32)                     # [nstep,bbs,bbs]

    out = _dtrans_fused(slab, bias, *weights)                            # [nstep,bbs,128]
    out = out.reshape(batch, seq_len, OUT_W)

    # token-type row selection (action tokens -> return/state preds, state tokens ->
    # action preds), matching x.permute(0,2,1,3) indexing of the reference
    return_preds = out[:, 2::3, 0:1]
    state_preds = out[:, 2::3, 1:1 + STATE_DIM]
    action_preds = out[:, 1::3, ACT_COL0:ACT_COL0 + ACTION_DIM]
    return state_preds, action_preds, return_preds


# ---------------------------------- driver ---------------------------------- #
if __name__ == "__main__":
    key = jax.random.PRNGKey(0)
    kp, ks, ka, kr, kg, kt = jax.random.split(key, 6)

    params = init_params(kp)

    states = jax.random.normal(ks, (B, T, STATE_DIM), jnp.float32)
    actions = jax.random.normal(ka, (B, T, ACTION_DIM), jnp.float32)
    rewards = jax.random.normal(kr, (B, T, 1), jnp.float32)
    returns_to_go = jax.random.normal(kg, (B, T, 1), jnp.float32)
    timesteps = jax.random.randint(kt, (B, T), 0, MAX_EP_LEN, jnp.int32)

    fwd = jax.jit(dtrans_forward)
    state_preds, action_preds, return_preds = fwd(
        params, states, actions, rewards, returns_to_go, timesteps, None)
    jax.block_until_ready((state_preds, action_preds, return_preds))

    assert state_preds.shape == (B, T, STATE_DIM)
    assert action_preds.shape == (B, T, ACTION_DIM)
    assert return_preds.shape == (B, T, 1)
    assert bool(jnp.all(jnp.isfinite(state_preds)))
    assert bool(jnp.all(jnp.isfinite(action_preds)))
    assert bool(jnp.all(jnp.isfinite(return_preds)))
    print("KERNEL_OK")
</pallas_src>

<mosaic_0001>
module attributes {stable_mosaic.version = 11 : i64} {
  func.func @_dtrans_fused_kernel(%arg0: i32, %arg1: memref<1x48x128xf32, #tpu.memory_space<vmem>>, %arg2: memref<1x48x48xf32, #tpu.memory_space<vmem>>, %arg3: memref<128x64xbf16, #tpu.memory_space<vmem>>, %arg4: memref<24x128xf32, #tpu.memory_space<vmem>>, %arg5: memref<2x32x96xbf16, #tpu.memory_space<vmem>>, %arg6: memref<2x32x32xbf16, #tpu.memory_space<vmem>>, %arg7: memref<2x32x128xbf16, #tpu.memory_space<vmem>>, %arg8: memref<2x128x32xbf16, #tpu.memory_space<vmem>>, %arg9: memref<32x128xbf16, #tpu.memory_space<vmem>>, %arg10: memref<1x48x128xf32, #tpu.memory_space<vmem>>) attributes {dimension_semantics = [#tpu.dimension_semantics<parallel>], iteration_bounds = array<i64: 1>, scalar_prefetch = 0 : i64, scratch_operands = 0 : i64, tpu.core_type = #tpu.core_type<tc>, window_params = [{transform_indices = @transform_0, window_bounds = array<i64: 1, 48, 128>}, {transform_indices = @transform_1, window_bounds = array<i64: 1, 48, 48>}, {pipeline_mode = #tpu.pipeline_mode<synchronous>, transform_indices = @transform_2, window_bounds = array<i64: 128, 64>}, {pipeline_mode = #tpu.pipeline_mode<synchronous>, transform_indices = @transform_3, window_bounds = array<i64: 24, 128>}, {pipeline_mode = #tpu.pipeline_mode<synchronous>, transform_indices = @transform_4, window_bounds = array<i64: 2, 32, 96>}, {pipeline_mode = #tpu.pipeline_mode<synchronous>, transform_indices = @transform_5, window_bounds = array<i64: 2, 32, 32>}, {pipeline_mode = #tpu.pipeline_mode<synchronous>, transform_indices = @transform_6, window_bounds = array<i64: 2, 32, 128>}, {pipeline_mode = #tpu.pipeline_mode<synchronous>, transform_indices = @transform_7, window_bounds = array<i64: 2, 128, 32>}, {pipeline_mode = #tpu.pipeline_mode<synchronous>, transform_indices = @transform_8, window_bounds = array<i64: 32, 128>}, {transform_indices = @transform_9, window_bounds = array<i64: 1, 48, 128>}]} {
    %c0 = arith.constant 0 : index
    %c0_0 = arith.constant 0 : index
    %c0_1 = arith.constant 0 : index
    %0 = vector.load %arg1[%c0, %c0_0, %c0_1] : memref<1x48x128xf32, #tpu.memory_space<vmem>>, vector<1x48x128xf32>
    %1 = vector.shape_cast %0 : vector<1x48x128xf32> to vector<48x128xf32>
    %c0_2 = arith.constant 0 : index
    %c0_3 = arith.constant 0 : index
    %2 = vector.load %arg3[%c0_2, %c0_3] : memref<128x64xbf16, #tpu.memory_space<vmem>>, vector<128x64xbf16>
    %3 = arith.truncf %1 : vector<48x128xf32> to vector<48x128xbf16>
    %cst = arith.constant dense<0.000000e+00> : vector<48x64xf32>
    %4 = tpu.matmul %3, %2, %cst {dimension_numbers = #tpu.dot_dimension_numbers<[1], [0], [0], [1], [0, 0, 1, 1], [], []>} : vector<48x128xbf16>, vector<128x64xbf16>, vector<48x64xf32> -> vector<48x64xf32>
    %5 = vector.extract_strided_slice %4 {offsets = [0, 0], sizes = [48, 32], strides = [1, 1]} : vector<48x64xf32> to vector<48x32xf32>
    %c0_4 = arith.constant 0 : index
    %c0_5 = arith.constant 0 : index
    %6 = vector.load %arg4[%c0_4, %c0_5] : memref<24x128xf32, #tpu.memory_space<vmem>>, vector<1x32xf32>
    %c1 = arith.constant 1 : index
    %c0_6 = arith.constant 0 : index
    %7 = vector.load %arg4[%c1, %c0_6] : memref<24x128xf32, #tpu.memory_space<vmem>>, vector<1x32xf32>
    %cst_7 = arith.constant dense<0.000000e+00> : vector<48xf32>
    %8 = vector.multi_reduction <add>, %5, %cst_7 [1] : vector<48x32xf32> to vector<48xf32>
    %9 = vector.shape_cast %8 : vector<48xf32> to vector<48x1xf32>
    %cst_8 = arith.constant 3.200000e+01 : f32
    %10 = vector.broadcast %cst_8 : f32 to vector<48x1xf32>
    %11 = arith.divf %9, %10 : vector<48x1xf32>
    %12 = vector.broadcast %11 : vector<48x1xf32> to vector<48x32xf32>
    %13 = arith.subf %5, %12 : vector<48x32xf32>
    %14 = arith.mulf %13, %13 : vector<48x32xf32>
    %cst_9 = arith.constant dense<0.000000e+00> : vector<48xf32>
    %15 = vector.multi_reduction <add>, %14, %cst_9 [1] : vector<48x32xf32> to vector<48xf32>
    %16 = vector.shape_cast %15 : vector<48xf32> to vector<48x1xf32>
    %cst_10 = arith.constant 3.200000e+01 : f32
    %17 = vector.broadcast %cst_10 : f32 to vector<48x1xf32>
    %18 = arith.divf %16, %17 : vector<48x1xf32>
    %cst_11 = arith.constant 9.99999974E-6 : f32
    %19 = vector.broadcast %cst_11 : f32 to vector<48x1xf32>
    %20 = arith.addf %18, %19 : vector<48x1xf32>
    %21 = math.rsqrt %20 : vector<48x1xf32>
    %22 = vector.broadcast %21 : vector<48x1xf32> to vector<48x32xf32>
    %23 = arith.mulf %13, %22 : vector<48x32xf32>
    %24 = vector.broadcast %6 : vector<1x32xf32> to vector<48x32xf32>
    %25 = arith.mulf %23, %24 : vector<48x32xf32>
    %26 = vector.broadcast %7 : vector<1x32xf32> to vector<48x32xf32>
    %27 = arith.addf %25, %26 : vector<48x32xf32>
    %28 = vector.extract_strided_slice %4 {offsets = [0, 32], sizes = [48, 32], strides = [1, 1]} : vector<48x64xf32> to vector<48x32xf32>
    %29 = arith.addf %27, %28 : vector<48x32xf32>
    %c0_12 = arith.constant 0 : index
    %c0_13 = arith.constant 0 : index
    %c0_14 = arith.constant 0 : index
    %30 = vector.load %arg2[%c0_12, %c0_13, %c0_14] : memref<1x48x48xf32, #tpu.memory_space<vmem>>, vector<1x48x48xf32>
    %31 = vector.shape_cast %30 : vector<1x48x48xf32> to vector<48x48xf32>
    %c5 = arith.constant 5 : index
    %c0_15 = arith.constant 0 : index
    %32 = vector.load %arg4[%c5, %c0_15] : memref<24x128xf32, #tpu.memory_space<vmem>>, vector<1x32xf32>
    %c6 = arith.constant 6 : index
    %c0_16 = arith.constant 0 : index
    %33 = vector.load %arg4[%c6, %c0_16] : memref<24x128xf32, #tpu.memory_space<vmem>>, vector<1x32xf32>
    %cst_17 = arith.constant dense<0.000000e+00> : vector<48xf32>
    %34 = vector.multi_reduction <add>, %29, %cst_17 [1] : vector<48x32xf32> to vector<48xf32>
    %35 = vector.shape_cast %34 : vector<48xf32> to vector<48x1xf32>
    %cst_18 = arith.constant 3.200000e+01 : f32
    %36 = vector.broadcast %cst_18 : f32 to vector<48x1xf32>
    %37 = arith.divf %35, %36 : vector<48x1xf32>
    %38 = vector.broadcast %37 : vector<48x1xf32> to vector<48x32xf32>
    %39 = arith.subf %29, %38 : vector<48x32xf32>
    %40 = arith.mulf %39, %39 : vector<48x32xf32>
    %cst_19 = arith.constant dense<0.000000e+00> : vector<48xf32>
    %41 = vector.multi_reduction <add>, %40, %cst_19 [1] : vector<48x32xf32> to vector<48xf32>
    %42 = vector.shape_cast %41 : vector<48xf32> to vector<48x1xf32>
    %cst_20 = arith.constant 3.200000e+01 : f32
    %43 = vector.broadcast %cst_20 : f32 to vector<48x1xf32>
    %44 = arith.divf %42, %43 : vector<48x1xf32>
    %cst_21 = arith.constant 9.99999974E-6 : f32
    %45 = vector.broadcast %cst_21 : f32 to vector<48x1xf32>
    %46 = arith.addf %44, %45 : vector<48x1xf32>
    %47 = math.rsqrt %46 : vector<48x1xf32>
    %48 = vector.broadcast %47 : vector<48x1xf32> to vector<48x32xf32>
    %49 = arith.mulf %39, %48 : vector<48x32xf32>
    %50 = vector.broadcast %32 : vector<1x32xf32> to vector<48x32xf32>
    %51 = arith.mulf %49, %50 : vector<48x32xf32>
    %52 = vector.broadcast %33 : vector<1x32xf32> to vector<48x32xf32>
    %53 = arith.addf %51, %52 : vector<48x32xf32>
    %c0_22 = arith.constant 0 : index
    %c0_23 = arith.constant 0 : index
    %c0_24 = arith.constant 0 : index
    %54 = vector.load %arg5[%c0_22, %c0_23, %c0_24] : memref<2x32x96xbf16, #tpu.memory_space<vmem>>, vector<1x32x96xbf16>
    %55 = vector.shape_cast %54 : vector<1x32x96xbf16> to vector<32x96xbf16>
    %56 = arith.truncf %53 : vector<48x32xf32> to vector<48x32xbf16>
    %cst_25 = arith.constant dense<0.000000e+00> : vector<48x96xf32>
    %57 = tpu.matmul %56, %55, %cst_25 {dimension_numbers = #tpu.dot_dimension_numbers<[1], [0], [0], [1], [0, 0, 1, 1], [], []>} : vector<48x32xbf16>, vector<32x96xbf16>, vector<48x96xf32> -> vector<48x96xf32>
    %c7 = arith.constant 7 : index
    %c0_26 = arith.constant 0 : index
    %58 = vector.load %arg4[%c7, %c0_26] : memref<24x128xf32, #tpu.memory_space<vmem>>, vector<1x96xf32>
    %59 = vector.broadcast %58 : vector<1x96xf32> to vector<48x96xf32>
    %60 = arith.addf %57, %59 : vector<48x96xf32>
    %c0_27 = arith.constant 0 : index
    %c0_28 = arith.constant 0 : index
    %c0_29 = arith.constant 0 : index
    %61 = vector.load %arg6[%c0_27, %c0_28, %c0_29] : memref<2x32x32xbf16, #tpu.memory_space<vmem>>, vector<1x32x32xbf16>
    %62 = vector.shape_cast %61 : vector<1x32x32xbf16> to vector<32x32xbf16>
    %63 = vector.extract_strided_slice %60 {offsets = [0, 0], sizes = [48, 16], strides = [1, 1]} : vector<48x96xf32> to vector<48x16xf32>
    %64 = vector.extract_strided_slice %60 {offsets = [0, 32], sizes = [48, 16], strides = [1, 1]} : vector<48x96xf32> to vector<48x16xf32>
    %65 = vector.extract_strided_slice %60 {offsets = [0, 64], sizes = [48, 16], strides = [1, 1]} : vector<48x96xf32> to vector<48x16xf32>
    %66 = arith.truncf %63 : vector<48x16xf32> to vector<48x16xbf16>
    %67 = arith.truncf %64 : vector<48x16xf32> to vector<48x16xbf16>
    %cst_30 = arith.constant dense<0.000000e+00> : vector<48x48xf32>
    %68 = tpu.matmul %66, %67, %cst_30 {dimension_numbers = #tpu.dot_dimension_numbers<[1], [1], [0], [0], [0, 0, 1, 0], [], []>} : vector<48x16xbf16>, vector<48x16xbf16>, vector<48x48xf32> -> vector<48x48xf32>
    %cst_31 = arith.constant 2.500000e-01 : f32
    %69 = vector.broadcast %cst_31 : f32 to vector<48x48xf32>
    %70 = arith.mulf %68, %69 : vector<48x48xf32>
    %71 = arith.addf %70, %31 : vector<48x48xf32>
    %cst_32 = arith.constant dense<0xFF800000> : vector<48xf32>
    %72 = vector.multi_reduction <maximumf>, %71, %cst_32 [1] : vector<48x48xf32> to vector<48xf32>
    %73 = vector.shape_cast %72 : vector<48xf32> to vector<48x1xf32>
    %74 = vector.broadcast %73 : vector<48x1xf32> to vector<48x48xf32>
    %75 = arith.subf %71, %74 : vector<48x48xf32>
    %76 = math.exp %75 : vector<48x48xf32>
    %cst_33 = arith.constant dense<0.000000e+00> : vector<48xf32>
    %77 = vector.multi_reduction <add>, %76, %cst_33 [1] : vector<48x48xf32> to vector<48xf32>
    %78 = vector.shape_cast %77 : vector<48xf32> to vector<48x1xf32>
    %79 = vector.broadcast %78 : vector<48x1xf32> to vector<48x48xf32>
    %80 = arith.divf %76, %79 : vector<48x48xf32>
    %81 = arith.truncf %80 : vector<48x48xf32> to vector<48x48xbf16>
    %82 = arith.truncf %65 : vector<48x16xf32> to vector<48x16xbf16>
    %cst_34 = arith.constant dense<0.000000e+00> : vector<48x16xf32>
    %83 = tpu.matmul %81, %82, %cst_34 {dimension_numbers = #tpu.dot_dimension_numbers<[1], [0], [0], [1], [0, 0, 1, 1], [], []>} : vector<48x48xbf16>, vector<48x16xbf16>, vector<48x16xf32> -> vector<48x16xf32>
    %84 = vector.extract_strided_slice %62 {offsets = [0, 0], sizes = [16, 32], strides = [1, 1]} : vector<32x32xbf16> to vector<16x32xbf16>
    %85 = arith.truncf %83 : vector<48x16xf32> to vector<48x16xbf16>
    %cst_35 = arith.constant dense<0.000000e+00> : vector<48x32xf32>
    %86 = tpu.matmul %85, %84, %cst_35 {dimension_numbers = #tpu.dot_dimension_numbers<[1], [0], [0], [1], [0, 0, 1, 1], [], []>} : vector<48x16xbf16>, vector<16x32xbf16>, vector<48x32xf32> -> vector<48x32xf32>
    %87 = vector.extract_strided_slice %60 {offsets = [0, 16], sizes = [48, 16], strides = [1, 1]} : vector<48x96xf32> to vector<48x16xf32>
    %88 = vector.extract_strided_slice %60 {offsets = [0, 48], sizes = [48, 16], strides = [1, 1]} : vector<48x96xf32> to vector<48x16xf32>
    %89 = vector.extract_strided_slice %60 {offsets = [0, 80], sizes = [48, 16], strides = [1, 1]} : vector<48x96xf32> to vector<48x16xf32>
    %90 = arith.truncf %87 : vector<48x16xf32> to vector<48x16xbf16>
    %91 = arith.truncf %88 : vector<48x16xf32> to vector<48x16xbf16>
    %cst_36 = arith.constant dense<0.000000e+00> : vector<48x48xf32>
    %92 = tpu.matmul %90, %91, %cst_36 {dimension_numbers = #tpu.dot_dimension_numbers<[1], [1], [0], [0], [0, 0, 1, 0], [], []>} : vector<48x16xbf16>, vector<48x16xbf16>, vector<48x48xf32> -> vector<48x48xf32>
    %cst_37 = arith.constant 2.500000e-01 : f32
    %93 = vector.broadcast %cst_37 : f32 to vector<48x48xf32>
    %94 = arith.mulf %92, %93 : vector<48x48xf32>
    %95 = arith.addf %94, %31 : vector<48x48xf32>
    %cst_38 = arith.constant dense<0xFF800000> : vector<48xf32>
    %96 = vector.multi_reduction <maximumf>, %95, %cst_38 [1] : vector<48x48xf32> to vector<48xf32>
    %97 = vector.shape_cast %96 : vector<48xf32> to vector<48x1xf32>
    %98 = vector.broadcast %97 : vector<48x1xf32> to vector<48x48xf32>
    %99 = arith.subf %95, %98 : vector<48x48xf32>
    %100 = math.exp %99 : vector<48x48xf32>
    %cst_39 = arith.constant dense<0.000000e+00> : vector<48xf32>
    %101 = vector.multi_reduction <add>, %100, %cst_39 [1] : vector<48x48xf32> to vector<48xf32>
    %102 = vector.shape_cast %101 : vector<48xf32> to vector<48x1xf32>
    %103 = vector.broadcast %102 : vector<48x1xf32> to vector<48x48xf32>
    %104 = arith.divf %100, %103 : vector<48x48xf32>
    %105 = arith.truncf %104 : vector<48x48xf32> to vector<48x48xbf16>
    %106 = arith.truncf %89 : vector<48x16xf32> to vector<48x16xbf16>
    %cst_40 = arith.constant dense<0.000000e+00> : vector<48x16xf32>
    %107 = tpu.matmul %105, %106, %cst_40 {dimension_numbers = #tpu.dot_dimension_numbers<[1], [0], [0], [1], [0, 0, 1, 1], [], []>} : vector<48x48xbf16>, vector<48x16xbf16>, vector<48x16xf32> -> vector<48x16xf32>
    %108 = vector.extract_strided_slice %62 {offsets = [16, 0], sizes = [16, 32], strides = [1, 1]} : vector<32x32xbf16> to vector<16x32xbf16>
    %109 = arith.truncf %107 : vector<48x16xf32> to vector<48x16xbf16>
    %cst_41 = arith.constant dense<0.000000e+00> : vector<48x32xf32>
    %110 = tpu.matmul %109, %108, %cst_41 {dimension_numbers = #tpu.dot_dimension_numbers<[1], [0], [0], [1], [0, 0, 1, 1], [], []>} : vector<48x16xbf16>, vector<16x32xbf16>, vector<48x32xf32> -> vector<48x32xf32>
    %111 = arith.addf %86, %110 : vector<48x32xf32>
    %112 = arith.addf %29, %111 : vector<48x32xf32>
    %c8 = arith.constant 8 : index
    %c0_42 = arith.constant 0 : index
    %113 = vector.load %arg4[%c8, %c0_42] : memref<24x128xf32, #tpu.memory_space<vmem>>, vector<1x32xf32>
    %114 = vector.broadcast %113 : vector<1x32xf32> to vector<48x32xf32>
    %115 = arith.addf %112, %114 : vector<48x32xf32>
    %c9 = arith.constant 9 : index
    %c0_43 = arith.constant 0 : index
    %116 = vector.load %arg4[%c9, %c0_43] : memref<24x128xf32, #tpu.memory_space<vmem>>, vector<1x32xf32>
    %c10 = arith.constant 10 : index
    %c0_44 = arith.constant 0 : index
    %117 = vector.load %arg4[%c10, %c0_44] : memref<24x128xf32, #tpu.memory_space<vmem>>, vector<1x32xf32>
    %cst_45 = arith.constant dense<0.000000e+00> : vector<48xf32>
    %118 = vector.multi_reduction <add>, %115, %cst_45 [1] : vector<48x32xf32> to vector<48xf32>
    %119 = vector.shape_cast %118 : vector<48xf32> to vector<48x1xf32>
    %cst_46 = arith.constant 3.200000e+01 : f32
    %120 = vector.broadcast %cst_46 : f32 to vector<48x1xf32>
    %121 = arith.divf %119, %120 : vector<48x1xf32>
    %122 = vector.broadcast %121 : vector<48x1xf32> to vector<48x32xf32>
    %123 = arith.subf %115, %122 : vector<48x32xf32>
    %124 = arith.mulf %123, %123 : vector<48x32xf32>
    %cst_47 = arith.constant dense<0.000000e+00> : vector<48xf32>
    %125 = vector.multi_reduction <add>, %124, %cst_47 [1] : vector<48x32xf32> to vector<48xf32>
    %126 = vector.shape_cast %125 : vector<48xf32> to vector<48x1xf32>
    %cst_48 = arith.constant 3.200000e+01 : f32
    %127 = vector.broadcast %cst_48 : f32 to vector<48x1xf32>
    %128 = arith.divf %126, %127 : vector<48x1xf32>
    %cst_49 = arith.constant 9.99999974E-6 : f32
    %129 = vector.broadcast %cst_49 : f32 to vector<48x1xf32>
    %130 = arith.addf %128, %129 : vector<48x1xf32>
    %131 = math.rsqrt %130 : vector<48x1xf32>
    %132 = vector.broadcast %131 : vector<48x1xf32> to vector<48x32xf32>
    %133 = arith.mulf %123, %132 : vector<48x32xf32>
    %134 = vector.broadcast %116 : vector<1x32xf32> to vector<48x32xf32>
    %135 = arith.mulf %133, %134 : vector<48x32xf32>
    %136 = vector.broadcast %117 : vector<1x32xf32> to vector<48x32xf32>
    %137 = arith.addf %135, %136 : vector<48x32xf32>
    %c0_50 = arith.constant 0 : index
    %c0_51 = arith.constant 0 : index
    %c0_52 = arith.constant 0 : index
    %138 = vector.load %arg7[%c0_50, %c0_51, %c0_52] : memref<2x32x128xbf16, #tpu.memory_space<vmem>>, vector<1x32x128xbf16>
    %139 = vector.shape_cast %138 : vector<1x32x128xbf16> to vector<32x128xbf16>
    %140 = arith.truncf %137 : vector<48x32xf32> to vector<48x32xbf16>
    %cst_53 = arith.constant dense<0.000000e+00> : vector<48x128xf32>
    %141 = tpu.matmul %140, %139, %cst_53 {dimension_numbers = #tpu.dot_dimension_numbers<[1], [0], [0], [1], [0, 0, 1, 1], [], []>} : vector<48x32xbf16>, vector<32x128xbf16>, vector<48x128xf32> -> vector<48x128xf32>
    %c11 = arith.constant 11 : index
    %c0_54 = arith.constant 0 : index
    %142 = vector.load %arg4[%c11, %c0_54] : memref<24x128xf32, #tpu.memory_space<vmem>>, vector<1x128xf32>
    %143 = vector.broadcast %142 : vector<1x128xf32> to vector<48x128xf32>
    %144 = arith.addf %141, %143 : vector<48x128xf32>
    %cst_55 = arith.constant 5.000000e-01 : f32
    %145 = vector.broadcast %cst_55 : f32 to vector<48x128xf32>
    %146 = arith.mulf %145, %144 : vector<48x128xf32>
    %cst_56 = arith.constant 4.471500e-02 : f32
    %147 = vector.broadcast %cst_56 : f32 to vector<48x128xf32>
    %148 = arith.mulf %147, %144 : vector<48x128xf32>
    %149 = arith.mulf %148, %144 : vector<48x128xf32>
    %150 = arith.mulf %149, %144 : vector<48x128xf32>
    %151 = arith.addf %144, %150 : vector<48x128xf32>
    %cst_57 = arith.constant 0.797884583 : f32
    %152 = vector.broadcast %cst_57 : f32 to vector<48x128xf32>
    %153 = arith.mulf %152, %151 : vector<48x128xf32>
    %154 = math.tanh %153 : vector<48x128xf32>
    %cst_58 = arith.constant 1.000000e+00 : f32
    %155 = vector.broadcast %cst_58 : f32 to vector<48x128xf32>
    %156 = arith.addf %155, %154 : vector<48x128xf32>
    %157 = arith.mulf %146, %156 : vector<48x128xf32>
    %c0_59 = arith.constant 0 : index
    %c0_60 = arith.constant 0 : index
    %c0_61 = arith.constant 0 : index
    %158 = vector.load %arg8[%c0_59, %c0_60, %c0_61] : memref<2x128x32xbf16, #tpu.memory_space<vmem>>, vector<1x128x32xbf16>
    %159 = vector.shape_cast %158 : vector<1x128x32xbf16> to vector<128x32xbf16>
    %160 = arith.truncf %157 : vector<48x128xf32> to vector<48x128xbf16>
    %cst_62 = arith.constant dense<0.000000e+00> : vector<48x32xf32>
    %161 = tpu.matmul %160, %159, %cst_62 {dimension_numbers = #tpu.dot_dimension_numbers<[1], [0], [0], [1], [0, 0, 1, 1], [], []>} : vector<48x128xbf16>, vector<128x32xbf16>, vector<48x32xf32> -> vector<48x32xf32>
    %162 = arith.addf %115, %161 : vector<48x32xf32>
    %c12 = arith.constant 12 : index
    %c0_63 = arith.constant 0 : index
    %163 = vector.load %arg4[%c12, %c0_63] : memref<24x128xf32, #tpu.memory_space<vmem>>, vector<1x32xf32>
    %164 = vector.broadcast %163 : vector<1x32xf32> to vector<48x32xf32>
    %165 = arith.addf %162, %164 : vector<48x32xf32>
    %c13 = arith.constant 13 : index
    %c0_64 = arith.constant 0 : index
    %166 = vector.load %arg4[%c13, %c0_64] : memref<24x128xf32, #tpu.memory_space<vmem>>, vector<1x32xf32>
    %c14 = arith.constant 14 : index
    %c0_65 = arith.constant 0 : index
    %167 = vector.load %arg4[%c14, %c0_65] : memref<24x128xf32, #tpu.memory_space<vmem>>, vector<1x32xf32>
    %cst_66 = arith.constant dense<0.000000e+00> : vector<48xf32>
    %168 = vector.multi_reduction <add>, %165, %cst_66 [1] : vector<48x32xf32> to vector<48xf32>
    %169 = vector.shape_cast %168 : vector<48xf32> to vector<48x1xf32>
    %cst_67 = arith.constant 3.200000e+01 : f32
    %170 = vector.broadcast %cst_67 : f32 to vector<48x1xf32>
    %171 = arith.divf %169, %170 : vector<48x1xf32>
    %172 = vector.broadcast %171 : vector<48x1xf32> to vector<48x32xf32>
    %173 = arith.subf %165, %172 : vector<48x32xf32>
    %174 = arith.mulf %173, %173 : vector<48x32xf32>
    %cst_68 = arith.constant dense<0.000000e+00> : vector<48xf32>
    %175 = vector.multi_reduction <add>, %174, %cst_68 [1] : vector<48x32xf32> to vector<48xf32>
    %176 = vector.shape_cast %175 : vector<48xf32> to vector<48x1xf32>
    %cst_69 = arith.constant 3.200000e+01 : f32
    %177 = vector.broadcast %cst_69 : f32 to vector<48x1xf32>
    %178 = arith.divf %176, %177 : vector<48x1xf32>
    %cst_70 = arith.constant 9.99999974E-6 : f32
    %179 = vector.broadcast %cst_70 : f32 to vector<48x1xf32>
    %180 = arith.addf %178, %179 : vector<48x1xf32>
    %181 = math.rsqrt %180 : vector<48x1xf32>
    %182 = vector.broadcast %181 : vector<48x1xf32> to vector<48x32xf32>
    %183 = arith.mulf %173, %182 : vector<48x32xf32>
    %184 = vector.broadcast %166 : vector<1x32xf32> to vector<48x32xf32>
    %185 = arith.mulf %183, %184 : vector<48x32xf32>
    %186 = vector.broadcast %167 : vector<1x32xf32> to vector<48x32xf32>
    %187 = arith.addf %185, %186 : vector<48x32xf32>
    %c1_71 = arith.constant 1 : index
    %c0_72 = arith.constant 0 : index
    %c0_73 = arith.constant 0 : index
    %188 = vector.load %arg5[%c1_71, %c0_72, %c0_73] : memref<2x32x96xbf16, #tpu.memory_space<vmem>>, vector<1x32x96xbf16>
    %189 = vector.shape_cast %188 : vector<1x32x96xbf16> to vector<32x96xbf16>
    %190 = arith.truncf %187 : vector<48x32xf32> to vector<48x32xbf16>
    %cst_74 = arith.constant dense<0.000000e+00> : vector<48x96xf32>
    %191 = tpu.matmul %190, %189, %cst_74 {dimension_numbers = #tpu.dot_dimension_numbers<[1], [0], [0], [1], [0, 0, 1, 1], [], []>} : vector<48x32xbf16>, vector<32x96xbf16>, vector<48x96xf32> -> vector<48x96xf32>
    %c15 = arith.constant 15 : index
    %c0_75 = arith.constant 0 : index
    %192 = vector.load %arg4[%c15, %c0_75] : memref<24x128xf32, #tpu.memory_space<vmem>>, vector<1x96xf32>
    %193 = vector.broadcast %192 : vector<1x96xf32> to vector<48x96xf32>
    %194 = arith.addf %191, %193 : vector<48x96xf32>
    %c1_76 = arith.constant 1 : index
    %c0_77 = arith.constant 0 : index
    %c0_78 = arith.constant 0 : index
    %195 = vector.load %arg6[%c1_76, %c0_77, %c0_78] : memref<2x32x32xbf16, #tpu.memory_space<vmem>>, vector<1x32x32xbf16>
    %196 = vector.shape_cast %195 : vector<1x32x32xbf16> to vector<32x32xbf16>
    %197 = vector.extract_strided_slice %194 {offsets = [0, 0], sizes = [48, 16], strides = [1, 1]} : vector<48x96xf32> to vector<48x16xf32>
    %198 = vector.extract_strided_slice %194 {offsets = [0, 32], sizes = [48, 16], strides = [1, 1]} : vector<48x96xf32> to vector<48x16xf32>
    %199 = vector.extract_strided_slice %194 {offsets = [0, 64], sizes = [48, 16], strides = [1, 1]} : vector<48x96xf32> to vector<48x16xf32>
    %200 = arith.truncf %197 : vector<48x16xf32> to vector<48x16xbf16>
    %201 = arith.truncf %198 : vector<48x16xf32> to vector<48x16xbf16>
    %cst_79 = arith.constant dense<0.000000e+00> : vector<48x48xf32>
    %202 = tpu.matmul %200, %201, %cst_79 {dimension_numbers = #tpu.dot_dimension_numbers<[1], [1], [0], [0], [0, 0, 1, 0], [], []>} : vector<48x16xbf16>, vector<48x16xbf16>, vector<48x48xf32> -> vector<48x48xf32>
    %cst_80 = arith.constant 2.500000e-01 : f32
    %203 = vector.broadcast %cst_80 : f32 to vector<48x48xf32>
    %204 = arith.mulf %202, %203 : vector<48x48xf32>
    %205 = arith.addf %204, %31 : vector<48x48xf32>
    %cst_81 = arith.constant dense<0xFF800000> : vector<48xf32>
    %206 = vector.multi_reduction <maximumf>, %205, %cst_81 [1] : vector<48x48xf32> to vector<48xf32>
    %207 = vector.shape_cast %206 : vector<48xf32> to vector<48x1xf32>
    %208 = vector.broadcast %207 : vector<48x1xf32> to vector<48x48xf32>
    %209 = arith.subf %205, %208 : vector<48x48xf32>
    %210 = math.exp %209 : vector<48x48xf32>
    %cst_82 = arith.constant dense<0.000000e+00> : vector<48xf32>
    %211 = vector.multi_reduction <add>, %210, %cst_82 [1] : vector<48x48xf32> to vector<48xf32>
    %212 = vector.shape_cast %211 : vector<48xf32> to vector<48x1xf32>
    %213 = vector.broadcast %212 : vector<48x1xf32> to vector<48x48xf32>
    %214 = arith.divf %210, %213 : vector<48x48xf32>
    %215 = arith.truncf %214 : vector<48x48xf32> to vector<48x48xbf16>
    %216 = arith.truncf %199 : vector<48x16xf32> to vector<48x16xbf16>
    %cst_83 = arith.constant dense<0.000000e+00> : vector<48x16xf32>
    %217 = tpu.matmul %215, %216, %cst_83 {dimension_numbers = #tpu.dot_dimension_numbers<[1], [0], [0], [1], [0, 0, 1, 1], [], []>} : vector<48x48xbf16>, vector<48x16xbf16>, vector<48x16xf32> -> vector<48x16xf32>
    %218 = vector.extract_strided_slice %196 {offsets = [0, 0], sizes = [16, 32], strides = [1, 1]} : vector<32x32xbf16> to vector<16x32xbf16>
    %219 = arith.truncf %217 : vector<48x16xf32> to vector<48x16xbf16>
    %cst_84 = arith.constant dense<0.000000e+00> : vector<48x32xf32>
    %220 = tpu.matmul %219, %218, %cst_84 {dimension_numbers = #tpu.dot_dimension_numbers<[1], [0], [0], [1], [0, 0, 1, 1], [], []>} : vector<48x16xbf16>, vector<16x32xbf16>, vector<48x32xf32> -> vector<48x32xf32>
    %221 = vector.extract_strided_slice %194 {offsets = [0, 16], sizes = [48, 16], strides = [1, 1]} : vector<48x96xf32> to vector<48x16xf32>
    %222 = vector.extract_strided_slice %194 {offsets = [0, 48], sizes = [48, 16], strides = [1, 1]} : vector<48x96xf32> to vector<48x16xf32>
    %223 = vector.extract_strided_slice %194 {offsets = [0, 80], sizes = [48, 16], strides = [1, 1]} : vector<48x96xf32> to vector<48x16xf32>
    %224 = arith.truncf %221 : vector<48x16xf32> to vector<48x16xbf16>
    %225 = arith.truncf %222 : vector<48x16xf32> to vector<48x16xbf16>
    %cst_85 = arith.constant dense<0.000000e+00> : vector<48x48xf32>
    %226 = tpu.matmul %224, %225, %cst_85 {dimension_numbers = #tpu.dot_dimension_numbers<[1], [1], [0], [0], [0, 0, 1, 0], [], []>} : vector<48x16xbf16>, vector<48x16xbf16>, vector<48x48xf32> -> vector<48x48xf32>
    %cst_86 = arith.constant 2.500000e-01 : f32
    %227 = vector.broadcast %cst_86 : f32 to vector<48x48xf32>
    %228 = arith.mulf %226, %227 : vector<48x48xf32>
    %229 = arith.addf %228, %31 : vector<48x48xf32>
    %cst_87 = arith.constant dense<0xFF800000> : vector<48xf32>
    %230 = vector.multi_reduction <maximumf>, %229, %cst_87 [1] : vector<48x48xf32> to vector<48xf32>
    %231 = vector.shape_cast %230 : vector<48xf32> to vector<48x1xf32>
    %232 = vector.broadcast %231 : vector<48x1xf32> to vector<48x48xf32>
    %233 = arith.subf %229, %232 : vector<48x48xf32>
    %234 = math.exp %233 : vector<48x48xf32>
    %cst_88 = arith.constant dense<0.000000e+00> : vector<48xf32>
    %235 = vector.multi_reduction <add>, %234, %cst_88 [1] : vector<48x48xf32> to vector<48xf32>
    %236 = vector.shape_cast %235 : vector<48xf32> to vector<48x1xf32>
    %237 = vector.broadcast %236 : vector<48x1xf32> to vector<48x48xf32>
    %238 = arith.divf %234, %237 : vector<48x48xf32>
    %239 = arith.truncf %238 : vector<48x48xf32> to vector<48x48xbf16>
    %240 = arith.truncf %223 : vector<48x16xf32> to vector<48x16xbf16>
    %cst_89 = arith.constant dense<0.000000e+00> : vector<48x16xf32>
    %241 = tpu.matmul %239, %240, %cst_89 {dimension_numbers = #tpu.dot_dimension_numbers<[1], [0], [0], [1], [0, 0, 1, 1], [], []>} : vector<48x48xbf16>, vector<48x16xbf16>, vector<48x16xf32> -> vector<48x16xf32>
    %242 = vector.extract_strided_slice %196 {offsets = [16, 0], sizes = [16, 32], strides = [1, 1]} : vector<32x32xbf16> to vector<16x32xbf16>
    %243 = arith.truncf %241 : vector<48x16xf32> to vector<48x16xbf16>
    %cst_90 = arith.constant dense<0.000000e+00> : vector<48x32xf32>
    %244 = tpu.matmul %243, %242, %cst_90 {dimension_numbers = #tpu.dot_dimension_numbers<[1], [0], [0], [1], [0, 0, 1, 1], [], []>} : vector<48x16xbf16>, vector<16x32xbf16>, vector<48x32xf32> -> vector<48x32xf32>
    %245 = arith.addf %220, %244 : vector<48x32xf32>
    %246 = arith.addf %165, %245 : vector<48x32xf32>
    %c16 = arith.constant 16 : index
    %c0_91 = arith.constant 0 : index
    %247 = vector.load %arg4[%c16, %c0_91] : memref<24x128xf32, #tpu.memory_space<vmem>>, vector<1x32xf32>
    %248 = vector.broadcast %247 : vector<1x32xf32> to vector<48x32xf32>
    %249 = arith.addf %246, %248 : vector<48x32xf32>
    %c17 = arith.constant 17 : index
    %c0_92 = arith.constant 0 : index
    %250 = vector.load %arg4[%c17, %c0_92] : memref<24x128xf32, #tpu.memory_space<vmem>>, vector<1x32xf32>
    %c18 = arith.constant 18 : index
    %c0_93 = arith.constant 0 : index
    %251 = vector.load %arg4[%c18, %c0_93] : memref<24x128xf32, #tpu.memory_space<vmem>>, vector<1x32xf32>
    %cst_94 = arith.constant dense<0.000000e+00> : vector<48xf32>
    %252 = vector.multi_reduction <add>, %249, %cst_94 [1] : vector<48x32xf32> to vector<48xf32>
    %253 = vector.shape_cast %252 : vector<48xf32> to vector<48x1xf32>
    %cst_95 = arith.constant 3.200000e+01 : f32
    %254 = vector.broadcast %cst_95 : f32 to vector<48x1xf32>
    %255 = arith.divf %253, %254 : vector<48x1xf32>
    %256 = vector.broadcast %255 : vector<48x1xf32> to vector<48x32xf32>
    %257 = arith.subf %249, %256 : vector<48x32xf32>
    %258 = arith.mulf %257, %257 : vector<48x32xf32>
    %cst_96 = arith.constant dense<0.000000e+00> : vector<48xf32>
    %259 = vector.multi_reduction <add>, %258, %cst_96 [1] : vector<48x32xf32> to vector<48xf32>
    %260 = vector.shape_cast %259 : vector<48xf32> to vector<48x1xf32>
    %cst_97 = arith.constant 3.200000e+01 : f32
    %261 = vector.broadcast %cst_97 : f32 to vector<48x1xf32>
    %262 = arith.divf %260, %261 : vector<48x1xf32>
    %cst_98 = arith.constant 9.99999974E-6 : f32
    %263 = vector.broadcast %cst_98 : f32 to vector<48x1xf32>
    %264 = arith.addf %262, %263 : vector<48x1xf32>
    %265 = math.rsqrt %264 : vector<48x1xf32>
    %266 = vector.broadcast %265 : vector<48x1xf32> to vector<48x32xf32>
    %267 = arith.mulf %257, %266 : vector<48x32xf32>
    %268 = vector.broadcast %250 : vector<1x32xf32> to vector<48x32xf32>
    %269 = arith.mulf %267, %268 : vector<48x32xf32>
    %270 = vector.broadcast %251 : vector<1x32xf32> to vector<48x32xf32>
    %271 = arith.addf %269, %270 : vector<48x32xf32>
    %c1_99 = arith.constant 1 : index
    %c0_100 = arith.constant 0 : index
    %c0_101 = arith.constant 0 : index
    %272 = vector.load %arg7[%c1_99, %c0_100, %c0_101] : memref<2x32x128xbf16, #tpu.memory_space<vmem>>, vector<1x32x128xbf16>
    %273 = vector.shape_cast %272 : vector<1x32x128xbf16> to vector<32x128xbf16>
    %274 = arith.truncf %271 : vector<48x32xf32> to vector<48x32xbf16>
    %cst_102 = arith.constant dense<0.000000e+00> : vector<48x128xf32>
    %275 = tpu.matmul %274, %273, %cst_102 {dimension_numbers = #tpu.dot_dimension_numbers<[1], [0], [0], [1], [0, 0, 1, 1], [], []>} : vector<48x32xbf16>, vector<32x128xbf16>, vector<48x128xf32> -> vector<48x128xf32>
    %c19 = arith.constant 19 : index
    %c0_103 = arith.constant 0 : index
    %276 = vector.load %arg4[%c19, %c0_103] : memref<24x128xf32, #tpu.memory_space<vmem>>, vector<1x128xf32>
    %277 = vector.broadcast %276 : vector<1x128xf32> to vector<48x128xf32>
    %278 = arith.addf %275, %277 : vector<48x128xf32>
    %cst_104 = arith.constant 5.000000e-01 : f32
    %279 = vector.broadcast %cst_104 : f32 to vector<48x128xf32>
    %280 = arith.mulf %279, %278 : vector<48x128xf32>
    %cst_105 = arith.constant 4.471500e-02 : f32
    %281 = vector.broadcast %cst_105 : f32 to vector<48x128xf32>
    %282 = arith.mulf %281, %278 : vector<48x128xf32>
    %283 = arith.mulf %282, %278 : vector<48x128xf32>
    %284 = arith.mulf %283, %278 : vector<48x128xf32>
    %285 = arith.addf %278, %284 : vector<48x128xf32>
    %cst_106 = arith.constant 0.797884583 : f32
    %286 = vector.broadcast %cst_106 : f32 to vector<48x128xf32>
    %287 = arith.mulf %286, %285 : vector<48x128xf32>
    %288 = math.tanh %287 : vector<48x128xf32>
    %cst_107 = arith.constant 1.000000e+00 : f32
    %289 = vector.broadcast %cst_107 : f32 to vector<48x128xf32>
    %290 = arith.addf %289, %288 : vector<48x128xf32>
    %291 = arith.mulf %280, %290 : vector<48x128xf32>
    %c1_108 = arith.constant 1 : index
    %c0_109 = arith.constant 0 : index
    %c0_110 = arith.constant 0 : index
    %292 = vector.load %arg8[%c1_108, %c0_109, %c0_110] : memref<2x128x32xbf16, #tpu.memory_space<vmem>>, vector<1x128x32xbf16>
    %293 = vector.shape_cast %292 : vector<1x128x32xbf16> to vector<128x32xbf16>
    %294 = arith.truncf %291 : vector<48x128xf32> to vector<48x128xbf16>
    %cst_111 = arith.constant dense<0.000000e+00> : vector<48x32xf32>
    %295 = tpu.matmul %294, %293, %cst_111 {dimension_numbers = #tpu.dot_dimension_numbers<[1], [0], [0], [1], [0, 0, 1, 1], [], []>} : vector<48x128xbf16>, vector<128x32xbf16>, vector<48x32xf32> -> vector<48x32xf32>
    %296 = arith.addf %249, %295 : vector<48x32xf32>
    %c20 = arith.constant 20 : index
    %c0_112 = arith.constant 0 : index
    %297 = vector.load %arg4[%c20, %c0_112] : memref<24x128xf32, #tpu.memory_space<vmem>>, vector<1x32xf32>
    %298 = vector.broadcast %297 : vector<1x32xf32> to vector<48x32xf32>
    %299 = arith.addf %296, %298 : vector<48x32xf32>
    %c2 = arith.constant 2 : index
    %c0_113 = arith.constant 0 : index
    %300 = vector.load %arg4[%c2, %c0_113] : memref<24x128xf32, #tpu.memory_space<vmem>>, vector<1x32xf32>
    %c3 = arith.constant 3 : index
    %c0_114 = arith.constant 0 : index
    %301 = vector.load %arg4[%c3, %c0_114] : memref<24x128xf32, #tpu.memory_space<vmem>>, vector<1x32xf32>
    %cst_115 = arith.constant dense<0.000000e+00> : vector<48xf32>
    %302 = vector.multi_reduction <add>, %299, %cst_115 [1] : vector<48x32xf32> to vector<48xf32>
    %303 = vector.shape_cast %302 : vector<48xf32> to vector<48x1xf32>
    %cst_116 = arith.constant 3.200000e+01 : f32
    %304 = vector.broadcast %cst_116 : f32 to vector<48x1xf32>
    %305 = arith.divf %303, %304 : vector<48x1xf32>
    %306 = vector.broadcast %305 : vector<48x1xf32> to vector<48x32xf32>
    %307 = arith.subf %299, %306 : vector<48x32xf32>
    %308 = arith.mulf %307, %307 : vector<48x32xf32>
    %cst_117 = arith.constant dense<0.000000e+00> : vector<48xf32>
    %309 = vector.multi_reduction <add>, %308, %cst_117 [1] : vector<48x32xf32> to vector<48xf32>
    %310 = vector.shape_cast %309 : vector<48xf32> to vector<48x1xf32>
    %cst_118 = arith.constant 3.200000e+01 : f32
    %311 = vector.broadcast %cst_118 : f32 to vector<48x1xf32>
    %312 = arith.divf %310, %311 : vector<48x1xf32>
    %cst_119 = arith.constant 9.99999974E-6 : f32
    %313 = vector.broadcast %cst_119 : f32 to vector<48x1xf32>
    %314 = arith.addf %312, %313 : vector<48x1xf32>
    %315 = math.rsqrt %314 : vector<48x1xf32>
    %316 = vector.broadcast %315 : vector<48x1xf32> to vector<48x32xf32>
    %317 = arith.mulf %307, %316 : vector<48x32xf32>
    %318 = vector.broadcast %300 : vector<1x32xf32> to vector<48x32xf32>
    %319 = arith.mulf %317, %318 : vector<48x32xf32>
    %320 = vector.broadcast %301 : vector<1x32xf32> to vector<48x32xf32>
    %321 = arith.addf %319, %320 : vector<48x32xf32>
    %c0_120 = arith.constant 0 : index
    %c0_121 = arith.constant 0 : index
    %322 = vector.load %arg9[%c0_120, %c0_121] : memref<32x128xbf16, #tpu.memory_space<vmem>>, vector<32x128xbf16>
    %323 = arith.truncf %321 : vector<48x32xf32> to vector<48x32xbf16>
    %cst_122 = arith.constant dense<0.000000e+00> : vector<48x128xf32>
    %324 = tpu.matmul %323, %322, %cst_122 {dimension_numbers = #tpu.dot_dimension_numbers<[1], [0], [0], [1], [0, 0, 1, 1], [], []>} : vector<48x32xbf16>, vector<32x128xbf16>, vector<48x128xf32> -> vector<48x128xf32>
    %c4 = arith.constant 4 : index
    %c0_123 = arith.constant 0 : index
    %325 = vector.load %arg4[%c4, %c0_123] : memref<24x128xf32, #tpu.memory_space<vmem>>, vector<1x128xf32>
    %326 = vector.broadcast %325 : vector<1x128xf32> to vector<48x128xf32>
    %327 = arith.addf %324, %326 : vector<48x128xf32>
    %328 = tpu.iota {dimensions = array<i32: 1>} : vector<1x128xi32>
    %c12_i32 = arith.constant 12 : i32
    %329 = vector.broadcast %c12_i32 : i32 to vector<1x128xi32>
    %330 = arith.cmpi sge, %328, %329 : vector<1x128xi32>
    %c15_i32 = arith.constant 15 : i32
    %331 = vector.broadcast %c15_i32 : i32 to vector<1x128xi32>
    %332 = arith.cmpi slt, %328, %331 : vector<1x128xi32>
    %333 = arith.andi %330, %332 : vector<1x128xi1>
    %334 = math.tanh %327 : vector<48x128xf32>
    %335 = vector.shape_cast %333 : vector<1x128xi1> to vector<1x128xi1>
    %336 = vector.broadcast %335 : vector<1x128xi1> to vector<48x128xi1>
    %337 = arith.select %336, %334, %327 : vector<48x128xi1>, vector<48x128xf32>
    %c0_124 = arith.constant 0 : index
    %c0_125 = arith.constant 0 : index
    %c0_126 = arith.constant 0 : index
    %338 = vector.load %arg10[%c0_124, %c0_125, %c0_126] : memref<1x48x128xf32, #tpu.memory_space<vmem>>, vector<1x48x128xf32>
    %339 = vector.shape_cast %338 : vector<1x48x128xf32> to vector<48x128xf32>
    %340 = vector.shape_cast %337 : vector<48x128xf32> to vector<1x48x128xf32>
    tpu.vector_store %arg10[%c0_124, %c0_125, %c0_126], %340 {strides = array<i32>} : memref<1x48x128xf32, #tpu.memory_space<vmem>>, vector<1x48x128xf32>,
    return
  }
  func.func @transform_0(%arg0: i32) -> (i32, i32, i32) {
    %c0_i32 = arith.constant 0 : i32
    %c0_i32_0 = arith.constant 0 : i32
    %c0_i32_1 = arith.constant 0 : i32
    return %arg0, %c0_i32, %c0_i32_0 : i32, i32, i32
  }
  func.func @transform_1(%arg0: i32) -> (i32, i32, i32) {
    %c0_i32 = arith.constant 0 : i32
    %c0_i32_0 = arith.constant 0 : i32
    %c0_i32_1 = arith.constant 0 : i32
    return %arg0, %c0_i32, %c0_i32_0 : i32, i32, i32
  }
  func.func @transform_2(%arg0: i32) -> (i32, i32) {
    %c0_i32 = arith.constant 0 : i32
    %c0_i32_0 = arith.constant 0 : i32
    %c0_i32_1 = arith.constant 0 : i32
    return %c0_i32, %c0_i32_0 : i32, i32
  }
  func.func @transform_3(%arg0: i32) -> (i32, i32) {
    %c0_i32 = arith.constant 0 : i32
    %c0_i32_0 = arith.constant 0 : i32
    %c0_i32_1 = arith.constant 0 : i32
    return %c0_i32, %c0_i32_0 : i32, i32
  }
  func.func @transform_4(%arg0: i32) -> (i32, i32, i32) {
    %c0_i32 = arith.constant 0 : i32
    %c0_i32_0 = arith.constant 0 : i32
    %c0_i32_1 = arith.constant 0 : i32
    %c0_i32_2 = arith.constant 0 : i32
    return %c0_i32, %c0_i32_0, %c0_i32_1 : i32, i32, i32
  }
  func.func @transform_5(%arg0: i32) -> (i32, i32, i32) {
    %c0_i32 = arith.constant 0 : i32
    %c0_i32_0 = arith.constant 0 : i32
    %c0_i32_1 = arith.constant 0 : i32
    %c0_i32_2 = arith.constant 0 : i32
    return %c0_i32, %c0_i32_0, %c0_i32_1 : i32, i32, i32
  }
  func.func @transform_6(%arg0: i32) -> (i32, i32, i32) {
    %c0_i32 = arith.constant 0 : i32
    %c0_i32_0 = arith.constant 0 : i32
    %c0_i32_1 = arith.constant 0 : i32
    %c0_i32_2 = arith.constant 0 : i32
    return %c0_i32, %c0_i32_0, %c0_i32_1 : i32, i32, i32
  }
  func.func @transform_7(%arg0: i32) -> (i32, i32, i32) {
    %c0_i32 = arith.constant 0 : i32
    %c0_i32_0 = arith.constant 0 : i32
    %c0_i32_1 = arith.constant 0 : i32
    %c0_i32_2 = arith.constant 0 : i32
    return %c0_i32, %c0_i32_0, %c0_i32_1 : i32, i32, i32
  }
  func.func @transform_8(%arg0: i32) -> (i32, i32) {
    %c0_i32 = arith.constant 0 : i32
    %c0_i32_0 = arith.constant 0 : i32
    %c0_i32_1 = arith.constant 0 : i32
    return %c0_i32, %c0_i32_0 : i32, i32
  }
  func.func @transform_9(%arg0: i32) -> (i32, i32, i32) {
    %c0_i32 = arith.constant 0 : i32
    %c0_i32_0 = arith.constant 0 : i32
    %c0_i32_1 = arith.constant 0 : i32
    return %arg0, %c0_i32, %c0_i32_0 : i32, i32, i32
  }
}

</mosaic_0001>

<llo_original>
// kernel: dtrans_forward.1
$region0: #{dtrans_forward.1}
  #allocation0 [shape = 'u32[]', space=smem, size = 0x4, offset = 0x4, fixed_abs, tag = 'smem constant byte address 0x4 - core index']
  #allocation1 [shape = 'u32[144,128]{1,0:T(1,128)}', space=vmem, size = 0x12000, scoped, tag = 'internal scratch']
  %s0 = inlined_call_operand.vmem [shape: f32[1,48,128], index: 0, kind: input, shape index: {}]
  %s1 = inlined_call_operand.vmem [shape: f32[1,48,48], index: 1, kind: input, shape index: {}]
  %s2 = inlined_call_operand.vmem [shape: bf16[128,64], index: 2, kind: input, shape index: {}]
  %s3 = inlined_call_operand.vmem [shape: f32[24,128], index: 3, kind: input, shape index: {}]
  %s4 = inlined_call_operand.vmem [shape: bf16[2,32,96], index: 4, kind: input, shape index: {}]
  %s5 = inlined_call_operand.vmem [shape: bf16[2,32,32], index: 5, kind: input, shape index: {}]
  %s6 = inlined_call_operand.vmem [shape: bf16[2,32,128], index: 6, kind: input, shape index: {}]
  %s7 = inlined_call_operand.vmem [shape: bf16[2,128,32], index: 7, kind: input, shape index: {}]
  %s8 = inlined_call_operand.vmem [shape: bf16[32,128], index: 8, kind: input, shape index: {}]
  %s9 = inlined_call_operand.vmem [shape: f32[1,48,128], index: 9, kind: output, shape index: {}]
  %s10 = sld [smem:[#allocation0]]
  $region46: #{dtrans_forward.1} parent=0
    _
  %s12 = ssub.s32 1, %s10
  %s13 = scalar_select 0, %s12, %s10
  // Predicated region
  $region2: #{dtrans_forward.1} parent=0 // pred_check
    _
  $region3: #{dtrans_forward.1} parent=0 // pred_check_branch
    %15 = sbr.rel (0) target = $region5
  $region4: #{dtrans_forward.1} parent=0 // pred_region
    _
  $region5: #{dtrans_forward.1} parent=0 // pred_fallthru
    _
  // Predicated region
  $region6: #{dtrans_forward.1} parent=0 // pred_check
    _
  $region7: #{dtrans_forward.1} parent=0 // pred_check_branch
    %17 = sbr.rel (0) target = $region9
  $region8: #{dtrans_forward.1} parent=0 // pred_region
    _
  $region9: #{dtrans_forward.1} parent=0 // pred_fallthru
    _
  // Predicated region
  $region10: #{dtrans_forward.1} parent=0 // pred_check
    _
  $region11: #{dtrans_forward.1} parent=0 // pred_check_branch
    %19 = sbr.rel (0) target = $region13
  $region12: #{dtrans_forward.1} parent=0 // pred_region
    _
  $region13: #{dtrans_forward.1} parent=0 // pred_fallthru
    _
  // Predicated region
  $region14: #{dtrans_forward.1} parent=0 // pred_check
    _
  $region15: #{dtrans_forward.1} parent=0 // pred_check_branch
    %21 = sbr.rel (0) target = $region17
  $region16: #{dtrans_forward.1} parent=0 // pred_region
    _
  $region17: #{dtrans_forward.1} parent=0 // pred_fallthru
    _
  // Predicated region
  $region18: #{dtrans_forward.1} parent=0 // pred_check
    _
  $region19: #{dtrans_forward.1} parent=0 // pred_check_branch
    %23 = sbr.rel (0) target = $region21
  $region20: #{dtrans_forward.1} parent=0 // pred_region
    _
  $region21: #{dtrans_forward.1} parent=0 // pred_fallthru
    _
  // Predicated region
  $region22: #{dtrans_forward.1} parent=0 // pred_check
    _
  $region23: #{dtrans_forward.1} parent=0 // pred_check_branch
    %25 = sbr.rel (0) target = $region25
  $region24: #{dtrans_forward.1} parent=0 // pred_region
    _
  $region25: #{dtrans_forward.1} parent=0 // pred_fallthru
    _
  // Predicated region
  $region26: #{dtrans_forward.1} parent=0 // pred_check
    _
  $region27: #{dtrans_forward.1} parent=0 // pred_check_branch
    %27 = sbr.rel (0) target = $region29
  $region28: #{dtrans_forward.1} parent=0 // pred_region
    _
  $region29: #{dtrans_forward.1} parent=0 // pred_fallthru
    _
  // Predicated region
  $region30: #{dtrans_forward.1} parent=0 // pred_check
    _
  $region31: #{dtrans_forward.1} parent=0 // pred_check_branch
    %29 = sbr.rel (0) target = $region33
  $region32: #{dtrans_forward.1} parent=0 // pred_region
    _
  $region33: #{dtrans_forward.1} parent=0 // pred_fallthru
    _
  // Predicated region
  $region34: #{dtrans_forward.1} parent=0 // pred_check
    _
  $region35: #{dtrans_forward.1} parent=0 // pred_check_branch
    %31 = sbr.rel (0) target = $region37
  $region36: #{dtrans_forward.1} parent=0 // pred_region
    _
  $region37: #{dtrans_forward.1} parent=0 // pred_fallthru
    _
  %v33 = vld [vmem:[%s0] sm:$0xff]
  %v34 = vld [vmem:[%s0 + $0x8] sm:$0xff]
  %v35 = vld [vmem:[%s0 + $0x10] sm:$0xff]
  %v36 = vld [vmem:[%s0 + $0x18] sm:$0xff]
  %v37 = vld [vmem:[%s0 + $0x20] sm:$0xff]
  %v38 = vld [vmem:[%s0 + $0x28] sm:$0xff]
  %v39 = vld [vmem:[%s2] sm:$0xf]
  %v40 = vld [vmem:[%s2 + $0x4] sm:$0xf]
  %v41 = vld [vmem:[%s2 + $0x8] sm:$0xf]
  %v42 = vld [vmem:[%s2 + $0xc] sm:$0xf]
  %v43 = vld [vmem:[%s2 + $0x10] sm:$0xf]
  %v44 = vld [vmem:[%s2 + $0x14] sm:$0xf]
  %v45 = vld [vmem:[%s2 + $0x18] sm:$0xf]
  %v46 = vld [vmem:[%s2 + $0x1c] sm:$0xf]
  %v47 = vld [vmem:[%s2 + $0x20] sm:$0xf]
  %v48 = vld [vmem:[%s2 + $0x24] sm:$0xf]
  %v49 = vld [vmem:[%s2 + $0x28] sm:$0xf]
  %v50 = vld [vmem:[%s2 + $0x2c] sm:$0xf]
  %v51 = vld [vmem:[%s2 + $0x30] sm:$0xf]
  %v52 = vld [vmem:[%s2 + $0x34] sm:$0xf]
  %v53 = vld [vmem:[%s2 + $0x38] sm:$0xf]
  %v54 = vld [vmem:[%s2 + $0x3c] sm:$0xf]
  %v55 = vpack.c.bf16 %v34, %v33
  %v56 = vpack.c.bf16 %v36, %v35
  %v57 = vpack.c.bf16 %v38, %v37
  %v74 = vunpack.c.l.b16 %v39
  %v75 = vunpack.c.l.b16 %v40
  %v76 = vunpack.c.l.b16 %v41
  %v77 = vunpack.c.l.b16 %v42
  %v78 = vunpack.c.l.b16 %v43
  %v79 = vunpack.c.l.b16 %v44
  %v80 = vunpack.c.l.b16 %v45
  %v81 = vunpack.c.l.b16 %v46
  %v82 = vunpack.c.l.b16 %v47
  %v83 = vunpack.c.l.b16 %v48
  %v84 = vunpack.c.l.b16 %v49
  %v85 = vunpack.c.l.b16 %v50
  %v86 = vunpack.c.l.b16 %v51
  %v87 = vunpack.c.l.b16 %v52
  %v88 = vunpack.c.l.b16 %v53
  %v89 = vunpack.c.l.b16 %v54
  %v90 = vpack.c.b16 %v75, %v74
  %v91 = vpack.c.b16 %v77, %v76
  %v92 = vpack.c.b16 %v79, %v78
  %v93 = vpack.c.b16 %v81, %v80
  %v94 = vpack.c.b16 %v83, %v82
  %v95 = vpack.c.b16 %v85, %v84
  %v96 = vpack.c.b16 %v87, %v86
  %v97 = vpack.c.b16 %v89, %v88
  %106 = vmatprep.subr.bf16.mxu0 0
  %107 = vmatpush1.bf16.msra.mxu0 %v90
  %108 = vmatprep.subr.bf16.mxu0 0
  %109 = vmatpush1.bf16.msra.mxu0 %v91
  %110 = vmatprep.subr.bf16.mxu0 0
  %111 = vmatpush1.bf16.msra.mxu0 %v92
  %112 = vmatprep.subr.bf16.mxu0 0
  %113 = vmatpush1.bf16.msra.mxu0 %v93
  %114 = vmatprep.subr.bf16.mxu0 0
  %115 = vmatpush1.bf16.msra.mxu0 %v94
  %116 = vmatprep.subr.bf16.mxu0 0
  %117 = vmatpush1.bf16.msra.mxu0 %v95
  %118 = vmatprep.subr.bf16.mxu0 0
  %119 = vmatpush1.bf16.msra.mxu0 %v96
  %120 = vmatprep.subr.bf16.mxu0 0
  %121 = vmatpush1.bf16.msra.mxu0 %v97
  %122 = vmatprep.subr.bf16.mxu0 0
  %123 = vmatpush1.bf16.msra.mxu0 0
  %124 = vmatprep.subr.bf16.mxu0 0
  %125 = vmatpush1.bf16.msra.mxu0 0
  %126 = vmatprep.subr.bf16.mxu0 0
  %127 = vmatpush1.bf16.msra.mxu0 0
  %128 = vmatprep.subr.bf16.mxu0 0
  %129 = vmatpush1.bf16.msra.mxu0 0
  %130 = vmatprep.subr.bf16.mxu0 0
  %131 = vmatpush1.bf16.msra.mxu0 0
  %132 = vmatprep.subr.bf16.mxu0 0
  %133 = vmatpush1.bf16.msra.mxu0 0
  %134 = vmatprep.subr.bf16.mxu0 0
  %135 = vmatpush1.bf16.msra.mxu0 0
  %136 = vmatprep.subr.bf16.mxu0 0
  %137 = vmatpush1.bf16.msra.mxu0 0
  %138 = vmatprep.mubr.bf16.mxu0 0
  %139 = vmatmul.mubr.bf16.gmra.mrb[0].mxu0 %v55
  %v140 = vpop.f32.mrb[0].mxu0
  %v141 = vadd.f32 0.0, %v140
  %v142 = vpop.f32.mrb[0].mxu0
  %v143 = vpop.f32.mrb[0].mxu0
  %v144 = vadd.f32 0.0, %v143
  %v145 = vpop.f32.mrb[0].mxu0
  %146 = vmatprep.mubr.bf16.mxu0 0
  %147 = vmatmul.mubr.bf16.gmra.mrb[0].mxu0 %v56
  %v148 = vpop.f32.mrb[0].mxu0
  %v149 = vadd.f32 0.0, %v148
  %v150 = vpop.f32.mrb[0].mxu0
  %v151 = vpop.f32.mrb[0].mxu0
  %v152 = vadd.f32 0.0, %v151
  %v153 = vpop.f32.mrb[0].mxu0
  %154 = vmatprep.mubr.bf16.mxu0 0
  %155 = vmatmul.mubr.bf16.gmra.mrb[0].mxu0 %v57
  %v156 = vpop.f32.mrb[0].mxu0
  %v157 = vadd.f32 0.0, %v156
  %v158 = vpop.f32.mrb[0].mxu0
  %v159 = vpop.f32.mrb[0].mxu0
  %v160 = vadd.f32 0.0, %v159
  %v161 = vpop.f32.mrb[0].mxu0
  %162 = vdwg.mxu0
  %v163 = vld [vmem:[%s3] sm:$0x1]
  %v164 = vld [vmem:[%s3 + $0x1] sm:$0x1]
  %vm165 = vcmask 261120
  %v166 = vsel %vm165, %v141, 0.0
  %167 = vadd.xlane.f32.xlu0 %v166
  %v168 = vpop.xlane.xlu0 %167
  %v169 = vsel %vm165, %v144, 0.0
  %170 = vadd.xlane.f32.xlu0 %v169
  %v171 = vpop.xlane.xlu0 %170
  %v172 = vsel %vm165, %v149, 0.0
  %173 = vadd.xlane.f32.xlu0 %v172
  %v174 = vpop.xlane.xlu0 %173
  %v175 = vsel %vm165, %v152, 0.0
  %176 = vadd.xlane.f32.xlu0 %v175
  %v177 = vpop.xlane.xlu0 %176
  %v178 = vsel %vm165, %v157, 0.0
  %179 = vadd.xlane.f32.xlu0 %v178
  %v180 = vpop.xlane.xlu0 %179
  %v181 = vsel %vm165, %v160, 0.0
  %182 = vadd.xlane.f32.xlu0 %v181
  %v183 = vpop.xlane.xlu0 %182
  %v184 = vrcp.pop 32.0
  %v185 = vmul.f32 %v168, %v184
  %v186 = vmul.f32 %v171, %v184
  %v187 = vmul.f32 %v174, %v184
  %v188 = vmul.f32 %v177, %v184
  %v189 = vmul.f32 %v180, %v184
  %v190 = vmul.f32 %v183, %v184
  %v191 = vsub.f32 %v141, %v185
  %v192 = vsub.f32 %v144, %v186
  %v193 = vsub.f32 %v149, %v187
  %v194 = vsub.f32 %v152, %v188
  %v195 = vsub.f32 %v157, %v189
  %v196 = vsub.f32 %v160, %v190
  %v197 = vmul.f32 %v191, %v191
  %v198 = vmul.f32 %v192, %v192
  %v199 = vmul.f32 %v193, %v193
  %v200 = vmul.f32 %v194, %v194
  %v201 = vmul.f32 %v195, %v195
  %v202 = vmul.f32 %v196, %v196
  %v203 = vsel %vm165, %v197, 0.0
  %204 = vadd.xlane.f32.xlu0 %v203
  %v205 = vpop.xlane.xlu0 %204
  %v206 = vsel %vm165, %v198, 0.0
  %207 = vadd.xlane.f32.xlu0 %v206
  %v208 = vpop.xlane.xlu0 %207
  %v209 = vsel %vm165, %v199, 0.0
  %210 = vadd.xlane.f32.xlu0 %v209
  %v211 = vpop.xlane.xlu0 %210
  %v212 = vsel %vm165, %v200, 0.0
  %213 = vadd.xlane.f32.xlu0 %v212
  %v214 = vpop.xlane.xlu0 %213
  %v215 = vsel %vm165, %v201, 0.0
  %216 = vadd.xlane.f32.xlu0 %v215
  %v217 = vpop.xlane.xlu0 %216
  %v218 = vsel %vm165, %v202, 0.0
  %219 = vadd.xlane.f32.xlu0 %v218
  %v220 = vpop.xlane.xlu0 %219
  %v221 = vmul.f32 %v205, %v184
  %v222 = vmul.f32 %v208, %v184
  %v223 = vmul.f32 %v211, %v184
  %v224 = vmul.f32 %v214, %v184
  %v225 = vmul.f32 %v217, %v184
  %v226 = vmul.f32 %v220, %v184
  %v227 = vadd.f32 %v221, 1e-05
  %v228 = vadd.f32 %v222, 1e-05
  %v229 = vadd.f32 %v223, 1e-05
  %v230 = vadd.f32 %v224, 1e-05
  %v231 = vadd.f32 %v225, 1e-05
  %v232 = vadd.f32 %v226, 1e-05
  %v233 = vrsqrt.pop %v227
  %v234 = vrsqrt.pop %v228
  %v235 = vrsqrt.pop %v229
  %v236 = vrsqrt.pop %v230
  %v237 = vrsqrt.pop %v231
  %v238 = vrsqrt.pop %v232
  %v239 = vmul.f32 %v191, %v233
  %v240 = vmul.f32 %v192, %v234
  %v241 = vmul.f32 %v193, %v235
  %v242 = vmul.f32 %v194, %v236
  %v243 = vmul.f32 %v195, %v237
  %v244 = vmul.f32 %v196, %v238
  %v245 = vlaneseq
  %v246 = vshrl.u32 %v245, 7
  %v247 = vsub.s32 0, %v246
  %v248 = vrot.slane %v163, %v247
  %v249 = vmul.f32 %v239, %v248
  %v250 = vmul.f32 %v240, %v248
  %v251 = vmul.f32 %v241, %v248
  %v252 = vmul.f32 %v242, %v248
  %v253 = vmul.f32 %v243, %v248
  %v254 = vmul.f32 %v244, %v248
  %v255 = vlaneseq
  %v256 = vshrl.u32 %v255, 7
  %v257 = vsub.s32 0, %v256
  %v258 = vrot.slane %v164, %v257
  %v259 = vadd.f32 %v249, %v258
  %v260 = vadd.f32 %v250, %v258
  %v261 = vadd.f32 %v251, %v258
  %v262 = vadd.f32 %v252, %v258
  %v263 = vadd.f32 %v253, %v258
  %v264 = vadd.f32 %v254, %v258
  %271 = vrot.lane.b32.xlu0 %v141, 96
  %v272 = vpop.permute.xlu0 %271
  %273 = vrot.lane.b32.xlu0 %v144, 96
  %v274 = vpop.permute.xlu0 %273
  %275 = vrot.lane.b32.xlu0 %v149, 96
  %v276 = vpop.permute.xlu0 %275
  %277 = vrot.lane.b32.xlu0 %v152, 96
  %v278 = vpop.permute.xlu0 %277
  %279 = vrot.lane.b32.xlu0 %v157, 96
  %v280 = vpop.permute.xlu0 %279
  %281 = vrot.lane.b32.xlu0 %v160, 96
  %v282 = vpop.permute.xlu0 %281
  %v289 = vadd.f32 %v259, %v272
  %v290 = vadd.f32 %v260, %v274
  %v291 = vadd.f32 %v261, %v276
  %v292 = vadd.f32 %v262, %v278
  %v293 = vadd.f32 %v263, %v280
  %v294 = vadd.f32 %v264, %v282
  %v295 = vld [vmem:[%s1] sm:$0xff]
  %v296 = vld [vmem:[%s1 + $0x8] sm:$0xff]
  %v297 = vld [vmem:[%s1 + $0x10] sm:$0xff]
  %v298 = vld [vmem:[%s1 + $0x18] sm:$0xff]
  %v299 = vld [vmem:[%s1 + $0x20] sm:$0xff]
  %v300 = vld [vmem:[%s1 + $0x28] sm:$0xff]
  %v301 = vld [vmem:[%s3 + $0x5] sm:$0x1]
  %v302 = vld [vmem:[%s3 + $0x6] sm:$0x1]
  %v303 = vsel %vm165, %v289, 0.0
  %304 = vadd.xlane.f32.xlu0 %v303
  %v305 = vpop.xlane.xlu0 %304
  %v306 = vsel %vm165, %v290, 0.0
  %307 = vadd.xlane.f32.xlu0 %v306
  %v308 = vpop.xlane.xlu0 %307
  %v309 = vsel %vm165, %v291, 0.0
  %310 = vadd.xlane.f32.xlu0 %v309
  %v311 = vpop.xlane.xlu0 %310
  %v312 = vsel %vm165, %v292, 0.0
  %313 = vadd.xlane.f32.xlu0 %v312
  %v314 = vpop.xlane.xlu0 %313
  %v315 = vsel %vm165, %v293, 0.0
  %316 = vadd.xlane.f32.xlu0 %v315
  %v317 = vpop.xlane.xlu0 %316
  %v318 = vsel %vm165, %v294, 0.0
  %319 = vadd.xlane.f32.xlu0 %v318
  %v320 = vpop.xlane.xlu0 %319
  %v321 = vmul.f32 %v305, %v184
  %v322 = vmul.f32 %v308, %v184
  %v323 = vmul.f32 %v311, %v184
  %v324 = vmul.f32 %v314, %v184
  %v325 = vmul.f32 %v317, %v184
  %v326 = vmul.f32 %v320, %v184
  %v327 = vsub.f32 %v289, %v321
  %v328 = vsub.f32 %v290, %v322
  %v329 = vsub.f32 %v291, %v323
  %v330 = vsub.f32 %v292, %v324
  %v331 = vsub.f32 %v293, %v325
  %v332 = vsub.f32 %v294, %v326
  %v333 = vmul.f32 %v327, %v327
  %v334 = vmul.f32 %v328, %v328
  %v335 = vmul.f32 %v329, %v329
  %v336 = vmul.f32 %v330, %v330
  %v337 = vmul.f32 %v331, %v331
  %v338 = vmul.f32 %v332, %v332
  %v339 = vsel %vm165, %v333, 0.0
  %340 = vadd.xlane.f32.xlu0 %v339
  %v341 = vpop.xlane.xlu0 %340
  %v342 = vsel %vm165, %v334, 0.0
  %343 = vadd.xlane.f32.xlu0 %v342
  %v344 = vpop.xlane.xlu0 %343
  %v345 = vsel %vm165, %v335, 0.0
  %346 = vadd.xlane.f32.xlu0 %v345
  %v347 = vpop.xlane.xlu0 %346
  %v348 = vsel %vm165, %v336, 0.0
  %349 = vadd.xlane.f32.xlu0 %v348
  %v350 = vpop.xlane.xlu0 %349
  %v351 = vsel %vm165, %v337, 0.0
  %352 = vadd.xlane.f32.xlu0 %v351
  %v353 = vpop.xlane.xlu0 %352
  %v354 = vsel %vm165, %v338, 0.0
  %355 = vadd.xlane.f32.xlu0 %v354
  %v356 = vpop.xlane.xlu0 %355
  %v357 = vmul.f32 %v341, %v184
  %v358 = vmul.f32 %v344, %v184
  %v359 = vmul.f32 %v347, %v184
  %v360 = vmul.f32 %v350, %v184
  %v361 = vmul.f32 %v353, %v184
  %v362 = vmul.f32 %v356, %v184
  %v363 = vadd.f32 %v357, 1e-05
  %v364 = vadd.f32 %v358, 1e-05
  %v365 = vadd.f32 %v359, 1e-05
  %v366 = vadd.f32 %v360, 1e-05
  %v367 = vadd.f32 %v361, 1e-05
  %v368 = vadd.f32 %v362, 1e-05
  %v369 = vrsqrt.pop %v363
  %v370 = vrsqrt.pop %v364
  %v371 = vrsqrt.pop %v365
  %v372 = vrsqrt.pop %v366
  %v373 = vrsqrt.pop %v367
  %v374 = vrsqrt.pop %v368
  %v375 = vmul.f32 %v327, %v369
  %v376 = vmul.f32 %v328, %v370
  %v377 = vmul.f32 %v329, %v371
  %v378 = vmul.f32 %v330, %v372
  %v379 = vmul.f32 %v331, %v373
  %v380 = vmul.f32 %v332, %v374
  %v381 = vlaneseq
  %v382 = vshrl.u32 %v381, 7
  %v383 = vsub.s32 0, %v382
  %v384 = vrot.slane %v301, %v383
  %v385 = vmul.f32 %v375, %v384
  %v386 = vmul.f32 %v376, %v384
  %v387 = vmul.f32 %v377, %v384
  %v388 = vmul.f32 %v378, %v384
  %v389 = vmul.f32 %v379, %v384
  %v390 = vmul.f32 %v380, %v384
  %v391 = vlaneseq
  %v392 = vshrl.u32 %v391, 7
  %v393 = vsub.s32 0, %v392
  %v394 = vrot.slane %v302, %v393
  %v395 = vadd.f32 %v385, %v394
  %v396 = vadd.f32 %v386, %v394
  %v397 = vadd.f32 %v387, %v394
  %v398 = vadd.f32 %v388, %v394
  %v399 = vadd.f32 %v389, %v394
  %v400 = vadd.f32 %v390, %v394
  %v401 = vld [vmem:[%s4] sm:$0xf]
  %v402 = vld [vmem:[%s4 + $0x4] sm:$0xf]
  %v403 = vld [vmem:[%s4 + $0x8] sm:$0xf]
  %v404 = vld [vmem:[%s4 + $0xc] sm:$0xf]
  %v405 = vpack.c.bf16 %v396, %v395
  %v406 = vpack.c.bf16 %v398, %v397
  %v407 = vpack.c.bf16 %v400, %v399
  %v408 = vld [vmem:[%s3 + $0x7] sm:$0x1]
  %v409 = vlaneseq
  %v410 = vshrl.u32 %v409, 7
  %v411 = vsub.s32 0, %v410
  %v412 = vrot.slane %v408, %v411
  %v417 = vunpack.c.l.b16 %v401
  %v418 = vunpack.c.l.b16 %v402
  %v419 = vunpack.c.l.b16 %v403
  %v420 = vunpack.c.l.b16 %v404
  %v421 = vpack.c.b16 %v418, %v417
  %v422 = vpack.c.b16 %v420, %v419
  %v426 = vsel %vm165, %v405, 0
  %v429 = vsel %vm165, %v406, 0
  %v432 = vsel %vm165, %v407, 0
  %434 = vmatprep.subr.bf16.mxu0 0
  %435 = vmatpush1.bf16.msra.mxu0 %v421
  %436 = vmatprep.subr.bf16.mxu0 0
  %437 = vmatpush1.bf16.msra.mxu0 %v422
  %438 = vmatprep.subr.bf16.mxu0 0
  %439 = vmatpush1.bf16.msra.mxu0 0
  %440 = vmatprep.subr.bf16.mxu0 0
  %441 = vmatpush1.bf16.msra.mxu0 0
  %442 = vmatprep.subr.bf16.mxu0 0
  %443 = vmatpush1.bf16.msra.mxu0 0
  %444 = vmatprep.subr.bf16.mxu0 0
  %445 = vmatpush1.bf16.msra.mxu0 0
  %446 = vmatprep.subr.bf16.mxu0 0
  %447 = vmatpush1.bf16.msra.mxu0 0
  %448 = vmatprep.subr.bf16.mxu0 0
  %449 = vmatpush1.bf16.msra.mxu0 0
  %450 = vmatprep.subr.bf16.mxu0 0
  %451 = vmatpush1.bf16.msra.mxu0 0
  %452 = vmatprep.subr.bf16.mxu0 0
  %453 = vmatpush1.bf16.msra.mxu0 0
  %454 = vmatprep.subr.bf16.mxu0 0
  %455 = vmatpush1.bf16.msra.mxu0 0
  %456 = vmatprep.subr.bf16.mxu0 0
  %457 = vmatpush1.bf16.msra.mxu0 0
  %458 = vmatprep.subr.bf16.mxu0 0
  %459 = vmatpush1.bf16.msra.mxu0 0
  %460 = vmatprep.subr.bf16.mxu0 0
  %461 = vmatpush1.bf16.msra.mxu0 0
  %462 = vmatprep.subr.bf16.mxu0 0
  %463 = vmatpush1.bf16.msra.mxu0 0
  %464 = vmatprep.subr.bf16.mxu0 0
  %465 = vmatpush1.bf16.msra.mxu0 0
  %466 = vmatprep.mubr.bf16.mxu0 0
  %467 = vmatmul.mubr.bf16.gmra.mrb[0].mxu0 %v426
  %v468 = vpop.f32.mrb[0].mxu0
  %v469 = vadd.f32 %v412, %v468
  %v470 = vpop.f32.mrb[0].mxu0
  %v471 = vpop.f32.mrb[0].mxu0
  %v472 = vadd.f32 %v412, %v471
  %v473 = vpop.f32.mrb[0].mxu0
  %474 = vmatprep.mubr.bf16.mxu0 0
  %475 = vmatmul.mubr.bf16.gmra.mrb[0].mxu0 %v429
  %v476 = vpop.f32.mrb[0].mxu0
  %v477 = vadd.f32 %v412, %v476
  %v478 = vpop.f32.mrb[0].mxu0
  %v479 = vpop.f32.mrb[0].mxu0
  %v480 = vadd.f32 %v412, %v479
  %v481 = vpop.f32.mrb[0].mxu0
  %482 = vmatprep.mubr.bf16.mxu0 0
  %483 = vmatmul.mubr.bf16.gmra.mrb[0].mxu0 %v432
  %v484 = vpop.f32.mrb[0].mxu0
  %v485 = vadd.f32 %v412, %v484
  %v486 = vpop.f32.mrb[0].mxu0
  %v487 = vpop.f32.mrb[0].mxu0
  %v488 = vadd.f32 %v412, %v487
  %v489 = vpop.f32.mrb[0].mxu0
  %490 = vdwg.mxu0
  %v491 = vld [vmem:[%s5] sm:$0xf]
  %v492 = vld [vmem:[%s5 + $0x4] sm:$0xf]
  %v493 = vld [vmem:[%s5 + $0x8] sm:$0xf]
  %v494 = vld [vmem:[%s5 + $0xc] sm:$0xf]
  %v495 = vpack.c.bf16 %v472, %v469
  %v496 = vpack.c.bf16 %v480, %v477
  %v497 = vpack.c.bf16 %v488, %v485
  %501 = vrot.lane.b32.xlu0 %v495, 96
  %v502 = vpop.permute.xlu0 %501
  %503 = vrot.lane.b32.xlu0 %v496, 96
  %v504 = vpop.permute.xlu0 %503
  %505 = vrot.lane.b32.xlu0 %v497, 96
  %v506 = vpop.permute.xlu0 %505
  %vm507 = vcmask 130048
  %v509 = vsel %vm507, %v495, 0
  %v512 = vsel %vm507, %v496, 0
  %v515 = vsel %vm507, %v497, 0
  %v518 = vsel %vm507, %v502, 0
  %v521 = vsel %vm507, %v504, 0
  %v524 = vsel %vm507, %v506, 0
  %526 = vmatprep.subr.bf16.mxu0 0
  %527 = vmatpush1.bf16.xpose.msra.mxu0 %v518
  %528 = vmatprep.subr.bf16.mxu0 0
  %529 = vmatpush1.bf16.xpose.msra.mxu0 %v521
  %530 = vmatprep.subr.bf16.mxu0 0
  %531 = vmatpush1.bf16.xpose.msra.mxu0 %v524
  %532 = vmatprep.subr.bf16.mxu0 0
  %533 = vmatpush1.bf16.xpose.msra.mxu0 0
  %534 = vmatprep.subr.bf16.mxu0 0
  %535 = vmatpush1.bf16.xpose.msra.mxu0 0
  %536 = vmatprep.subr.bf16.mxu0 0
  %537 = vmatpush1.bf16.xpose.msra.mxu0 0
  %538 = vmatprep.subr.bf16.mxu0 0
  %539 = vmatpush1.bf16.xpose.msra.mxu0 0
  %540 = vmatprep.subr.bf16.mxu0 0
  %541 = vmatpush1.bf16.xpose.msra.mxu0 0
  %542 = vmatprep.subr.bf16.mxu0 0
  %543 = vmatpush1.bf16.xpose.msra.mxu0 0
  %544 = vmatprep.subr.bf16.mxu0 0
  %545 = vmatpush1.bf16.xpose.msra.mxu0 0
  %546 = vmatprep.subr.bf16.mxu0 0
  %547 = vmatpush1.bf16.xpose.msra.mxu0 0
  %548 = vmatprep.subr.bf16.mxu0 0
  %549 = vmatpush1.bf16.xpose.msra.mxu0 0
  %550 = vmatprep.subr.bf16.mxu0 0
  %551 = vmatpush1.bf16.xpose.msra.mxu0 0
  %552 = vmatprep.subr.bf16.mxu0 0
  %553 = vmatpush1.bf16.xpose.msra.mxu0 0
  %554 = vmatprep.subr.bf16.mxu0 0
  %555 = vmatpush1.bf16.xpose.msra.mxu0 0
  %556 = vmatprep.subr.bf16.mxu0 0
  %557 = vmatpush1.bf16.xpose.msra.mxu0 0
  %558 = vmatprep.mubr.bf16.mxu0 0
  %559 = vmatmul.mubr.bf16.gmra.mrb[0].mxu0 %v509
  %v560 = vpop.f32.mrb[0].mxu0
  %v561 = vadd.f32 0.0, %v560
  %v562 = vpop.f32.mrb[0].mxu0
  %v563 = vpop.f32.mrb[0].mxu0
  %v564 = vadd.f32 0.0, %v563
  %v565 = vpop.f32.mrb[0].mxu0
  %566 = vmatprep.mubr.bf16.mxu0 0
  %567 = vmatmul.mubr.bf16.gmra.mrb[0].mxu0 %v512
  %v568 = vpop.f32.mrb[0].mxu0
  %v569 = vadd.f32 0.0, %v568
  %v570 = vpop.f32.mrb[0].mxu0
  %v571 = vpop.f32.mrb[0].mxu0
  %v572 = vadd.f32 0.0, %v571
  %v573 = vpop.f32.mrb[0].mxu0
  %574 = vmatprep.mubr.bf16.mxu0 0
  %575 = vmatmul.mubr.bf16.gmra.mrb[0].mxu0 %v515
  %v576 = vpop.f32.mrb[0].mxu0
  %v577 = vadd.f32 0.0, %v576
  %v578 = vpop.f32.mrb[0].mxu0
  %v579 = vpop.f32.mrb[0].mxu0
  %v580 = vadd.f32 0.0, %v579
  %v581 = vpop.f32.mrb[0].mxu0
  %582 = vdwg.mxu0
  %v583 = vmul.f32 %v561, 0.25
  %v584 = vmul.f32 %v564, 0.25
  %v585 = vmul.f32 %v569, 0.25
  %v586 = vmul.f32 %v572, 0.25
  %v587 = vmul.f32 %v577, 0.25
  %v588 = vmul.f32 %v580, 0.25
  %v589 = vadd.f32 %v583, %v295
  %v590 = vadd.f32 %v584, %v296
  %v591 = vadd.f32 %v585, %v297
  %v592 = vadd.f32 %v586, %v298
  %v593 = vadd.f32 %v587, %v299
  %v594 = vadd.f32 %v588, %v300
  %vm595 = vcmask 392192
  %v596 = vsel %vm595, %v589, -inf
  %597 = vmax.xlane.f32.xlu0 %v596
  %v598 = vpop.xlane.xlu0 %597
  %v599 = vsel %vm595, %v590, -inf
  %600 = vmax.xlane.f32.xlu0 %v599
  %v601 = vpop.xlane.xlu0 %600
  %v602 = vsel %vm595, %v591, -inf
  %603 = vmax.xlane.f32.xlu0 %v602
  %v604 = vpop.xlane.xlu0 %603
  %v605 = vsel %vm595, %v592, -inf
  %606 = vmax.xlane.f32.xlu0 %v605
  %v607 = vpop.xlane.xlu0 %606
  %v608 = vsel %vm595, %v593, -inf
  %609 = vmax.xlane.f32.xlu0 %v608
  %v610 = vpop.xlane.xlu0 %609
  %v611 = vsel %vm595, %v594, -inf
  %612 = vmax.xlane.f32.xlu0 %v611
  %v613 = vpop.xlane.xlu0 %612
  %v614 = vsub.f32 %v589, %v598
  %v615 = vsub.f32 %v590, %v601
  %v616 = vsub.f32 %v591, %v604
  %v617 = vsub.f32 %v592, %v607
  %v618 = vsub.f32 %v593, %v610
  %v619 = vsub.f32 %v594, %v613
  %v620 = vmul.f32 %v614, 1.442695
  %v621 = vpow.pop %v620
  %v622 = vmul.f32 %v615, 1.442695
  %v623 = vpow.pop %v622
  %v624 = vmul.f32 %v616, 1.442695
  %v625 = vpow.pop %v624
  %v626 = vmul.f32 %v617, 1.442695
  %v627 = vpow.pop %v626
  %v628 = vmul.f32 %v618, 1.442695
  %v629 = vpow.pop %v628
  %v630 = vmul.f32 %v619, 1.442695
  %v631 = vpow.pop %v630
  %v632 = vsel %vm595, %v621, 0.0
  %633 = vadd.xlane.f32.xlu0 %v632
  %v634 = vpop.xlane.xlu0 %633
  %v635 = vsel %vm595, %v623, 0.0
  %636 = vadd.xlane.f32.xlu0 %v635
  %v637 = vpop.xlane.xlu0 %636
  %v638 = vsel %vm595, %v625, 0.0
  %639 = vadd.xlane.f32.xlu0 %v638
  %v640 = vpop.xlane.xlu0 %639
  %v641 = vsel %vm595, %v627, 0.0
  %642 = vadd.xlane.f32.xlu0 %v641
  %v643 = vpop.xlane.xlu0 %642
  %v644 = vsel %vm595, %v629, 0.0
  %645 = vadd.xlane.f32.xlu0 %v644
  %v646 = vpop.xlane.xlu0 %645
  %v647 = vsel %vm595, %v631, 0.0
  %648 = vadd.xlane.f32.xlu0 %v647
  %v649 = vpop.xlane.xlu0 %648
  %v650 = vrcp.pop %v634
  %v651 = vmul.f32 %v621, %v650
  %v652 = vrcp.pop %v637
  %v653 = vmul.f32 %v623, %v652
  %v654 = vrcp.pop %v640
  %v655 = vmul.f32 %v625, %v654
  %v656 = vrcp.pop %v643
  %v657 = vmul.f32 %v627, %v656
  %v658 = vrcp.pop %v646
  %v659 = vmul.f32 %v629, %v658
  %v660 = vrcp.pop %v649
  %v661 = vmul.f32 %v631, %v660
  %v662 = vpack.c.bf16 %v653, %v651
  %v663 = vpack.c.bf16 %v657, %v655
  %v664 = vpack.c.bf16 %v661, %v659
  %665 = vrot.lane.b32.xlu0 %v495, 64
  %v666 = vpop.permute.xlu0 %665
  %667 = vrot.lane.b32.xlu0 %v496, 64
  %v668 = vpop.permute.xlu0 %667
  %669 = vrot.lane.b32.xlu0 %v497, 64
  %v670 = vpop.permute.xlu0 %669
  %v675 = vsel %vm595, %v662, 0
  %v678 = vsel %vm595, %v663, 0
  %v681 = vsel %vm595, %v664, 0
  %683 = vmatprep.subr.bf16.mxu0 0
  %684 = vmatpush1.bf16.msra.mxu0 %v666
  %685 = vmatprep.subr.bf16.mxu0 0
  %686 = vmatpush1.bf16.msra.mxu0 %v668
  %687 = vmatprep.subr.bf16.mxu0 0
  %688 = vmatpush1.bf16.msra.mxu0 %v670
  %689 = vmatprep.subr.bf16.mxu0 0
  %690 = vmatpush1.bf16.msra.mxu0 0
  %691 = vmatprep.subr.bf16.mxu0 0
  %692 = vmatpush1.bf16.msra.mxu0 0
  %693 = vmatprep.subr.bf16.mxu0 0
  %694 = vmatpush1.bf16.msra.mxu0 0
  %695 = vmatprep.subr.bf16.mxu0 0
  %696 = vmatpush1.bf16.msra.mxu0 0
  %697 = vmatprep.subr.bf16.mxu0 0
  %698 = vmatpush1.bf16.msra.mxu0 0
  %699 = vmatprep.subr.bf16.mxu0 0
  %700 = vmatpush1.bf16.msra.mxu0 0
  %701 = vmatprep.subr.bf16.mxu0 0
  %702 = vmatpush1.bf16.msra.mxu0 0
  %703 = vmatprep.subr.bf16.mxu0 0
  %704 = vmatpush1.bf16.msra.mxu0 0
  %705 = vmatprep.subr.bf16.mxu0 0
  %706 = vmatpush1.bf16.msra.mxu0 0
  %707 = vmatprep.subr.bf16.mxu0 0
  %708 = vmatpush1.bf16.msra.mxu0 0
  %709 = vmatprep.subr.bf16.mxu0 0
  %710 = vmatpush1.bf16.msra.mxu0 0
  %711 = vmatprep.subr.bf16.mxu0 0
  %712 = vmatpush1.bf16.msra.mxu0 0
  %713 = vmatprep.subr.bf16.mxu0 0
  %714 = vmatpush1.bf16.msra.mxu0 0
  %715 = vmatprep.mubr.bf16.mxu0 0
  %716 = vmatmul.mubr.bf16.gmra.mrb[0].mxu0 %v675
  %v717 = vpop.f32.mrb[0].mxu0
  %v718 = vadd.f32 0.0, %v717
  %v719 = vpop.f32.mrb[0].mxu0
  %v720 = vpop.f32.mrb[0].mxu0
  %v721 = vadd.f32 0.0, %v720
  %v722 = vpop.f32.mrb[0].mxu0
  %723 = vmatprep.mubr.bf16.mxu0 0
  %724 = vmatmul.mubr.bf16.gmra.mrb[0].mxu0 %v678
  %v725 = vpop.f32.mrb[0].mxu0
  %v726 = vadd.f32 0.0, %v725
  %v727 = vpop.f32.mrb[0].mxu0
  %v728 = vpop.f32.mrb[0].mxu0
  %v729 = vadd.f32 0.0, %v728
  %v730 = vpop.f32.mrb[0].mxu0
  %731 = vmatprep.mubr.bf16.mxu0 0
  %732 = vmatmul.mubr.bf16.gmra.mrb[0].mxu0 %v681
  %v733 = vpop.f32.mrb[0].mxu0
  %v734 = vadd.f32 0.0, %v733
  %v735 = vpop.f32.mrb[0].mxu0
  %v736 = vpop.f32.mrb[0].mxu0
  %v737 = vadd.f32 0.0, %v736
  %v738 = vpop.f32.mrb[0].mxu0
  %739 = vdwg.mxu0
  %v740 = vpack.c.bf16 %v721, %v718
  %v741 = vpack.c.bf16 %v729, %v726
  %v742 = vpack.c.bf16 %v737, %v734
  %743 = vrot.lane.b32.xlu0 %v495, 112
  %v744 = vpop.permute.xlu0 %743
  %745 = vrot.lane.b32.xlu0 %v496, 112
  %v746 = vpop.permute.xlu0 %745
  %747 = vrot.lane.b32.xlu0 %v497, 112
  %v748 = vpop.permute.xlu0 %747
  %749 = vrot.lane.b32.xlu0 %v495, 80
  %v750 = vpop.permute.xlu0 %749
  %751 = vrot.lane.b32.xlu0 %v496, 80
  %v752 = vpop.permute.xlu0 %751
  %753 = vrot.lane.b32.xlu0 %v497, 80
  %v754 = vpop.permute.xlu0 %753
  %v756 = vsel %vm507, %v744, 0
  %v759 = vsel %vm507, %v746, 0
  %v762 = vsel %vm507, %v748, 0
  %v765 = vsel %vm507, %v750, 0
  %v768 = vsel %vm507, %v752, 0
  %v771 = vsel %vm507, %v754, 0
  %773 = vmatprep.subr.bf16.mxu0 0
  %774 = vmatpush1.bf16.xpose.msra.mxu0 %v765
  %775 = vmatprep.subr.bf16.mxu0 0
  %776 = vmatpush1.bf16.xpose.msra.mxu0 %v768
  %777 = vmatprep.subr.bf16.mxu0 0
  %778 = vmatpush1.bf16.xpose.msra.mxu0 %v771
  %779 = vmatprep.subr.bf16.mxu0 0
  %780 = vmatpush1.bf16.xpose.msra.mxu0 0
  %781 = vmatprep.subr.bf16.mxu0 0
  %782 = vmatpush1.bf16.xpose.msra.mxu0 0
  %783 = vmatprep.subr.bf16.mxu0 0
  %784 = vmatpush1.bf16.xpose.msra.mxu0 0
  %785 = vmatprep.subr.bf16.mxu0 0
  %786 = vmatpush1.bf16.xpose.msra.mxu0 0
  %787 = vmatprep.subr.bf16.mxu0 0
  %788 = vmatpush1.bf16.xpose.msra.mxu0 0
  %789 = vmatprep.subr.bf16.mxu0 0
  %790 = vmatpush1.bf16.xpose.msra.mxu0 0
  %791 = vmatprep.subr.bf16.mxu0 0
  %792 = vmatpush1.bf16.xpose.msra.mxu0 0
  %793 = vmatprep.subr.bf16.mxu0 0
  %794 = vmatpush1.bf16.xpose.msra.mxu0 0
  %795 = vmatprep.subr.bf16.mxu0 0
  %796 = vmatpush1.bf16.xpose.msra.mxu0 0
  %797 = vmatprep.subr.bf16.mxu0 0
  %798 = vmatpush1.bf16.xpose.msra.mxu0 0
  %799 = vmatprep.subr.bf16.mxu0 0
  %800 = vmatpush1.bf16.xpose.msra.mxu0 0
  %801 = vmatprep.subr.bf16.mxu0 0
  %802 = vmatpush1.bf16.xpose.msra.mxu0 0
  %803 = vmatprep.subr.bf16.mxu0 0
  %804 = vmatpush1.bf16.xpose.msra.mxu0 0
  %805 = vmatprep.mubr.bf16.mxu0 0
  %806 = vmatmul.mubr.bf16.gmra.mrb[0].mxu0 %v756
  %v807 = vpop.f32.mrb[0].mxu0
  %v808 = vadd.f32 0.0, %v807
  %v809 = vpop.f32.mrb[0].mxu0
  %v810 = vpop.f32.mrb[0].mxu0
  %v811 = vadd.f32 0.0, %v810
  %v812 = vpop.f32.mrb[0].mxu0
  %813 = vmatprep.mubr.bf16.mxu0 0
  %814 = vmatmul.mubr.bf16.gmra.mrb[0].mxu0 %v759
  %v815 = vpop.f32.mrb[0].mxu0
  %v816 = vadd.f32 0.0, %v815
  %v817 = vpop.f32.mrb[0].mxu0
  %v818 = vpop.f32.mrb[0].mxu0
  %v819 = vadd.f32 0.0, %v818
  %v820 = vpop.f32.mrb[0].mxu0
  %821 = vmatprep.mubr.bf16.mxu0 0
  %822 = vmatmul.mubr.bf16.gmra.mrb[0].mxu0 %v762
  %v823 = vpop.f32.mrb[0].mxu0
  %v824 = vadd.f32 0.0, %v823
  %v825 = vpop.f32.mrb[0].mxu0
  %v826 = vpop.f32.mrb[0].mxu0
  %v827 = vadd.f32 0.0, %v826
  %v828 = vpop.f32.mrb[0].mxu0
  %829 = vdwg.mxu0
  %v830 = vmul.f32 %v808, 0.25
  %v831 = vmul.f32 %v811, 0.25
  %v832 = vmul.f32 %v816, 0.25
  %v833 = vmul.f32 %v819, 0.25
  %v834 = vmul.f32 %v824, 0.25
  %v835 = vmul.f32 %v827, 0.25
  %v836 = vadd.f32 %v830, %v295
  %v837 = vadd.f32 %v831, %v296
  %v838 = vadd.f32 %v832, %v297
  %v839 = vadd.f32 %v833, %v298
  %v840 = vadd.f32 %v834, %v299
  %v841 = vadd.f32 %v835, %v300
  %v842 = vsel %vm595, %v836, -inf
  %843 = vmax.xlane.f32.xlu0 %v842
  %v844 = vpop.xlane.xlu0 %843
  %v845 = vsel %vm595, %v837, -inf
  %846 = vmax.xlane.f32.xlu0 %v845
  %v847 = vpop.xlane.xlu0 %846
  %v848 = vsel %vm595, %v838, -inf
  %849 = vmax.xlane.f32.xlu0 %v848
  %v850 = vpop.xlane.xlu0 %849
  %v851 = vsel %vm595, %v839, -inf
  %852 = vmax.xlane.f32.xlu0 %v851
  %v853 = vpop.xlane.xlu0 %852
  %v854 = vsel %vm595, %v840, -inf
  %855 = vmax.xlane.f32.xlu0 %v854
  %v856 = vpop.xlane.xlu0 %855
  %v857 = vsel %vm595, %v841, -inf
  %858 = vmax.xlane.f32.xlu0 %v857
  %v859 = vpop.xlane.xlu0 %858
  %v860 = vsub.f32 %v836, %v844
  %v861 = vsub.f32 %v837, %v847
  %v862 = vsub.f32 %v838, %v850
  %v863 = vsub.f32 %v839, %v853
  %v864 = vsub.f32 %v840, %v856
  %v865 = vsub.f32 %v841, %v859
  %v866 = vmul.f32 %v860, 1.442695
  %v867 = vpow.pop %v866
  %v868 = vmul.f32 %v861, 1.442695
  %v869 = vpow.pop %v868
  %v870 = vmul.f32 %v862, 1.442695
  %v871 = vpow.pop %v870
  %v872 = vmul.f32 %v863, 1.442695
  %v873 = vpow.pop %v872
  %v874 = vmul.f32 %v864, 1.442695
  %v875 = vpow.pop %v874
  %v876 = vmul.f32 %v865, 1.442695
  %v877 = vpow.pop %v876
  %v878 = vsel %vm595, %v867, 0.0
  %879 = vadd.xlane.f32.xlu0 %v878
  %v880 = vpop.xlane.xlu0 %879
  %v881 = vsel %vm595, %v869, 0.0
  %882 = vadd.xlane.f32.xlu0 %v881
  %v883 = vpop.xlane.xlu0 %882
  %v884 = vsel %vm595, %v871, 0.0
  %885 = vadd.xlane.f32.xlu0 %v884
  %v886 = vpop.xlane.xlu0 %885
  %v887 = vsel %vm595, %v873, 0.0
  %888 = vadd.xlane.f32.xlu0 %v887
  %v889 = vpop.xlane.xlu0 %888
  %v890 = vsel %vm595, %v875, 0.0
  %891 = vadd.xlane.f32.xlu0 %v890
  %v892 = vpop.xlane.xlu0 %891
  %v893 = vsel %vm595, %v877, 0.0
  %894 = vadd.xlane.f32.xlu0 %v893
  %v895 = vpop.xlane.xlu0 %894
  %v896 = vrcp.pop %v880
  %v897 = vmul.f32 %v867, %v896
  %v898 = vrcp.pop %v883
  %v899 = vmul.f32 %v869, %v898
  %v900 = vrcp.pop %v886
  %v901 = vmul.f32 %v871, %v900
  %v902 = vrcp.pop %v889
  %v903 = vmul.f32 %v873, %v902
  %v904 = vrcp.pop %v892
  %v905 = vmul.f32 %v875, %v904
  %v906 = vrcp.pop %v895
  %v907 = vmul.f32 %v877, %v906
  %v908 = vpack.c.bf16 %v899, %v897
  %v909 = vpack.c.bf16 %v903, %v901
  %v910 = vpack.c.bf16 %v907, %v905
  %911 = vrot.lane.b32.xlu0 %v495, 48
  %v912 = vpop.permute.xlu0 %911
  %913 = vrot.lane.b32.xlu0 %v496, 48
  %v914 = vpop.permute.xlu0 %913
  %915 = vrot.lane.b32.xlu0 %v497, 48
  %v916 = vpop.permute.xlu0 %915
  %v921 = vsel %vm595, %v908, 0
  %v924 = vsel %vm595, %v909, 0
  %v927 = vsel %vm595, %v910, 0
  %929 = vmatprep.subr.bf16.mxu0 0
  %930 = vmatpush1.bf16.msra.mxu0 %v912
  %931 = vmatprep.subr.bf16.mxu0 0
  %932 = vmatpush1.bf16.msra.mxu0 %v914
  %933 = vmatprep.subr.bf16.mxu0 0
  %934 = vmatpush1.bf16.msra.mxu0 %v916
  %935 = vmatprep.subr.bf16.mxu0 0
  %936 = vmatpush1.bf16.msra.mxu0 0
  %937 = vmatprep.subr.bf16.mxu0 0
  %938 = vmatpush1.bf16.msra.mxu0 0
  %939 = vmatprep.subr.bf16.mxu0 0
  %940 = vmatpush1.bf16.msra.mxu0 0
  %941 = vmatprep.subr.bf16.mxu0 0
  %942 = vmatpush1.bf16.msra.mxu0 0
  %943 = vmatprep.subr.bf16.mxu0 0
  %944 = vmatpush1.bf16.msra.mxu0 0
  %945 = vmatprep.subr.bf16.mxu0 0
  %946 = vmatpush1.bf16.msra.mxu0 0
  %947 = vmatprep.subr.bf16.mxu0 0
  %948 = vmatpush1.bf16.msra.mxu0 0
  %949 = vmatprep.subr.bf16.mxu0 0
  %950 = vmatpush1.bf16.msra.mxu0 0
  %951 = vmatprep.subr.bf16.mxu0 0
  %952 = vmatpush1.bf16.msra.mxu0 0
  %953 = vmatprep.subr.bf16.mxu0 0
  %954 = vmatpush1.bf16.msra.mxu0 0
  %955 = vmatprep.subr.bf16.mxu0 0
  %956 = vmatpush1.bf16.msra.mxu0 0
  %957 = vmatprep.subr.bf16.mxu0 0
  %958 = vmatpush1.bf16.msra.mxu0 0
  %959 = vmatprep.subr.bf16.mxu0 0
  %960 = vmatpush1.bf16.msra.mxu0 0
  %961 = vmatprep.mubr.bf16.mxu0 0
  %962 = vmatmul.mubr.bf16.gmra.mrb[0].mxu0 %v921
  %v963 = vpop.f32.mrb[0].mxu0
  %v964 = vadd.f32 0.0, %v963
  %v965 = vpop.f32.mrb[0].mxu0
  %v966 = vpop.f32.mrb[0].mxu0
  %v967 = vadd.f32 0.0, %v966
  %v968 = vpop.f32.mrb[0].mxu0
  %969 = vmatprep.mubr.bf16.mxu0 0
  %970 = vmatmul.mubr.bf16.gmra.mrb[0].mxu0 %v924
  %v971 = vpop.f32.mrb[0].mxu0
  %v972 = vadd.f32 0.0, %v971
  %v973 = vpop.f32.mrb[0].mxu0
  %v974 = vpop.f32.mrb[0].mxu0
  %v975 = vadd.f32 0.0, %v974
  %v976 = vpop.f32.mrb[0].mxu0
  %977 = vmatprep.mubr.bf16.mxu0 0
  %978 = vmatmul.mubr.bf16.gmra.mrb[0].mxu0 %v927
  %v979 = vpop.f32.mrb[0].mxu0
  %v980 = vadd.f32 0.0, %v979
  %v981 = vpop.f32.mrb[0].mxu0
  %v982 = vpop.f32.mrb[0].mxu0
  %v983 = vadd.f32 0.0, %v982
  %v984 = vpop.f32.mrb[0].mxu0
  %985 = vdwg.mxu0
  %v986 = vpack.c.bf16 %v967, %v964
  %v987 = vpack.c.bf16 %v975, %v972
  %v988 = vpack.c.bf16 %v983, %v980
  %v991 = vunpack.c.l.b16 %v493
  %v992 = vunpack.c.l.b16 %v494
  %v993 = vpack.c.b16 %v992, %v991
  %v996 = vsel %vm507, %v986, 0
  %v999 = vsel %vm507, %v987, 0
  %v1002 = vsel %vm507, %v988, 0
  %1004 = vmatprep.subr.bf16.mxu0 0
  %1005 = vmatpush1.bf16.msra.mxu0 %v993
  %1006 = vmatprep.subr.bf16.mxu0 0
  %1007 = vmatpush1.bf16.msra.mxu0 0
  %1008 = vmatprep.subr.bf16.mxu0 0
  %1009 = vmatpush1.bf16.msra.mxu0 0
  %1010 = vmatprep.subr.bf16.mxu0 0
  %1011 = vmatpush1.bf16.msra.mxu0 0
  %1012 = vmatprep.subr.bf16.mxu0 0
  %1013 = vmatpush1.bf16.msra.mxu0 0
  %1014 = vmatprep.subr.bf16.mxu0 0
  %1015 = vmatpush1.bf16.msra.mxu0 0
  %1016 = vmatprep.subr.bf16.mxu0 0
  %1017 = vmatpush1.bf16.msra.mxu0 0
  %1018 = vmatprep.subr.bf16.mxu0 0
  %1019 = vmatpush1.bf16.msra.mxu0 0
  %1020 = vmatprep.subr.bf16.mxu0 0
  %1021 = vmatpush1.bf16.msra.mxu0 0
  %1022 = vmatprep.subr.bf16.mxu0 0
  %1023 = vmatpush1.bf16.msra.mxu0 0
  %1024 = vmatprep.subr.bf16.mxu0 0
  %1025 = vmatpush1.bf16.msra.mxu0 0
  %1026 = vmatprep.subr.bf16.mxu0 0
  %1027 = vmatpush1.bf16.msra.mxu0 0
  %1028 = vmatprep.subr.bf16.mxu0 0
  %1029 = vmatpush1.bf16.msra.mxu0 0
  %1030 = vmatprep.subr.bf16.mxu0 0
  %1031 = vmatpush1.bf16.msra.mxu0 0
  %1032 = vmatprep.subr.bf16.mxu0 0
  %1033 = vmatpush1.bf16.msra.mxu0 0
  %1034 = vmatprep.subr.bf16.mxu0 0
  %1035 = vmatpush1.bf16.msra.mxu0 0
  %1036 = vmatprep.mubr.bf16.mxu0 0
  %1037 = vmatmul.mubr.bf16.gmra.mrb[0].mxu0 %v996
  %v1038 = vpop.f32.mrb[0].mxu0
  %v1039 = vadd.f32 0.0, %v1038
  %v1040 = vpop.f32.mrb[0].mxu0
  %v1041 = vpop.f32.mrb[0].mxu0
  %v1042 = vadd.f32 0.0, %v1041
  %v1043 = vpop.f32.mrb[0].mxu0
  %1044 = vmatprep.mubr.bf16.mxu0 0
  %1045 = vmatmul.mubr.bf16.gmra.mrb[0].mxu0 %v999
  %v1046 = vpop.f32.mrb[0].mxu0
  %v1047 = vadd.f32 0.0, %v1046
  %v1048 = vpop.f32.mrb[0].mxu0
  %v1049 = vpop.f32.mrb[0].mxu0
  %v1050 = vadd.f32 0.0, %v1049
  %v1051 = vpop.f32.mrb[0].mxu0
  %1052 = vmatprep.mubr.bf16.mxu0 0
  %1053 = vmatmul.mubr.bf16.gmra.mrb[0].mxu0 %v1002
  %v1054 = vpop.f32.mrb[0].mxu0
  %v1055 = vadd.f32 0.0, %v1054
  %v1056 = vpop.f32.mrb[0].mxu0
  %v1057 = vpop.f32.mrb[0].mxu0
  %v1058 = vadd.f32 0.0, %v1057
  %v1059 = vpop.f32.mrb[0].mxu0
  %1060 = vdwg.mxu0
  %v1063 = vunpack.c.l.b16 %v491
  %v1064 = vunpack.c.l.b16 %v492
  %v1065 = vpack.c.b16 %v1064, %v1063
  %v1068 = vsel %vm507, %v740, 0
  %v1071 = vsel %vm507, %v741, 0
  %v1074 = vsel %vm507, %v742, 0
  %1076 = vmatprep.subr.bf16.mxu0 0
  %1077 = vmatpush1.bf16.msra.mxu0 %v1065
  %1078 = vmatprep.subr.bf16.mxu0 0
  %1079 = vmatpush1.bf16.msra.mxu0 0
  %1080 = vmatprep.subr.bf16.mxu0 0
  %1081 = vmatpush1.bf16.msra.mxu0 0
  %1082 = vmatprep.subr.bf16.mxu0 0
  %1083 = vmatpush1.bf16.msra.mxu0 0
  %1084 = vmatprep.subr.bf16.mxu0 0
  %1085 = vmatpush1.bf16.msra.mxu0 0
  %1086 = vmatprep.subr.bf16.mxu0 0
  %1087 = vmatpush1.bf16.msra.mxu0 0
  %1088 = vmatprep.subr.bf16.mxu0 0
  %1089 = vmatpush1.bf16.msra.mxu0 0
  %1090 = vmatprep.subr.bf16.mxu0 0
  %1091 = vmatpush1.bf16.msra.mxu0 0
  %1092 = vmatprep.subr.bf16.mxu0 0
  %1093 = vmatpush1.bf16.msra.mxu0 0
  %1094 = vmatprep.subr.bf16.mxu0 0
  %1095 = vmatpush1.bf16.msra.mxu0 0
  %1096 = vmatprep.subr.bf16.mxu0 0
  %1097 = vmatpush1.bf16.msra.mxu0 0
  %1098 = vmatprep.subr.bf16.mxu0 0
  %1099 = vmatpush1.bf16.msra.mxu0 0
  %1100 = vmatprep.subr.bf16.mxu0 0
  %1101 = vmatpush1.bf16.msra.mxu0 0
  %1102 = vmatprep.subr.bf16.mxu0 0
  %1103 = vmatpush1.bf16.msra.mxu0 0
  %1104 = vmatprep.subr.bf16.mxu0 0
  %1105 = vmatpush1.bf16.msra.mxu0 0
  %1106 = vmatprep.subr.bf16.mxu0 0
  %1107 = vmatpush1.bf16.msra.mxu0 0
  %1108 = vmatprep.mubr.bf16.mxu0 0
  %1109 = vmatmul.mubr.bf16.gmra.mrb[0].mxu0 %v1068
  %v1110 = vpop.f32.mrb[0].mxu0
  %v1111 = vadd.f32 %v1039, %v1110
  %v1112 = vpop.f32.mrb[0].mxu0
  %v1113 = vpop.f32.mrb[0].mxu0
  %v1114 = vadd.f32 %v1042, %v1113
  %v1115 = vpop.f32.mrb[0].mxu0
  %1116 = vmatprep.mubr.bf16.mxu0 0
  %1117 = vmatmul.mubr.bf16.gmra.mrb[0].mxu0 %v1071
  %v1118 = vpop.f32.mrb[0].mxu0
  %v1119 = vadd.f32 %v1047, %v1118
  %v1120 = vpop.f32.mrb[0].mxu0
  %v1121 = vpop.f32.mrb[0].mxu0
  %v1122 = vadd.f32 %v1050, %v1121
  %v1123 = vpop.f32.mrb[0].mxu0
  %1124 = vmatprep.mubr.bf16.mxu0 0
  %1125 = vmatmul.mubr.bf16.gmra.mrb[0].mxu0 %v1074
  %v1126 = vpop.f32.mrb[0].mxu0
  %v1127 = vadd.f32 %v1055, %v1126
  %v1128 = vpop.f32.mrb[0].mxu0
  %v1129 = vpop.f32.mrb[0].mxu0
  %v1130 = vadd.f32 %v1058, %v1129
  %v1131 = vpop.f32.mrb[0].mxu0
  %1132 = vdwg.mxu0
  %v1133 = vadd.f32 %v289, %v1111
  %v1134 = vadd.f32 %v290, %v1114
  %v1135 = vadd.f32 %v291, %v1119
  %v1136 = vadd.f32 %v292, %v1122
  %v1137 = vadd.f32 %v293, %v1127
  %v1138 = vadd.f32 %v294, %v1130
  %v1139 = vld [vmem:[%s3 + $0x8] sm:$0x1]
  %v1140 = vlaneseq
  %v1141 = vshrl.u32 %v1140, 7
  %v1142 = vsub.s32 0, %v1141
  %v1143 = vrot.slane %v1139, %v1142
  %v1144 = vadd.f32 %v1133, %v1143
  %v1145 = vadd.f32 %v1134, %v1143
  %v1146 = vadd.f32 %v1135, %v1143
  %v1147 = vadd.f32 %v1136, %v1143
  %v1148 = vadd.f32 %v1137, %v1143
  %v1149 = vadd.f32 %v1138, %v1143
  %v1150 = vld [vmem:[%s3 + $0x9] sm:$0x1]
  %v1151 = vld [vmem:[%s3 + $0xa] sm:$0x1]
  %v1152 = vsel %vm165, %v1144, 0.0
  %1153 = vadd.xlane.f32.xlu0 %v1152
  %v1154 = vpop.xlane.xlu0 %1153
  %v1155 = vsel %vm165, %v1145, 0.0
  %1156 = vadd.xlane.f32.xlu0 %v1155
  %v1157 = vpop.xlane.xlu0 %1156
  %v1158 = vsel %vm165, %v1146, 0.0
  %1159 = vadd.xlane.f32.xlu0 %v1158
  %v1160 = vpop.xlane.xlu0 %1159
  %v1161 = vsel %vm165, %v1147, 0.0
  %1162 = vadd.xlane.f32.xlu0 %v1161
  %v1163 = vpop.xlane.xlu0 %1162
  %v1164 = vsel %vm165, %v1148, 0.0
  %1165 = vadd.xlane.f32.xlu0 %v1164
  %v1166 = vpop.xlane.xlu0 %1165
  %v1167 = vsel %vm165, %v1149, 0.0
  %1168 = vadd.xlane.f32.xlu0 %v1167
  %v1169 = vpop.xlane.xlu0 %1168
  %v1170 = vmul.f32 %v1154, %v184
  %v1171 = vmul.f32 %v1157, %v184
  %v1172 = vmul.f32 %v1160, %v184
  %v1173 = vmul.f32 %v1163, %v184
  %v1174 = vmul.f32 %v1166, %v184
  %v1175 = vmul.f32 %v1169, %v184
  %v1176 = vsub.f32 %v1144, %v1170
  %v1177 = vsub.f32 %v1145, %v1171
  %v1178 = vsub.f32 %v1146, %v1172
  %v1179 = vsub.f32 %v1147, %v1173
  %v1180 = vsub.f32 %v1148, %v1174
  %v1181 = vsub.f32 %v1149, %v1175
  %v1182 = vmul.f32 %v1176, %v1176
  %v1183 = vmul.f32 %v1177, %v1177
  %v1184 = vmul.f32 %v1178, %v1178
  %v1185 = vmul.f32 %v1179, %v1179
  %v1186 = vmul.f32 %v1180, %v1180
  %v1187 = vmul.f32 %v1181, %v1181
  %v1188 = vsel %vm165, %v1182, 0.0
  %1189 = vadd.xlane.f32.xlu0 %v1188
  %v1190 = vpop.xlane.xlu0 %1189
  %v1191 = vsel %vm165, %v1183, 0.0
  %1192 = vadd.xlane.f32.xlu0 %v1191
  %v1193 = vpop.xlane.xlu0 %1192
  %v1194 = vsel %vm165, %v1184, 0.0
  %1195 = vadd.xlane.f32.xlu0 %v1194
  %v1196 = vpop.xlane.xlu0 %1195
  %v1197 = vsel %vm165, %v1185, 0.0
  %1198 = vadd.xlane.f32.xlu0 %v1197
  %v1199 = vpop.xlane.xlu0 %1198
  %v1200 = vsel %vm165, %v1186, 0.0
  %1201 = vadd.xlane.f32.xlu0 %v1200
  %v1202 = vpop.xlane.xlu0 %1201
  %v1203 = vsel %vm165, %v1187, 0.0
  %1204 = vadd.xlane.f32.xlu0 %v1203
  %v1205 = vpop.xlane.xlu0 %1204
  %v1206 = vmul.f32 %v1190, %v184
  %v1207 = vmul.f32 %v1193, %v184
  %v1208 = vmul.f32 %v1196, %v184
  %v1209 = vmul.f32 %v1199, %v184
  %v1210 = vmul.f32 %v1202, %v184
  %v1211 = vmul.f32 %v1205, %v184
  %v1212 = vadd.f32 %v1206, 1e-05
  %v1213 = vadd.f32 %v1207, 1e-05
  %v1214 = vadd.f32 %v1208, 1e-05
  %v1215 = vadd.f32 %v1209, 1e-05
  %v1216 = vadd.f32 %v1210, 1e-05
  %v1217 = vadd.f32 %v1211, 1e-05
  %v1218 = vrsqrt.pop %v1212
  %v1219 = vrsqrt.pop %v1213
  %v1220 = vrsqrt.pop %v1214
  %v1221 = vrsqrt.pop %v1215
  %v1222 = vrsqrt.pop %v1216
  %v1223 = vrsqrt.pop %v1217
  %v1224 = vmul.f32 %v1176, %v1218
  %v1225 = vmul.f32 %v1177, %v1219
  %v1226 = vmul.f32 %v1178, %v1220
  %v1227 = vmul.f32 %v1179, %v1221
  %v1228 = vmul.f32 %v1180, %v1222
  %v1229 = vmul.f32 %v1181, %v1223
  %v1230 = vlaneseq
  %v1231 = vshrl.u32 %v1230, 7
  %v1232 = vsub.s32 0, %v1231
  %v1233 = vrot.slane %v1150, %v1232
  %v1234 = vmul.f32 %v1224, %v1233
  %v1235 = vmul.f32 %v1225, %v1233
  %v1236 = vmul.f32 %v1226, %v1233
  %v1237 = vmul.f32 %v1227, %v1233
  %v1238 = vmul.f32 %v1228, %v1233
  %v1239 = vmul.f32 %v1229, %v1233
  %v1240 = vlaneseq
  %v1241 = vshrl.u32 %v1240, 7
  %v1242 = vsub.s32 0, %v1241
  %v1243 = vrot.slane %v1151, %v1242
  %v1244 = vadd.f32 %v1234, %v1243
  %v1245 = vadd.f32 %v1235, %v1243
  %v1246 = vadd.f32 %v1236, %v1243
  %v1247 = vadd.f32 %v1237, %v1243
  %v1248 = vadd.f32 %v1238, %v1243
  %v1249 = vadd.f32 %v1239, %v1243
  %v1250 = vld [vmem:[%s6] sm:$0xf]
  %v1251 = vld [vmem:[%s6 + $0x4] sm:$0xf]
  %v1252 = vld [vmem:[%s6 + $0x8] sm:$0xf]
  %v1253 = vld [vmem:[%s6 + $0xc] sm:$0xf]
  %v1254 = vpack.c.bf16 %v1245, %v1244
  %v1255 = vpack.c.bf16 %v1247, %v1246
  %v1256 = vpack.c.bf16 %v1249, %v1248
  %v1257 = vld [vmem:[%s3 + $0xb] sm:$0x1]
  %v1258 = vlaneseq
  %v1259 = vshrl.u32 %v1258, 7
  %v1260 = vsub.s32 0, %v1259
  %v1261 = vrot.slane %v1257, %v1260
  %v1266 = vunpack.c.l.b16 %v1250
  %v1267 = vunpack.c.l.b16 %v1251
  %v1268 = vunpack.c.l.b16 %v1252
  %v1269 = vunpack.c.l.b16 %v1253
  %v1270 = vpack.c.b16 %v1267, %v1266
  %v1271 = vpack.c.b16 %v1269, %v1268
  %v1275 = vsel %vm165, %v1254, 0
  %v1278 = vsel %vm165, %v1255, 0
  %v1281 = vsel %vm165, %v1256, 0
  %1283 = vmatprep.subr.bf16.mxu0 0
  %1284 = vmatpush1.bf16.msra.mxu0 %v1270
  %1285 = vmatprep.subr.bf16.mxu0 0
  %1286 = vmatpush1.bf16.msra.mxu0 %v1271
  %1287 = vmatprep.subr.bf16.mxu0 0
  %1288 = vmatpush1.bf16.msra.mxu0 0
  %1289 = vmatprep.subr.bf16.mxu0 0
  %1290 = vmatpush1.bf16.msra.mxu0 0
  %1291 = vmatprep.subr.bf16.mxu0 0
  %1292 = vmatpush1.bf16.msra.mxu0 0
  %1293 = vmatprep.subr.bf16.mxu0 0
  %1294 = vmatpush1.bf16.msra.mxu0 0
  %1295 = vmatprep.subr.bf16.mxu0 0
  %1296 = vmatpush1.bf16.msra.mxu0 0
  %1297 = vmatprep.subr.bf16.mxu0 0
  %1298 = vmatpush1.bf16.msra.mxu0 0
  %1299 = vmatprep.subr.bf16.mxu0 0
  %1300 = vmatpush1.bf16.msra.mxu0 0
  %1301 = vmatprep.subr.bf16.mxu0 0
  %1302 = vmatpush1.bf16.msra.mxu0 0
  %1303 = vmatprep.subr.bf16.mxu0 0
  %1304 = vmatpush1.bf16.msra.mxu0 0
  %1305 = vmatprep.subr.bf16.mxu0 0
  %1306 = vmatpush1.bf16.msra.mxu0 0
  %1307 = vmatprep.subr.bf16.mxu0 0
  %1308 = vmatpush1.bf16.msra.mxu0 0
  %1309 = vmatprep.subr.bf16.mxu0 0
  %1310 = vmatpush1.bf16.msra.mxu0 0
  %1311 = vmatprep.subr.bf16.mxu0 0
  %1312 = vmatpush1.bf16.msra.mxu0 0
  %1313 = vmatprep.subr.bf16.mxu0 0
  %1314 = vmatpush1.bf16.msra.mxu0 0
  %1315 = vmatprep.mubr.bf16.mxu0 0
  %1316 = vmatmul.mubr.bf16.gmra.mrb[0].mxu0 %v1275
  %v1317 = vpop.f32.mrb[0].mxu0
  %v1318 = vadd.f32 %v1261, %v1317
  %v1319 = vpop.f32.mrb[0].mxu0
  %v1320 = vpop.f32.mrb[0].mxu0
  %v1321 = vadd.f32 %v1261, %v1320
  %v1322 = vpop.f32.mrb[0].mxu0
  %1323 = vmatprep.mubr.bf16.mxu0 0
  %1324 = vmatmul.mubr.bf16.gmra.mrb[0].mxu0 %v1278
  %v1325 = vpop.f32.mrb[0].mxu0
  %v1326 = vadd.f32 %v1261, %v1325
  %v1327 = vpop.f32.mrb[0].mxu0
  %v1328 = vpop.f32.mrb[0].mxu0
  %v1329 = vadd.f32 %v1261, %v1328
  %v1330 = vpop.f32.mrb[0].mxu0
  %1331 = vmatprep.mubr.bf16.mxu0 0
  %1332 = vmatmul.mubr.bf16.gmra.mrb[0].mxu0 %v1281
  %v1333 = vpop.f32.mrb[0].mxu0
  %v1334 = vadd.f32 %v1261, %v1333
  %v1335 = vpop.f32.mrb[0].mxu0
  %v1336 = vpop.f32.mrb[0].mxu0
  %v1337 = vadd.f32 %v1261, %v1336
  %v1338 = vpop.f32.mrb[0].mxu0
  %1339 = vdwg.mxu0
  %v1340 = vmul.f32 %v1318, 0.5
  %v1341 = vmul.f32 %v1321, 0.5
  %v1342 = vmul.f32 %v1326, 0.5
  %v1343 = vmul.f32 %v1329, 0.5
  %v1344 = vmul.f32 %v1334, 0.5
  %v1345 = vmul.f32 %v1337, 0.5
  %v1346 = vmul.f32 %v1318, 0.044715
  %v1347 = vmul.f32 %v1321, 0.044715
  %v1348 = vmul.f32 %v1326, 0.044715
  %v1349 = vmul.f32 %v1329, 0.044715
  %v1350 = vmul.f32 %v1334, 0.044715
  %v1351 = vmul.f32 %v1337, 0.044715
  %v1352 = vmul.f32 %v1346, %v1318
  %v1353 = vmul.f32 %v1347, %v1321
  %v1354 = vmul.f32 %v1348, %v1326
  %v1355 = vmul.f32 %v1349, %v1329
  %v1356 = vmul.f32 %v1350, %v1334
  %v1357 = vmul.f32 %v1351, %v1337
  %v1358 = vmul.f32 %v1352, %v1318
  %v1359 = vmul.f32 %v1353, %v1321
  %v1360 = vmul.f32 %v1354, %v1326
  %v1361 = vmul.f32 %v1355, %v1329
  %v1362 = vmul.f32 %v1356, %v1334
  %v1363 = vmul.f32 %v1357, %v1337
  %v1364 = vadd.f32 %v1318, %v1358
  %v1365 = vadd.f32 %v1321, %v1359
  %v1366 = vadd.f32 %v1326, %v1360
  %v1367 = vadd.f32 %v1329, %v1361
  %v1368 = vadd.f32 %v1334, %v1362
  %v1369 = vadd.f32 %v1337, %v1363
  %v1370 = vmul.f32 %v1364, 0.7978846
  %v1371 = vmul.f32 %v1365, 0.7978846
  %v1372 = vmul.f32 %v1366, 0.7978846
  %v1373 = vmul.f32 %v1367, 0.7978846
  %v1374 = vmul.f32 %v1368, 0.7978846
  %v1375 = vmul.f32 %v1369, 0.7978846
  %v1376 = vtanh.pop %v1370
  %v1377 = vtanh.pop %v1371
  %v1378 = vtanh.pop %v1372
  %v1379 = vtanh.pop %v1373
  %v1380 = vtanh.pop %v1374
  %v1381 = vtanh.pop %v1375
  %v1382 = vadd.f32 %v1376, 1.0
  %v1383 = vadd.f32 %v1377, 1.0
  %v1384 = vadd.f32 %v1378, 1.0
  %v1385 = vadd.f32 %v1379, 1.0
  %v1386 = vadd.f32 %v1380, 1.0
  %v1387 = vadd.f32 %v1381, 1.0
  %v1388 = vmul.f32 %v1340, %v1382
  %v1389 = vmul.f32 %v1341, %v1383
  %v1390 = vmul.f32 %v1342, %v1384
  %v1391 = vmul.f32 %v1343, %v1385
  %v1392 = vmul.f32 %v1344, %v1386
  %v1393 = vmul.f32 %v1345, %v1387
  %v1394 = vld [vmem:[%s7] sm:$0xf]
  %v1395 = vld [vmem:[%s7 + $0x4] sm:$0xf]
  %v1396 = vld [vmem:[%s7 + $0x8] sm:$0xf]
  %v1397 = vld [vmem:[%s7 + $0xc] sm:$0xf]
  %v1398 = vld [vmem:[%s7 + $0x10] sm:$0xf]
  %v1399 = vld [vmem:[%s7 + $0x14] sm:$0xf]
  %v1400 = vld [vmem:[%s7 + $0x18] sm:$0xf]
  %v1401 = vld [vmem:[%s7 + $0x1c] sm:$0xf]
  %v1402 = vld [vmem:[%s7 + $0x20] sm:$0xf]
  %v1403 = vld [vmem:[%s7 + $0x24] sm:$0xf]
  %v1404 = vld [vmem:[%s7 + $0x28] sm:$0xf]
  %v1405 = vld [vmem:[%s7 + $0x2c] sm:$0xf]
  %v1406 = vld [vmem:[%s7 + $0x30] sm:$0xf]
  %v1407 = vld [vmem:[%s7 + $0x34] sm:$0xf]
  %v1408 = vld [vmem:[%s7 + $0x38] sm:$0xf]
  %v1409 = vld [vmem:[%s7 + $0x3c] sm:$0xf]
  %v1410 = vpack.c.bf16 %v1389, %v1388
  %v1411 = vpack.c.bf16 %v1391, %v1390
  %v1412 = vpack.c.bf16 %v1393, %v1392
  %v1429 = vunpack.c.l.b16 %v1394
  %v1430 = vunpack.c.l.b16 %v1395
  %v1431 = vunpack.c.l.b16 %v1396
  %v1432 = vunpack.c.l.b16 %v1397
  %v1433 = vunpack.c.l.b16 %v1398
  %v1434 = vunpack.c.l.b16 %v1399
  %v1435 = vunpack.c.l.b16 %v1400
  %v1436 = vunpack.c.l.b16 %v1401
  %v1437 = vunpack.c.l.b16 %v1402
  %v1438 = vunpack.c.l.b16 %v1403
  %v1439 = vunpack.c.l.b16 %v1404
  %v1440 = vunpack.c.l.b16 %v1405
  %v1441 = vunpack.c.l.b16 %v1406
  %v1442 = vunpack.c.l.b16 %v1407
  %v1443 = vunpack.c.l.b16 %v1408
  %v1444 = vunpack.c.l.b16 %v1409
  %v1445 = vpack.c.b16 %v1430, %v1429
  %v1446 = vpack.c.b16 %v1432, %v1431
  %v1447 = vpack.c.b16 %v1434, %v1433
  %v1448 = vpack.c.b16 %v1436, %v1435
  %v1449 = vpack.c.b16 %v1438, %v1437
  %v1450 = vpack.c.b16 %v1440, %v1439
  %v1451 = vpack.c.b16 %v1442, %v1441
  %v1452 = vpack.c.b16 %v1444, %v1443
  %1461 = vmatprep.subr.bf16.mxu0 0
  %1462 = vmatpush1.bf16.msra.mxu0 %v1445
  %1463 = vmatprep.subr.bf16.mxu0 0
  %1464 = vmatpush1.bf16.msra.mxu0 %v1446
  %1465 = vmatprep.subr.bf16.mxu0 0
  %1466 = vmatpush1.bf16.msra.mxu0 %v1447
  %1467 = vmatprep.subr.bf16.mxu0 0
  %1468 = vmatpush1.bf16.msra.mxu0 %v1448
  %1469 = vmatprep.subr.bf16.mxu0 0
  %1470 = vmatpush1.bf16.msra.mxu0 %v1449
  %1471 = vmatprep.subr.bf16.mxu0 0
  %1472 = vmatpush1.bf16.msra.mxu0 %v1450
  %1473 = vmatprep.subr.bf16.mxu0 0
  %1474 = vmatpush1.bf16.msra.mxu0 %v1451
  %1475 = vmatprep.subr.bf16.mxu0 0
  %1476 = vmatpush1.bf16.msra.mxu0 %v1452
  %1477 = vmatprep.subr.bf16.mxu0 0
  %1478 = vmatpush1.bf16.msra.mxu0 0
  %1479 = vmatprep.subr.bf16.mxu0 0
  %1480 = vmatpush1.bf16.msra.mxu0 0
  %1481 = vmatprep.subr.bf16.mxu0 0
  %1482 = vmatpush1.bf16.msra.mxu0 0
  %1483 = vmatprep.subr.bf16.mxu0 0
  %1484 = vmatpush1.bf16.msra.mxu0 0
  %1485 = vmatprep.subr.bf16.mxu0 0
  %1486 = vmatpush1.bf16.msra.mxu0 0
  %1487 = vmatprep.subr.bf16.mxu0 0
  %1488 = vmatpush1.bf16.msra.mxu0 0
  %1489 = vmatprep.subr.bf16.mxu0 0
  %1490 = vmatpush1.bf16.msra.mxu0 0
  %1491 = vmatprep.subr.bf16.mxu0 0
  %1492 = vmatpush1.bf16.msra.mxu0 0
  %1493 = vmatprep.mubr.bf16.mxu0 0
  %1494 = vmatmul.mubr.bf16.gmra.mrb[0].mxu0 %v1410
  %v1495 = vpop.f32.mrb[0].mxu0
  %v1496 = vadd.f32 0.0, %v1495
  %v1497 = vpop.f32.mrb[0].mxu0
  %v1498 = vpop.f32.mrb[0].mxu0
  %v1499 = vadd.f32 0.0, %v1498
  %v1500 = vpop.f32.mrb[0].mxu0
  %1501 = vmatprep.mubr.bf16.mxu0 0
  %1502 = vmatmul.mubr.bf16.gmra.mrb[0].mxu0 %v1411
  %v1503 = vpop.f32.mrb[0].mxu0
  %v1504 = vadd.f32 0.0, %v1503
  %v1505 = vpop.f32.mrb[0].mxu0
  %v1506 = vpop.f32.mrb[0].mxu0
  %v1507 = vadd.f32 0.0, %v1506
  %v1508 = vpop.f32.mrb[0].mxu0
  %1509 = vmatprep.mubr.bf16.mxu0 0
  %1510 = vmatmul.mubr.bf16.gmra.mrb[0].mxu0 %v1412
  %v1511 = vpop.f32.mrb[0].mxu0
  %v1512 = vadd.f32 0.0, %v1511
  %v1513 = vpop.f32.mrb[0].mxu0
  %v1514 = vpop.f32.mrb[0].mxu0
  %v1515 = vadd.f32 0.0, %v1514
  %v1516 = vpop.f32.mrb[0].mxu0
  %1517 = vdwg.mxu0
  %v1518 = vadd.f32 %v1144, %v1496
  %v1519 = vadd.f32 %v1145, %v1499
  %v1520 = vadd.f32 %v1146, %v1504
  %v1521 = vadd.f32 %v1147, %v1507
  %v1522 = vadd.f32 %v1148, %v1512
  %v1523 = vadd.f32 %v1149, %v1515
  %v1524 = vld [vmem:[%s3 + $0xc] sm:$0x1]
  %v1525 = vlaneseq
  %v1526 = vshrl.u32 %v1525, 7
  %v1527 = vsub.s32 0, %v1526
  %v1528 = vrot.slane %v1524, %v1527
  %v1529 = vadd.f32 %v1518, %v1528
  %v1530 = vadd.f32 %v1519, %v1528
  %v1531 = vadd.f32 %v1520, %v1528
  %v1532 = vadd.f32 %v1521, %v1528
  %v1533 = vadd.f32 %v1522, %v1528
  %v1534 = vadd.f32 %v1523, %v1528
  %v1535 = vld [vmem:[%s3 + $0xd] sm:$0x1]
  %v1536 = vld [vmem:[%s3 + $0xe] sm:$0x1]
  %v1537 = vsel %vm165, %v1529, 0.0
  %1538 = vadd.xlane.f32.xlu0 %v1537
  %v1539 = vpop.xlane.xlu0 %1538
  %v1540 = vsel %vm165, %v1530, 0.0
  %1541 = vadd.xlane.f32.xlu0 %v1540
  %v1542 = vpop.xlane.xlu0 %1541
  %v1543 = vsel %vm165, %v1531, 0.0
  %1544 = vadd.xlane.f32.xlu0 %v1543
  %v1545 = vpop.xlane.xlu0 %1544
  %v1546 = vsel %vm165, %v1532, 0.0
  %1547 = vadd.xlane.f32.xlu0 %v1546
  %v1548 = vpop.xlane.xlu0 %1547
  %v1549 = vsel %vm165, %v1533, 0.0
  %1550 = vadd.xlane.f32.xlu0 %v1549
  %v1551 = vpop.xlane.xlu0 %1550
  %v1552 = vsel %vm165, %v1534, 0.0
  %1553 = vadd.xlane.f32.xlu0 %v1552
  %v1554 = vpop.xlane.xlu0 %1553
  %v1555 = vmul.f32 %v1539, %v184
  %v1556 = vmul.f32 %v1542, %v184
  %v1557 = vmul.f32 %v1545, %v184
  %v1558 = vmul.f32 %v1548, %v184
  %v1559 = vmul.f32 %v1551, %v184
  %v1560 = vmul.f32 %v1554, %v184
  %v1561 = vsub.f32 %v1529, %v1555
  %v1562 = vsub.f32 %v1530, %v1556
  %v1563 = vsub.f32 %v1531, %v1557
  %v1564 = vsub.f32 %v1532, %v1558
  %v1565 = vsub.f32 %v1533, %v1559
  %v1566 = vsub.f32 %v1534, %v1560
  %v1567 = vmul.f32 %v1561, %v1561
  %v1568 = vmul.f32 %v1562, %v1562
  %v1569 = vmul.f32 %v1563, %v1563
  %v1570 = vmul.f32 %v1564, %v1564
  %v1571 = vmul.f32 %v1565, %v1565
  %v1572 = vmul.f32 %v1566, %v1566
  %v1573 = vsel %vm165, %v1567, 0.0
  %1574 = vadd.xlane.f32.xlu0 %v1573
  %v1575 = vpop.xlane.xlu0 %1574
  %v1576 = vsel %vm165, %v1568, 0.0
  %1577 = vadd.xlane.f32.xlu0 %v1576
  %v1578 = vpop.xlane.xlu0 %1577
  %v1579 = vsel %vm165, %v1569, 0.0
  %1580 = vadd.xlane.f32.xlu0 %v1579
  %v1581 = vpop.xlane.xlu0 %1580
  %v1582 = vsel %vm165, %v1570, 0.0
  %1583 = vadd.xlane.f32.xlu0 %v1582
  %v1584 = vpop.xlane.xlu0 %1583
  %v1585 = vsel %vm165, %v1571, 0.0
  %1586 = vadd.xlane.f32.xlu0 %v1585
  %v1587 = vpop.xlane.xlu0 %1586
  %v1588 = vsel %vm165, %v1572, 0.0
  %1589 = vadd.xlane.f32.xlu0 %v1588
  %v1590 = vpop.xlane.xlu0 %1589
  %v1591 = vmul.f32 %v1575, %v184
  %v1592 = vmul.f32 %v1578, %v184
  %v1593 = vmul.f32 %v1581, %v184
  %v1594 = vmul.f32 %v1584, %v184
  %v1595 = vmul.f32 %v1587, %v184
  %v1596 = vmul.f32 %v1590, %v184
  %v1597 = vadd.f32 %v1591, 1e-05
  %v1598 = vadd.f32 %v1592, 1e-05
  %v1599 = vadd.f32 %v1593, 1e-05
  %v1600 = vadd.f32 %v1594, 1e-05
  %v1601 = vadd.f32 %v1595, 1e-05
  %v1602 = vadd.f32 %v1596, 1e-05
  %v1603 = vrsqrt.pop %v1597
  %v1604 = vrsqrt.pop %v1598
  %v1605 = vrsqrt.pop %v1599
  %v1606 = vrsqrt.pop %v1600
  %v1607 = vrsqrt.pop %v1601
  %v1608 = vrsqrt.pop %v1602
  %v1609 = vmul.f32 %v1561, %v1603
  %v1610 = vmul.f32 %v1562, %v1604
  %v1611 = vmul.f32 %v1563, %v1605
  %v1612 = vmul.f32 %v1564, %v1606
  %v1613 = vmul.f32 %v1565, %v1607
  %v1614 = vmul.f32 %v1566, %v1608
  %v1615 = vlaneseq
  %v1616 = vshrl.u32 %v1615, 7
  %v1617 = vsub.s32 0, %v1616
  %v1618 = vrot.slane %v1535, %v1617
  %v1619 = vmul.f32 %v1609, %v1618
  %v1620 = vmul.f32 %v1610, %v1618
  %v1621 = vmul.f32 %v1611, %v1618
  %v1622 = vmul.f32 %v1612, %v1618
  %v1623 = vmul.f32 %v1613, %v1618
  %v1624 = vmul.f32 %v1614, %v1618
  %v1625 = vlaneseq
  %v1626 = vshrl.u32 %v1625, 7
  %v1627 = vsub.s32 0, %v1626
  %v1628 = vrot.slane %v1536, %v1627
  %v1629 = vadd.f32 %v1619, %v1628
  %v1630 = vadd.f32 %v1620, %v1628
  %v1631 = vadd.f32 %v1621, %v1628
  %v1632 = vadd.f32 %v1622, %v1628
  %v1633 = vadd.f32 %v1623, %v1628
  %v1634 = vadd.f32 %v1624, %v1628
  %s1635 = scalar_lea.vmem %s4, 16
  %v1636 = vld [vmem:[%s1635] sm:$0xf]
  %v1637 = vld [vmem:[%s1635 + $0x4] sm:$0xf]
  %v1638 = vld [vmem:[%s1635 + $0x8] sm:$0xf]
  %v1639 = vld [vmem:[%s1635 + $0xc] sm:$0xf]
  %v1640 = vpack.c.bf16 %v1630, %v1629
  %v1641 = vpack.c.bf16 %v1632, %v1631
  %v1642 = vpack.c.bf16 %v1634, %v1633
  %v1643 = vld [vmem:[%s3 + $0xf] sm:$0x1]
  %v1644 = vlaneseq
  %v1645 = vshrl.u32 %v1644, 7
  %v1646 = vsub.s32 0, %v1645
  %v1647 = vrot.slane %v1643, %v1646
  %v1652 = vunpack.c.l.b16 %v1636
  %v1653 = vunpack.c.l.b16 %v1637
  %v1654 = vunpack.c.l.b16 %v1638
  %v1655 = vunpack.c.l.b16 %v1639
  %v1656 = vpack.c.b16 %v1653, %v1652
  %v1657 = vpack.c.b16 %v1655, %v1654
  %v1661 = vsel %vm165, %v1640, 0
  %v1664 = vsel %vm165, %v1641, 0
  %v1667 = vsel %vm165, %v1642, 0
  %1669 = vmatprep.subr.bf16.mxu0 0
  %1670 = vmatpush1.bf16.msra.mxu0 %v1656
  %1671 = vmatprep.subr.bf16.mxu0 0
  %1672 = vmatpush1.bf16.msra.mxu0 %v1657
  %1673 = vmatprep.subr.bf16.mxu0 0
  %1674 = vmatpush1.bf16.msra.mxu0 0
  %1675 = vmatprep.subr.bf16.mxu0 0
  %1676 = vmatpush1.bf16.msra.mxu0 0
  %1677 = vmatprep.subr.bf16.mxu0 0
  %1678 = vmatpush1.bf16.msra.mxu0 0
  %1679 = vmatprep.subr.bf16.mxu0 0
  %1680 = vmatpush1.bf16.msra.mxu0 0
  %1681 = vmatprep.subr.bf16.mxu0 0
  %1682 = vmatpush1.bf16.msra.mxu0 0
  %1683 = vmatprep.subr.bf16.mxu0 0
  %1684 = vmatpush1.bf16.msra.mxu0 0
  %1685 = vmatprep.subr.bf16.mxu0 0
  %1686 = vmatpush1.bf16.msra.mxu0 0
  %1687 = vmatprep.subr.bf16.mxu0 0
  %1688 = vmatpush1.bf16.msra.mxu0 0
  %1689 = vmatprep.subr.bf16.mxu0 0
  %1690 = vmatpush1.bf16.msra.mxu0 0
  %1691 = vmatprep.subr.bf16.mxu0 0
  %1692 = vmatpush1.bf16.msra.mxu0 0
  %1693 = vmatprep.subr.bf16.mxu0 0
  %1694 = vmatpush1.bf16.msra.mxu0 0
  %1695 = vmatprep.subr.bf16.mxu0 0
  %1696 = vmatpush1.bf16.msra.mxu0 0
  %1697 = vmatprep.subr.bf16.mxu0 0
  %1698 = vmatpush1.bf16.msra.mxu0 0
  %1699 = vmatprep.subr.bf16.mxu0 0
  %1700 = vmatpush1.bf16.msra.mxu0 0
  %1701 = vmatprep.mubr.bf16.mxu0 0
  %1702 = vmatmul.mubr.bf16.gmra.mrb[0].mxu0 %v1661
  %v1703 = vpop.f32.mrb[0].mxu0
  %v1704 = vadd.f32 %v1647, %v1703
  %v1705 = vpop.f32.mrb[0].mxu0
  %v1706 = vpop.f32.mrb[0].mxu0
  %v1707 = vadd.f32 %v1647, %v1706
  %v1708 = vpop.f32.mrb[0].mxu0
  %1709 = vmatprep.mubr.bf16.mxu0 0
  %1710 = vmatmul.mubr.bf16.gmra.mrb[0].mxu0 %v1664
  %v1711 = vpop.f32.mrb[0].mxu0
  %v1712 = vadd.f32 %v1647, %v1711
  %v1713 = vpop.f32.mrb[0].mxu0
  %v1714 = vpop.f32.mrb[0].mxu0
  %v1715 = vadd.f32 %v1647, %v1714
  %v1716 = vpop.f32.mrb[0].mxu0
  %1717 = vmatprep.mubr.bf16.mxu0 0
  %1718 = vmatmul.mubr.bf16.gmra.mrb[0].mxu0 %v1667
  %v1719 = vpop.f32.mrb[0].mxu0
  %v1720 = vadd.f32 %v1647, %v1719
  %v1721 = vpop.f32.mrb[0].mxu0
  %v1722 = vpop.f32.mrb[0].mxu0
  %v1723 = vadd.f32 %v1647, %v1722
  %v1724 = vpop.f32.mrb[0].mxu0
  %1725 = vdwg.mxu0
  %s1726 = scalar_lea.vmem %s5, 16
  %v1727 = vld [vmem:[%s1726] sm:$0xf]
  %v1728 = vld [vmem:[%s1726 + $0x4] sm:$0xf]
  %v1729 = vld [vmem:[%s1726 + $0x8] sm:$0xf]
  %v1730 = vld [vmem:[%s1726 + $0xc] sm:$0xf]
  %v1731 = vpack.c.bf16 %v1707, %v1704
  %v1732 = vpack.c.bf16 %v1715, %v1712
  %v1733 = vpack.c.bf16 %v1723, %v1720
  %1737 = vrot.lane.b32.xlu0 %v1731, 96
  %v1738 = vpop.permute.xlu0 %1737
  %1739 = vrot.lane.b32.xlu0 %v1732, 96
  %v1740 = vpop.permute.xlu0 %1739
  %1741 = vrot.lane.b32.xlu0 %v1733, 96
  %v1742 = vpop.permute.xlu0 %1741
  %v1744 = vsel %vm507, %v1731, 0
  %v1747 = vsel %vm507, %v1732, 0
  %v1750 = vsel %vm507, %v1733, 0
  %v1753 = vsel %vm507, %v1738, 0
  %v1756 = vsel %vm507, %v1740, 0
  %v1759 = vsel %vm507, %v1742, 0
  %1761 = vmatprep.subr.bf16.mxu0 0
  %1762 = vmatpush1.bf16.xpose.msra.mxu0 %v1753
  %1763 = vmatprep.subr.bf16.mxu0 0
  %1764 = vmatpush1.bf16.xpose.msra.mxu0 %v1756
  %1765 = vmatprep.subr.bf16.mxu0 0
  %1766 = vmatpush1.bf16.xpose.msra.mxu0 %v1759
  %1767 = vmatprep.subr.bf16.mxu0 0
  %1768 = vmatpush1.bf16.xpose.msra.mxu0 0
  %1769 = vmatprep.subr.bf16.mxu0 0
  %1770 = vmatpush1.bf16.xpose.msra.mxu0 0
  %1771 = vmatprep.subr.bf16.mxu0 0
  %1772 = vmatpush1.bf16.xpose.msra.mxu0 0
  %1773 = vmatprep.subr.bf16.mxu0 0
  %1774 = vmatpush1.bf16.xpose.msra.mxu0 0
  %1775 = vmatprep.subr.bf16.mxu0 0
  %1776 = vmatpush1.bf16.xpose.msra.mxu0 0
  %1777 = vmatprep.subr.bf16.mxu0 0
  %1778 = vmatpush1.bf16.xpose.msra.mxu0 0
  %1779 = vmatprep.subr.bf16.mxu0 0
  %1780 = vmatpush1.bf16.xpose.msra.mxu0 0
  %1781 = vmatprep.subr.bf16.mxu0 0
  %1782 = vmatpush1.bf16.xpose.msra.mxu0 0
  %1783 = vmatprep.subr.bf16.mxu0 0
  %1784 = vmatpush1.bf16.xpose.msra.mxu0 0
  %1785 = vmatprep.subr.bf16.mxu0 0
  %1786 = vmatpush1.bf16.xpose.msra.mxu0 0
  %1787 = vmatprep.subr.bf16.mxu0 0
  %1788 = vmatpush1.bf16.xpose.msra.mxu0 0
  %1789 = vmatprep.subr.bf16.mxu0 0
  %1790 = vmatpush1.bf16.xpose.msra.mxu0 0
  %1791 = vmatprep.subr.bf16.mxu0 0
  %1792 = vmatpush1.bf16.xpose.msra.mxu0 0
  %1793 = vmatprep.mubr.bf16.mxu0 0
  %1794 = vmatmul.mubr.bf16.gmra.mrb[0].mxu0 %v1744
  %v1795 = vpop.f32.mrb[0].mxu0
  %v1796 = vadd.f32 0.0, %v1795
  %v1797 = vpop.f32.mrb[0].mxu0
  %v1798 = vpop.f32.mrb[0].mxu0
  %v1799 = vadd.f32 0.0, %v1798
  %v1800 = vpop.f32.mrb[0].mxu0
  %1801 = vmatprep.mubr.bf16.mxu0 0
  %1802 = vmatmul.mubr.bf16.gmra.mrb[0].mxu0 %v1747
  %v1803 = vpop.f32.mrb[0].mxu0
  %v1804 = vadd.f32 0.0, %v1803
  %v1805 = vpop.f32.mrb[0].mxu0
  %v1806 = vpop.f32.mrb[0].mxu0
  %v1807 = vadd.f32 0.0, %v1806
  %v1808 = vpop.f32.mrb[0].mxu0
  %1809 = vmatprep.mubr.bf16.mxu0 0
  %1810 = vmatmul.mubr.bf16.gmra.mrb[0].mxu0 %v1750
  %v1811 = vpop.f32.mrb[0].mxu0
  %v1812 = vadd.f32 0.0, %v1811
  %v1813 = vpop.f32.mrb[0].mxu0
  %v1814 = vpop.f32.mrb[0].mxu0
  %v1815 = vadd.f32 0.0, %v1814
  %v1816 = vpop.f32.mrb[0].mxu0
  %1817 = vdwg.mxu0
  %v1818 = vmul.f32 %v1796, 0.25
  %v1819 = vmul.f32 %v1799, 0.25
  %v1820 = vmul.f32 %v1804, 0.25
  %v1821 = vmul.f32 %v1807, 0.25
  %v1822 = vmul.f32 %v1812, 0.25
  %v1823 = vmul.f32 %v1815, 0.25
  %v1824 = vadd.f32 %v1818, %v295
  %v1825 = vadd.f32 %v1819, %v296
  %v1826 = vadd.f32 %v1820, %v297
  %v1827 = vadd.f32 %v1821, %v298
  %v1828 = vadd.f32 %v1822, %v299
  %v1829 = vadd.f32 %v1823, %v300
  %v1830 = vsel %vm595, %v1824, -inf
  %1831 = vmax.xlane.f32.xlu0 %v1830
  %v1832 = vpop.xlane.xlu0 %1831
  %v1833 = vsel %vm595, %v1825, -inf
  %1834 = vmax.xlane.f32.xlu0 %v1833
  %v1835 = vpop.xlane.xlu0 %1834
  %v1836 = vsel %vm595, %v1826, -inf
  %1837 = vmax.xlane.f32.xlu0 %v1836
  %v1838 = vpop.xlane.xlu0 %1837
  %v1839 = vsel %vm595, %v1827, -inf
  %1840 = vmax.xlane.f32.xlu0 %v1839
  %v1841 = vpop.xlane.xlu0 %1840
  %v1842 = vsel %vm595, %v1828, -inf
  %1843 = vmax.xlane.f32.xlu0 %v1842
  %v1844 = vpop.xlane.xlu0 %1843
  %v1845 = vsel %vm595, %v1829, -inf
  %1846 = vmax.xlane.f32.xlu0 %v1845
  %v1847 = vpop.xlane.xlu0 %1846
  %v1848 = vsub.f32 %v1824, %v1832
  %v1849 = vsub.f32 %v1825, %v1835
  %v1850 = vsub.f32 %v1826, %v1838
  %v1851 = vsub.f32 %v1827, %v1841
  %v1852 = vsub.f32 %v1828, %v1844
  %v1853 = vsub.f32 %v1829, %v1847
  %v1854 = vmul.f32 %v1848, 1.442695
  %v1855 = vpow.pop %v1854
  %v1856 = vmul.f32 %v1849, 1.442695
  %v1857 = vpow.pop %v1856
  %v1858 = vmul.f32 %v1850, 1.442695
  %v1859 = vpow.pop %v1858
  %v1860 = vmul.f32 %v1851, 1.442695
  %v1861 = vpow.pop %v1860
  %v1862 = vmul.f32 %v1852, 1.442695
  %v1863 = vpow.pop %v1862
  %v1864 = vmul.f32 %v1853, 1.442695
  %v1865 = vpow.pop %v1864
  %v1866 = vsel %vm595, %v1855, 0.0
  %1867 = vadd.xlane.f32.xlu0 %v1866
  %v1868 = vpop.xlane.xlu0 %1867
  %v1869 = vsel %vm595, %v1857, 0.0
  %1870 = vadd.xlane.f32.xlu0 %v1869
  %v1871 = vpop.xlane.xlu0 %1870
  %v1872 = vsel %vm595, %v1859, 0.0
  %1873 = vadd.xlane.f32.xlu0 %v1872
  %v1874 = vpop.xlane.xlu0 %1873
  %v1875 = vsel %vm595, %v1861, 0.0
  %1876 = vadd.xlane.f32.xlu0 %v1875
  %v1877 = vpop.xlane.xlu0 %1876
  %v1878 = vsel %vm595, %v1863, 0.0
  %1879 = vadd.xlane.f32.xlu0 %v1878
  %v1880 = vpop.xlane.xlu0 %1879
  %v1881 = vsel %vm595, %v1865, 0.0
  %1882 = vadd.xlane.f32.xlu0 %v1881
  %v1883 = vpop.xlane.xlu0 %1882
  %v1884 = vrcp.pop %v1868
  %v1885 = vmul.f32 %v1855, %v1884
  %v1886 = vrcp.pop %v1871
  %v1887 = vmul.f32 %v1857, %v1886
  %v1888 = vrcp.pop %v1874
  %v1889 = vmul.f32 %v1859, %v1888
  %v1890 = vrcp.pop %v1877
  %v1891 = vmul.f32 %v1861, %v1890
  %v1892 = vrcp.pop %v1880
  %v1893 = vmul.f32 %v1863, %v1892
  %v1894 = vrcp.pop %v1883
  %v1895 = vmul.f32 %v1865, %v1894
  %v1896 = vpack.c.bf16 %v1887, %v1885
  %v1897 = vpack.c.bf16 %v1891, %v1889
  %v1898 = vpack.c.bf16 %v1895, %v1893
  %1899 = vrot.lane.b32.xlu0 %v1731, 64
  %v1900 = vpop.permute.xlu0 %1899
  %1901 = vrot.lane.b32.xlu0 %v1732, 64
  %v1902 = vpop.permute.xlu0 %1901
  %1903 = vrot.lane.b32.xlu0 %v1733, 64
  %v1904 = vpop.permute.xlu0 %1903
  %v1909 = vsel %vm595, %v1896, 0
  %v1912 = vsel %vm595, %v1897, 0
  %v1915 = vsel %vm595, %v1898, 0
  %1917 = vmatprep.subr.bf16.mxu0 0
  %1918 = vmatpush1.bf16.msra.mxu0 %v1900
  %1919 = vmatprep.subr.bf16.mxu0 0
  %1920 = vmatpush1.bf16.msra.mxu0 %v1902
  %1921 = vmatprep.subr.bf16.mxu0 0
  %1922 = vmatpush1.bf16.msra.mxu0 %v1904
  %1923 = vmatprep.subr.bf16.mxu0 0
  %1924 = vmatpush1.bf16.msra.mxu0 0
  %1925 = vmatprep.subr.bf16.mxu0 0
  %1926 = vmatpush1.bf16.msra.mxu0 0
  %1927 = vmatprep.subr.bf16.mxu0 0
  %1928 = vmatpush1.bf16.msra.mxu0 0
  %1929 = vmatprep.subr.bf16.mxu0 0
  %1930 = vmatpush1.bf16.msra.mxu0 0
  %1931 = vmatprep.subr.bf16.mxu0 0
  %1932 = vmatpush1.bf16.msra.mxu0 0
  %1933 = vmatprep.subr.bf16.mxu0 0
  %1934 = vmatpush1.bf16.msra.mxu0 0
  %1935 = vmatprep.subr.bf16.mxu0 0
  %1936 = vmatpush1.bf16.msra.mxu0 0
  %1937 = vmatprep.subr.bf16.mxu0 0
  %1938 = vmatpush1.bf16.msra.mxu0 0
  %1939 = vmatprep.subr.bf16.mxu0 0
  %1940 = vmatpush1.bf16.msra.mxu0 0
  %1941 = vmatprep.subr.bf16.mxu0 0
  %1942 = vmatpush1.bf16.msra.mxu0 0
  %1943 = vmatprep.subr.bf16.mxu0 0
  %1944 = vmatpush1.bf16.msra.mxu0 0
  %1945 = vmatprep.subr.bf16.mxu0 0
  %1946 = vmatpush1.bf16.msra.mxu0 0
  %1947 = vmatprep.subr.bf16.mxu0 0
  %1948 = vmatpush1.bf16.msra.mxu0 0
  %1949 = vmatprep.mubr.bf16.mxu0 0
  %1950 = vmatmul.mubr.bf16.gmra.mrb[0].mxu0 %v1909
  %v1951 = vpop.f32.mrb[0].mxu0
  %v1952 = vadd.f32 0.0, %v1951
  %v1953 = vpop.f32.mrb[0].mxu0
  %v1954 = vpop.f32.mrb[0].mxu0
  %v1955 = vadd.f32 0.0, %v1954
  %v1956 = vpop.f32.mrb[0].mxu0
  %1957 = vmatprep.mubr.bf16.mxu0 0
  %1958 = vmatmul.mubr.bf16.gmra.mrb[0].mxu0 %v1912
  %v1959 = vpop.f32.mrb[0].mxu0
  %v1960 = vadd.f32 0.0, %v1959
  %v1961 = vpop.f32.mrb[0].mxu0
  %v1962 = vpop.f32.mrb[0].mxu0
  %v1963 = vadd.f32 0.0, %v1962
  %v1964 = vpop.f32.mrb[0].mxu0
  %1965 = vmatprep.mubr.bf16.mxu0 0
  %1966 = vmatmul.mubr.bf16.gmra.mrb[0].mxu0 %v1915
  %v1967 = vpop.f32.mrb[0].mxu0
  %v1968 = vadd.f32 0.0, %v1967
  %v1969 = vpop.f32.mrb[0].mxu0
  %v1970 = vpop.f32.mrb[0].mxu0
  %v1971 = vadd.f32 0.0, %v1970
  %v1972 = vpop.f32.mrb[0].mxu0
  %1973 = vdwg.mxu0
  %v1974 = vpack.c.bf16 %v1955, %v1952
  %v1975 = vpack.c.bf16 %v1963, %v1960
  %v1976 = vpack.c.bf16 %v1971, %v1968
  %1977 = vrot.lane.b32.xlu0 %v1731, 112
  %v1978 = vpop.permute.xlu0 %1977
  %1979 = vrot.lane.b32.xlu0 %v1732, 112
  %v1980 = vpop.permute.xlu0 %1979
  %1981 = vrot.lane.b32.xlu0 %v1733, 112
  %v1982 = vpop.permute.xlu0 %1981
  %1983 = vrot.lane.b32.xlu0 %v1731, 80
  %v1984 = vpop.permute.xlu0 %1983
  %1985 = vrot.lane.b32.xlu0 %v1732, 80
  %v1986 = vpop.permute.xlu0 %1985
  %1987 = vrot.lane.b32.xlu0 %v1733, 80
  %v1988 = vpop.permute.xlu0 %1987
  %v1990 = vsel %vm507, %v1978, 0
  %v1993 = vsel %vm507, %v1980, 0
  %v1996 = vsel %vm507, %v1982, 0
  %v1999 = vsel %vm507, %v1984, 0
  %v2002 = vsel %vm507, %v1986, 0
  %v2005 = vsel %vm507, %v1988, 0
  %2007 = vmatprep.subr.bf16.mxu0 0
  %2008 = vmatpush1.bf16.xpose.msra.mxu0 %v1999
  %2009 = vmatprep.subr.bf16.mxu0 0
  %2010 = vmatpush1.bf16.xpose.msra.mxu0 %v2002
  %2011 = vmatprep.subr.bf16.mxu0 0
  %2012 = vmatpush1.bf16.xpose.msra.mxu0 %v2005
  %2013 = vmatprep.subr.bf16.mxu0 0
  %2014 = vmatpush1.bf16.xpose.msra.mxu0 0
  %2015 = vmatprep.subr.bf16.mxu0 0
  %2016 = vmatpush1.bf16.xpose.msra.mxu0 0
  %2017 = vmatprep.subr.bf16.mxu0 0
  %2018 = vmatpush1.bf16.xpose.msra.mxu0 0
  %2019 = vmatprep.subr.bf16.mxu0 0
  %2020 = vmatpush1.bf16.xpose.msra.mxu0 0
  %2021 = vmatprep.subr.bf16.mxu0 0
  %2022 = vmatpush1.bf16.xpose.msra.mxu0 0
  %2023 = vmatprep.subr.bf16.mxu0 0
  %2024 = vmatpush1.bf16.xpose.msra.mxu0 0
  %2025 = vmatprep.subr.bf16.mxu0 0
  %2026 = vmatpush1.bf16.xpose.msra.mxu0 0
  %2027 = vmatprep.subr.bf16.mxu0 0
  %2028 = vmatpush1.bf16.xpose.msra.mxu0 0
  %2029 = vmatprep.subr.bf16.mxu0 0
  %2030 = vmatpush1.bf16.xpose.msra.mxu0 0
  %2031 = vmatprep.subr.bf16.mxu0 0
  %2032 = vmatpush1.bf16.xpose.msra.mxu0 0
  %2033 = vmatprep.subr.bf16.mxu0 0
  %2034 = vmatpush1.bf16.xpose.msra.mxu0 0
  %2035 = vmatprep.subr.bf16.mxu0 0
  %2036 = vmatpush1.bf16.xpose.msra.mxu0 0
  %2037 = vmatprep.subr.bf16.mxu0 0
  %2038 = vmatpush1.bf16.xpose.msra.mxu0 0
  %2039 = vmatprep.mubr.bf16.mxu0 0
  %2040 = vmatmul.mubr.bf16.gmra.mrb[0].mxu0 %v1990
  %v2041 = vpop.f32.mrb[0].mxu0
  %v2042 = vadd.f32 0.0, %v2041
  %v2043 = vpop.f32.mrb[0].mxu0
  %v2044 = vpop.f32.mrb[0].mxu0
  %v2045 = vadd.f32 0.0, %v2044
  %v2046 = vpop.f32.mrb[0].mxu0
  %2047 = vmatprep.mubr.bf16.mxu0 0
  %2048 = vmatmul.mubr.bf16.gmra.mrb[0].mxu0 %v1993
  %v2049 = vpop.f32.mrb[0].mxu0
  %v2050 = vadd.f32 0.0, %v2049
  %v2051 = vpop.f32.mrb[0].mxu0
  %v2052 = vpop.f32.mrb[0].mxu0
  %v2053 = vadd.f32 0.0, %v2052
  %v2054 = vpop.f32.mrb[0].mxu0
  %2055 = vmatprep.mubr.bf16.mxu0 0
  %2056 = vmatmul.mubr.bf16.gmra.mrb[0].mxu0 %v1996
  %v2057 = vpop.f32.mrb[0].mxu0
  %v2058 = vadd.f32 0.0, %v2057
  %v2059 = vpop.f32.mrb[0].mxu0
  %v2060 = vpop.f32.mrb[0].mxu0
  %v2061 = vadd.f32 0.0, %v2060
  %v2062 = vpop.f32.mrb[0].mxu0
  %2063 = vdwg.mxu0
  %v2064 = vmul.f32 %v2042, 0.25
  %v2065 = vmul.f32 %v2045, 0.25
  %v2066 = vmul.f32 %v2050, 0.25
  %v2067 = vmul.f32 %v2053, 0.25
  %v2068 = vmul.f32 %v2058, 0.25
  %v2069 = vmul.f32 %v2061, 0.25
  %v2070 = vadd.f32 %v2064, %v295
  %v2071 = vadd.f32 %v2065, %v296
  %v2072 = vadd.f32 %v2066, %v297
  %v2073 = vadd.f32 %v2067, %v298
  %v2074 = vadd.f32 %v2068, %v299
  %v2075 = vadd.f32 %v2069, %v300
  %v2076 = vsel %vm595, %v2070, -inf
  %2077 = vmax.xlane.f32.xlu0 %v2076
  %v2078 = vpop.xlane.xlu0 %2077
  %v2079 = vsel %vm595, %v2071, -inf
  %2080 = vmax.xlane.f32.xlu0 %v2079
  %v2081 = vpop.xlane.xlu0 %2080
  %v2082 = vsel %vm595, %v2072, -inf
  %2083 = vmax.xlane.f32.xlu0 %v2082
  %v2084 = vpop.xlane.xlu0 %2083
  %v2085 = vsel %vm595, %v2073, -inf
  %2086 = vmax.xlane.f32.xlu0 %v2085
  %v2087 = vpop.xlane.xlu0 %2086
  %v2088 = vsel %vm595, %v2074, -inf
  %2089 = vmax.xlane.f32.xlu0 %v2088
  %v2090 = vpop.xlane.xlu0 %2089
  %v2091 = vsel %vm595, %v2075, -inf
  %2092 = vmax.xlane.f32.xlu0 %v2091
  %v2093 = vpop.xlane.xlu0 %2092
  %v2094 = vsub.f32 %v2070, %v2078
  %v2095 = vsub.f32 %v2071, %v2081
  %v2096 = vsub.f32 %v2072, %v2084
  %v2097 = vsub.f32 %v2073, %v2087
  %v2098 = vsub.f32 %v2074, %v2090
  %v2099 = vsub.f32 %v2075, %v2093
  %v2100 = vmul.f32 %v2094, 1.442695
  %v2101 = vpow.pop %v2100
  %v2102 = vmul.f32 %v2095, 1.442695
  %v2103 = vpow.pop %v2102
  %v2104 = vmul.f32 %v2096, 1.442695
  %v2105 = vpow.pop %v2104
  %v2106 = vmul.f32 %v2097, 1.442695
  %v2107 = vpow.pop %v2106
  %v2108 = vmul.f32 %v2098, 1.442695
  %v2109 = vpow.pop %v2108
  %v2110 = vmul.f32 %v2099, 1.442695
  %v2111 = vpow.pop %v2110
  %v2112 = vsel %vm595, %v2101, 0.0
  %2113 = vadd.xlane.f32.xlu0 %v2112
  %v2114 = vpop.xlane.xlu0 %2113
  %v2115 = vsel %vm595, %v2103, 0.0
  %2116 = vadd.xlane.f32.xlu0 %v2115
  %v2117 = vpop.xlane.xlu0 %2116
  %v2118 = vsel %vm595, %v2105, 0.0
  %2119 = vadd.xlane.f32.xlu0 %v2118
  %v2120 = vpop.xlane.xlu0 %2119
  %v2121 = vsel %vm595, %v2107, 0.0
  %2122 = vadd.xlane.f32.xlu0 %v2121
  %v2123 = vpop.xlane.xlu0 %2122
  %v2124 = vsel %vm595, %v2109, 0.0
  %2125 = vadd.xlane.f32.xlu0 %v2124
  %v2126 = vpop.xlane.xlu0 %2125
  %v2127 = vsel %vm595, %v2111, 0.0
  %2128 = vadd.xlane.f32.xlu0 %v2127
  %v2129 = vpop.xlane.xlu0 %2128
  %v2130 = vrcp.pop %v2114
  %v2131 = vmul.f32 %v2101, %v2130
  %v2132 = vrcp.pop %v2117
  %v2133 = vmul.f32 %v2103, %v2132
  %v2134 = vrcp.pop %v2120
  %v2135 = vmul.f32 %v2105, %v2134
  %v2136 = vrcp.pop %v2123
  %v2137 = vmul.f32 %v2107, %v2136
  %v2138 = vrcp.pop %v2126
  %v2139 = vmul.f32 %v2109, %v2138
  %v2140 = vrcp.pop %v2129
  %v2141 = vmul.f32 %v2111, %v2140
  %v2142 = vpack.c.bf16 %v2133, %v2131
  %v2143 = vpack.c.bf16 %v2137, %v2135
  %v2144 = vpack.c.bf16 %v2141, %v2139
  %2145 = vrot.lane.b32.xlu0 %v1731, 48
  %v2146 = vpop.permute.xlu0 %2145
  %2147 = vrot.lane.b32.xlu0 %v1732, 48
  %v2148 = vpop.permute.xlu0 %2147
  %2149 = vrot.lane.b32.xlu0 %v1733, 48
  %v2150 = vpop.permute.xlu0 %2149
  %v2155 = vsel %vm595, %v2142, 0
  %v2158 = vsel %vm595, %v2143, 0
  %v2161 = vsel %vm595, %v2144, 0
  %2163 = vmatprep.subr.bf16.mxu0 0
  %2164 = vmatpush1.bf16.msra.mxu0 %v2146
  %2165 = vmatprep.subr.bf16.mxu0 0
  %2166 = vmatpush1.bf16.msra.mxu0 %v2148
  %2167 = vmatprep.subr.bf16.mxu0 0
  %2168 = vmatpush1.bf16.msra.mxu0 %v2150
  %2169 = vmatprep.subr.bf16.mxu0 0
  %2170 = vmatpush1.bf16.msra.mxu0 0
  %2171 = vmatprep.subr.bf16.mxu0 0
  %2172 = vmatpush1.bf16.msra.mxu0 0
  %2173 = vmatprep.subr.bf16.mxu0 0
  %2174 = vmatpush1.bf16.msra.mxu0 0
  %2175 = vmatprep.subr.bf16.mxu0 0
  %2176 = vmatpush1.bf16.msra.mxu0 0
  %2177 = vmatprep.subr.bf16.mxu0 0
  %2178 = vmatpush1.bf16.msra.mxu0 0
  %2179 = vmatprep.subr.bf16.mxu0 0
  %2180 = vmatpush1.bf16.msra.mxu0 0
  %2181 = vmatprep.subr.bf16.mxu0 0
  %2182 = vmatpush1.bf16.msra.mxu0 0
  %2183 = vmatprep.subr.bf16.mxu0 0
  %2184 = vmatpush1.bf16.msra.mxu0 0
  %2185 = vmatprep.subr.bf16.mxu0 0
  %2186 = vmatpush1.bf16.msra.mxu0 0
  %2187 = vmatprep.subr.bf16.mxu0 0
  %2188 = vmatpush1.bf16.msra.mxu0 0
  %2189 = vmatprep.subr.bf16.mxu0 0
  %2190 = vmatpush1.bf16.msra.mxu0 0
  %2191 = vmatprep.subr.bf16.mxu0 0
  %2192 = vmatpush1.bf16.msra.mxu0 0
  %2193 = vmatprep.subr.bf16.mxu0 0
  %2194 = vmatpush1.bf16.msra.mxu0 0
  %2195 = vmatprep.mubr.bf16.mxu0 0
  %2196 = vmatmul.mubr.bf16.gmra.mrb[0].mxu0 %v2155
  %v2197 = vpop.f32.mrb[0].mxu0
  %v2198 = vadd.f32 0.0, %v2197
  %v2199 = vpop.f32.mrb[0].mxu0
  %v2200 = vpop.f32.mrb[0].mxu0
  %v2201 = vadd.f32 0.0, %v2200
  %v2202 = vpop.f32.mrb[0].mxu0
  %2203 = vmatprep.mubr.bf16.mxu0 0
  %2204 = vmatmul.mubr.bf16.gmra.mrb[0].mxu0 %v2158
  %v2205 = vpop.f32.mrb[0].mxu0
  %v2206 = vadd.f32 0.0, %v2205
  %v2207 = vpop.f32.mrb[0].mxu0
  %v2208 = vpop.f32.mrb[0].mxu0
  %v2209 = vadd.f32 0.0, %v2208
  %v2210 = vpop.f32.mrb[0].mxu0
  %2211 = vmatprep.mubr.bf16.mxu0 0
  %2212 = vmatmul.mubr.bf16.gmra.mrb[0].mxu0 %v2161
  %v2213 = vpop.f32.mrb[0].mxu0
  %v2214 = vadd.f32 0.0, %v2213
  %v2215 = vpop.f32.mrb[0].mxu0
  %v2216 = vpop.f32.mrb[0].mxu0
  %v2217 = vadd.f32 0.0, %v2216
  %v2218 = vpop.f32.mrb[0].mxu0
  %2219 = vdwg.mxu0
  %v2220 = vpack.c.bf16 %v2201, %v2198
  %v2221 = vpack.c.bf16 %v2209, %v2206
  %v2222 = vpack.c.bf16 %v2217, %v2214
  %v2225 = vunpack.c.l.b16 %v1729
  %v2226 = vunpack.c.l.b16 %v1730
  %v2227 = vpack.c.b16 %v2226, %v2225
  %v2230 = vsel %vm507, %v2220, 0
  %v2233 = vsel %vm507, %v2221, 0
  %v2236 = vsel %vm507, %v2222, 0
  %2238 = vmatprep.subr.bf16.mxu0 0
  %2239 = vmatpush1.bf16.msra.mxu0 %v2227
  %2240 = vmatprep.subr.bf16.mxu0 0
  %2241 = vmatpush1.bf16.msra.mxu0 0
  %2242 = vmatprep.subr.bf16.mxu0 0
  %2243 = vmatpush1.bf16.msra.mxu0 0
  %2244 = vmatprep.subr.bf16.mxu0 0
  %2245 = vmatpush1.bf16.msra.mxu0 0
  %2246 = vmatprep.subr.bf16.mxu0 0
  %2247 = vmatpush1.bf16.msra.mxu0 0
  %2248 = vmatprep.subr.bf16.mxu0 0
  %2249 = vmatpush1.bf16.msra.mxu0 0
  %2250 = vmatprep.subr.bf16.mxu0 0
  %2251 = vmatpush1.bf16.msra.mxu0 0
  %2252 = vmatprep.subr.bf16.mxu0 0
  %2253 = vmatpush1.bf16.msra.mxu0 0
  %2254 = vmatprep.subr.bf16.mxu0 0
  %2255 = vmatpush1.bf16.msra.mxu0 0
  %2256 = vmatprep.subr.bf16.mxu0 0
  %2257 = vmatpush1.bf16.msra.mxu0 0
  %2258 = vmatprep.subr.bf16.mxu0 0
  %2259 = vmatpush1.bf16.msra.mxu0 0
  %2260 = vmatprep.subr.bf16.mxu0 0
  %2261 = vmatpush1.bf16.msra.mxu0 0
  %2262 = vmatprep.subr.bf16.mxu0 0
  %2263 = vmatpush1.bf16.msra.mxu0 0
  %2264 = vmatprep.subr.bf16.mxu0 0
  %2265 = vmatpush1.bf16.msra.mxu0 0
  %2266 = vmatprep.subr.bf16.mxu0 0
  %2267 = vmatpush1.bf16.msra.mxu0 0
  %2268 = vmatprep.subr.bf16.mxu0 0
  %2269 = vmatpush1.bf16.msra.mxu0 0
  %2270 = vmatprep.mubr.bf16.mxu0 0
  %2271 = vmatmul.mubr.bf16.gmra.mrb[0].mxu0 %v2230
  %v2272 = vpop.f32.mrb[0].mxu0
  %v2273 = vadd.f32 0.0, %v2272
  %v2274 = vpop.f32.mrb[0].mxu0
  %v2275 = vpop.f32.mrb[0].mxu0
  %v2276 = vadd.f32 0.0, %v2275
  %v2277 = vpop.f32.mrb[0].mxu0
  %2278 = vmatprep.mubr.bf16.mxu0 0
  %2279 = vmatmul.mubr.bf16.gmra.mrb[0].mxu0 %v2233
  %v2280 = vpop.f32.mrb[0].mxu0
  %v2281 = vadd.f32 0.0, %v2280
  %v2282 = vpop.f32.mrb[0].mxu0
  %v2283 = vpop.f32.mrb[0].mxu0
  %v2284 = vadd.f32 0.0, %v2283
  %v2285 = vpop.f32.mrb[0].mxu0
  %2286 = vmatprep.mubr.bf16.mxu0 0
  %2287 = vmatmul.mubr.bf16.gmra.mrb[0].mxu0 %v2236
  %v2288 = vpop.f32.mrb[0].mxu0
  %v2289 = vadd.f32 0.0, %v2288
  %v2290 = vpop.f32.mrb[0].mxu0
  %v2291 = vpop.f32.mrb[0].mxu0
  %v2292 = vadd.f32 0.0, %v2291
  %v2293 = vpop.f32.mrb[0].mxu0
  %2294 = vdwg.mxu0
  %v2297 = vunpack.c.l.b16 %v1727
  %v2298 = vunpack.c.l.b16 %v1728
  %v2299 = vpack.c.b16 %v2298, %v2297
  %v2302 = vsel %vm507, %v1974, 0
  %v2305 = vsel %vm507, %v1975, 0
  %v2308 = vsel %vm507, %v1976, 0
  %2310 = vmatprep.subr.bf16.mxu0 0
  %2311 = vmatpush1.bf16.msra.mxu0 %v2299
  %2312 = vmatprep.subr.bf16.mxu0 0
  %2313 = vmatpush1.bf16.msra.mxu0 0
  %2314 = vmatprep.subr.bf16.mxu0 0
  %2315 = vmatpush1.bf16.msra.mxu0 0
  %2316 = vmatprep.subr.bf16.mxu0 0
  %2317 = vmatpush1.bf16.msra.mxu0 0
  %2318 = vmatprep.subr.bf16.mxu0 0
  %2319 = vmatpush1.bf16.msra.mxu0 0
  %2320 = vmatprep.subr.bf16.mxu0 0
  %2321 = vmatpush1.bf16.msra.mxu0 0
  %2322 = vmatprep.subr.bf16.mxu0 0
  %2323 = vmatpush1.bf16.msra.mxu0 0
  %2324 = vmatprep.subr.bf16.mxu0 0
  %2325 = vmatpush1.bf16.msra.mxu0 0
  %2326 = vmatprep.subr.bf16.mxu0 0
  %2327 = vmatpush1.bf16.msra.mxu0 0
  %2328 = vmatprep.subr.bf16.mxu0 0
  %2329 = vmatpush1.bf16.msra.mxu0 0
  %2330 = vmatprep.subr.bf16.mxu0 0
  %2331 = vmatpush1.bf16.msra.mxu0 0
  %2332 = vmatprep.subr.bf16.mxu0 0
  %2333 = vmatpush1.bf16.msra.mxu0 0
  %2334 = vmatprep.subr.bf16.mxu0 0
  %2335 = vmatpush1.bf16.msra.mxu0 0
  %2336 = vmatprep.subr.bf16.mxu0 0
  %2337 = vmatpush1.bf16.msra.mxu0 0
  %2338 = vmatprep.subr.bf16.mxu0 0
  %2339 = vmatpush1.bf16.msra.mxu0 0
  %2340 = vmatprep.subr.bf16.mxu0 0
  %2341 = vmatpush1.bf16.msra.mxu0 0
  %2342 = vmatprep.mubr.bf16.mxu0 0
  %2343 = vmatmul.mubr.bf16.gmra.mrb[0].mxu0 %v2302
  %v2344 = vpop.f32.mrb[0].mxu0
  %v2345 = vadd.f32 %v2273, %v2344
  %v2346 = vpop.f32.mrb[0].mxu0
  %v2347 = vpop.f32.mrb[0].mxu0
  %v2348 = vadd.f32 %v2276, %v2347
  %v2349 = vpop.f32.mrb[0].mxu0
  %2350 = vmatprep.mubr.bf16.mxu0 0
  %2351 = vmatmul.mubr.bf16.gmra.mrb[0].mxu0 %v2305
  %v2352 = vpop.f32.mrb[0].mxu0
  %v2353 = vadd.f32 %v2281, %v2352
  %v2354 = vpop.f32.mrb[0].mxu0
  %v2355 = vpop.f32.mrb[0].mxu0
  %v2356 = vadd.f32 %v2284, %v2355
  %v2357 = vpop.f32.mrb[0].mxu0
  %2358 = vmatprep.mubr.bf16.mxu0 0
  %2359 = vmatmul.mubr.bf16.gmra.mrb[0].mxu0 %v2308
  %v2360 = vpop.f32.mrb[0].mxu0
  %v2361 = vadd.f32 %v2289, %v2360
  %v2362 = vpop.f32.mrb[0].mxu0
  %v2363 = vpop.f32.mrb[0].mxu0
  %v2364 = vadd.f32 %v2292, %v2363
  %v2365 = vpop.f32.mrb[0].mxu0
  %2366 = vdwg.mxu0
  %v2367 = vadd.f32 %v1529, %v2345
  %v2368 = vadd.f32 %v1530, %v2348
  %v2369 = vadd.f32 %v1531, %v2353
  %v2370 = vadd.f32 %v1532, %v2356
  %v2371 = vadd.f32 %v1533, %v2361
  %v2372 = vadd.f32 %v1534, %v2364
  %v2373 = vld [vmem:[%s3 + $0x10] sm:$0x1]
  %v2374 = vlaneseq
  %v2375 = vshrl.u32 %v2374, 7
  %v2376 = vsub.s32 0, %v2375
  %v2377 = vrot.slane %v2373, %v2376
  %v2378 = vadd.f32 %v2367, %v2377
  %v2379 = vadd.f32 %v2368, %v2377
  %v2380 = vadd.f32 %v2369, %v2377
  %v2381 = vadd.f32 %v2370, %v2377
  %v2382 = vadd.f32 %v2371, %v2377
  %v2383 = vadd.f32 %v2372, %v2377
  %v2384 = vld [vmem:[%s3 + $0x11] sm:$0x1]
  %v2385 = vld [vmem:[%s3 + $0x12] sm:$0x1]
  %v2386 = vsel %vm165, %v2378, 0.0
  %2387 = vadd.xlane.f32.xlu0 %v2386
  %v2388 = vpop.xlane.xlu0 %2387
  %v2389 = vsel %vm165, %v2379, 0.0
  %2390 = vadd.xlane.f32.xlu0 %v2389
  %v2391 = vpop.xlane.xlu0 %2390
  %v2392 = vsel %vm165, %v2380, 0.0
  %2393 = vadd.xlane.f32.xlu0 %v2392
  %v2394 = vpop.xlane.xlu0 %2393
  %v2395 = vsel %vm165, %v2381, 0.0
  %2396 = vadd.xlane.f32.xlu0 %v2395
  %v2397 = vpop.xlane.xlu0 %2396
  %v2398 = vsel %vm165, %v2382, 0.0
  %2399 = vadd.xlane.f32.xlu0 %v2398
  %v2400 = vpop.xlane.xlu0 %2399
  %v2401 = vsel %vm165, %v2383, 0.0
  %2402 = vadd.xlane.f32.xlu0 %v2401
  %v2403 = vpop.xlane.xlu0 %2402
  %v2404 = vmul.f32 %v2388, %v184
  %v2405 = vmul.f32 %v2391, %v184
  %v2406 = vmul.f32 %v2394, %v184
  %v2407 = vmul.f32 %v2397, %v184
  %v2408 = vmul.f32 %v2400, %v184
  %v2409 = vmul.f32 %v2403, %v184
  %v2410 = vsub.f32 %v2378, %v2404
  %v2411 = vsub.f32 %v2379, %v2405
  %v2412 = vsub.f32 %v2380, %v2406
  %v2413 = vsub.f32 %v2381, %v2407
  %v2414 = vsub.f32 %v2382, %v2408
  %v2415 = vsub.f32 %v2383, %v2409
  %v2416 = vmul.f32 %v2410, %v2410
  %v2417 = vmul.f32 %v2411, %v2411
  %v2418 = vmul.f32 %v2412, %v2412
  %v2419 = vmul.f32 %v2413, %v2413
  %v2420 = vmul.f32 %v2414, %v2414
  %v2421 = vmul.f32 %v2415, %v2415
  %v2422 = vsel %vm165, %v2416, 0.0
  %2423 = vadd.xlane.f32.xlu0 %v2422
  %v2424 = vpop.xlane.xlu0 %2423
  %v2425 = vsel %vm165, %v2417, 0.0
  %2426 = vadd.xlane.f32.xlu0 %v2425
  %v2427 = vpop.xlane.xlu0 %2426
  %v2428 = vsel %vm165, %v2418, 0.0
  %2429 = vadd.xlane.f32.xlu0 %v2428
  %v2430 = vpop.xlane.xlu0 %2429
  %v2431 = vsel %vm165, %v2419, 0.0
  %2432 = vadd.xlane.f32.xlu0 %v2431
  %v2433 = vpop.xlane.xlu0 %2432
  %v2434 = vsel %vm165, %v2420, 0.0
  %2435 = vadd.xlane.f32.xlu0 %v2434
  %v2436 = vpop.xlane.xlu0 %2435
  %v2437 = vsel %vm165, %v2421, 0.0
  %2438 = vadd.xlane.f32.xlu0 %v2437
  %v2439 = vpop.xlane.xlu0 %2438
  %v2440 = vmul.f32 %v2424, %v184
  %v2441 = vmul.f32 %v2427, %v184
  %v2442 = vmul.f32 %v2430, %v184
  %v2443 = vmul.f32 %v2433, %v184
  %v2444 = vmul.f32 %v2436, %v184
  %v2445 = vmul.f32 %v2439, %v184
  %v2446 = vadd.f32 %v2440, 1e-05
  %v2447 = vadd.f32 %v2441, 1e-05
  %v2448 = vadd.f32 %v2442, 1e-05
  %v2449 = vadd.f32 %v2443, 1e-05
  %v2450 = vadd.f32 %v2444, 1e-05
  %v2451 = vadd.f32 %v2445, 1e-05
  %v2452 = vrsqrt.pop %v2446
  %v2453 = vrsqrt.pop %v2447
  %v2454 = vrsqrt.pop %v2448
  %v2455 = vrsqrt.pop %v2449
  %v2456 = vrsqrt.pop %v2450
  %v2457 = vrsqrt.pop %v2451
  %v2458 = vmul.f32 %v2410, %v2452
  %v2459 = vmul.f32 %v2411, %v2453
  %v2460 = vmul.f32 %v2412, %v2454
  %v2461 = vmul.f32 %v2413, %v2455
  %v2462 = vmul.f32 %v2414, %v2456
  %v2463 = vmul.f32 %v2415, %v2457
  %v2464 = vlaneseq
  %v2465 = vshrl.u32 %v2464, 7
  %v2466 = vsub.s32 0, %v2465
  %v2467 = vrot.slane %v2384, %v2466
  %v2468 = vmul.f32 %v2458, %v2467
  %v2469 = vmul.f32 %v2459, %v2467
  %v2470 = vmul.f32 %v2460, %v2467
  %v2471 = vmul.f32 %v2461, %v2467
  %v2472 = vmul.f32 %v2462, %v2467
  %v2473 = vmul.f32 %v2463, %v2467
  %v2474 = vlaneseq
  %v2475 = vshrl.u32 %v2474, 7
  %v2476 = vsub.s32 0, %v2475
  %v2477 = vrot.slane %v2385, %v2476
  %v2478 = vadd.f32 %v2468, %v2477
  %v2479 = vadd.f32 %v2469, %v2477
  %v2480 = vadd.f32 %v2470, %v2477
  %v2481 = vadd.f32 %v2471, %v2477
  %v2482 = vadd.f32 %v2472, %v2477
  %v2483 = vadd.f32 %v2473, %v2477
  %s2484 = scalar_lea.vmem %s6, 16
  %v2485 = vld [vmem:[%s2484] sm:$0xf]
  %v2486 = vld [vmem:[%s2484 + $0x4] sm:$0xf]
  %v2487 = vld [vmem:[%s2484 + $0x8] sm:$0xf]
  %v2488 = vld [vmem:[%s2484 + $0xc] sm:$0xf]
  %v2489 = vpack.c.bf16 %v2479, %v2478
  %v2490 = vpack.c.bf16 %v2481, %v2480
  %v2491 = vpack.c.bf16 %v2483, %v2482
  %v2492 = vld [vmem:[%s3 + $0x13] sm:$0x1]
  %v2493 = vlaneseq
  %v2494 = vshrl.u32 %v2493, 7
  %v2495 = vsub.s32 0, %v2494
  %v2496 = vrot.slane %v2492, %v2495
  %v2501 = vunpack.c.l.b16 %v2485
  %v2502 = vunpack.c.l.b16 %v2486
  %v2503 = vunpack.c.l.b16 %v2487
  %v2504 = vunpack.c.l.b16 %v2488
  %v2505 = vpack.c.b16 %v2502, %v2501
  %v2506 = vpack.c.b16 %v2504, %v2503
  %v2510 = vsel %vm165, %v2489, 0
  %v2513 = vsel %vm165, %v2490, 0
  %v2516 = vsel %vm165, %v2491, 0
  %2518 = vmatprep.subr.bf16.mxu0 0
  %2519 = vmatpush1.bf16.msra.mxu0 %v2505
  %2520 = vmatprep.subr.bf16.mxu0 0
  %2521 = vmatpush1.bf16.msra.mxu0 %v2506
  %2522 = vmatprep.subr.bf16.mxu0 0
  %2523 = vmatpush1.bf16.msra.mxu0 0
  %2524 = vmatprep.subr.bf16.mxu0 0
  %2525 = vmatpush1.bf16.msra.mxu0 0
  %2526 = vmatprep.subr.bf16.mxu0 0
  %2527 = vmatpush1.bf16.msra.mxu0 0
  %2528 = vmatprep.subr.bf16.mxu0 0
  %2529 = vmatpush1.bf16.msra.mxu0 0
  %2530 = vmatprep.subr.bf16.mxu0 0
  %2531 = vmatpush1.bf16.msra.mxu0 0
  %2532 = vmatprep.subr.bf16.mxu0 0
  %2533 = vmatpush1.bf16.msra.mxu0 0
  %2534 = vmatprep.subr.bf16.mxu0 0
  %2535 = vmatpush1.bf16.msra.mxu0 0
  %2536 = vmatprep.subr.bf16.mxu0 0
  %2537 = vmatpush1.bf16.msra.mxu0 0
  %2538 = vmatprep.subr.bf16.mxu0 0
  %2539 = vmatpush1.bf16.msra.mxu0 0
  %2540 = vmatprep.subr.bf16.mxu0 0
  %2541 = vmatpush1.bf16.msra.mxu0 0
  %2542 = vmatprep.subr.bf16.mxu0 0
  %2543 = vmatpush1.bf16.msra.mxu0 0
  %2544 = vmatprep.subr.bf16.mxu0 0
  %2545 = vmatpush1.bf16.msra.mxu0 0
  %2546 = vmatprep.subr.bf16.mxu0 0
  %2547 = vmatpush1.bf16.msra.mxu0 0
  %2548 = vmatprep.subr.bf16.mxu0 0
  %2549 = vmatpush1.bf16.msra.mxu0 0
  %2550 = vmatprep.mubr.bf16.mxu0 0
  %2551 = vmatmul.mubr.bf16.gmra.mrb[0].mxu0 %v2510
  %v2552 = vpop.f32.mrb[0].mxu0
  %v2553 = vadd.f32 %v2496, %v2552
  %v2554 = vpop.f32.mrb[0].mxu0
  %v2555 = vpop.f32.mrb[0].mxu0
  %v2556 = vadd.f32 %v2496, %v2555
  %v2557 = vpop.f32.mrb[0].mxu0
  %2558 = vmatprep.mubr.bf16.mxu0 0
  %2559 = vmatmul.mubr.bf16.gmra.mrb[0].mxu0 %v2513
  %v2560 = vpop.f32.mrb[0].mxu0
  %v2561 = vadd.f32 %v2496, %v2560
  %v2562 = vpop.f32.mrb[0].mxu0
  %v2563 = vpop.f32.mrb[0].mxu0
  %v2564 = vadd.f32 %v2496, %v2563
  %v2565 = vpop.f32.mrb[0].mxu0
  %2566 = vmatprep.mubr.bf16.mxu0 0
  %2567 = vmatmul.mubr.bf16.gmra.mrb[0].mxu0 %v2516
  %v2568 = vpop.f32.mrb[0].mxu0
  %v2569 = vadd.f32 %v2496, %v2568
  %v2570 = vpop.f32.mrb[0].mxu0
  %v2571 = vpop.f32.mrb[0].mxu0
  %v2572 = vadd.f32 %v2496, %v2571
  %v2573 = vpop.f32.mrb[0].mxu0
  %2574 = vdwg.mxu0
  %v2575 = vmul.f32 %v2553, 0.5
  %v2576 = vmul.f32 %v2556, 0.5
  %v2577 = vmul.f32 %v2561, 0.5
  %v2578 = vmul.f32 %v2564, 0.5
  %v2579 = vmul.f32 %v2569, 0.5
  %v2580 = vmul.f32 %v2572, 0.5
  %v2581 = vmul.f32 %v2553, 0.044715
  %v2582 = vmul.f32 %v2556, 0.044715
  %v2583 = vmul.f32 %v2561, 0.044715
  %v2584 = vmul.f32 %v2564, 0.044715
  %v2585 = vmul.f32 %v2569, 0.044715
  %v2586 = vmul.f32 %v2572, 0.044715
  %v2587 = vmul.f32 %v2581, %v2553
  %v2588 = vmul.f32 %v2582, %v2556
  %v2589 = vmul.f32 %v2583, %v2561
  %v2590 = vmul.f32 %v2584, %v2564
  %v2591 = vmul.f32 %v2585, %v2569
  %v2592 = vmul.f32 %v2586, %v2572
  %v2593 = vmul.f32 %v2587, %v2553
  %v2594 = vmul.f32 %v2588, %v2556
  %v2595 = vmul.f32 %v2589, %v2561
  %v2596 = vmul.f32 %v2590, %v2564
  %v2597 = vmul.f32 %v2591, %v2569
  %v2598 = vmul.f32 %v2592, %v2572
  %v2599 = vadd.f32 %v2553, %v2593
  %v2600 = vadd.f32 %v2556, %v2594
  %v2601 = vadd.f32 %v2561, %v2595
  %v2602 = vadd.f32 %v2564, %v2596
  %v2603 = vadd.f32 %v2569, %v2597
  %v2604 = vadd.f32 %v2572, %v2598
  %v2605 = vmul.f32 %v2599, 0.7978846
  %v2606 = vmul.f32 %v2600, 0.7978846
  %v2607 = vmul.f32 %v2601, 0.7978846
  %v2608 = vmul.f32 %v2602, 0.7978846
  %v2609 = vmul.f32 %v2603, 0.7978846
  %v2610 = vmul.f32 %v2604, 0.7978846
  %v2611 = vtanh.pop %v2605
  %v2612 = vtanh.pop %v2606
  %v2613 = vtanh.pop %v2607
  %v2614 = vtanh.pop %v2608
  %v2615 = vtanh.pop %v2609
  %v2616 = vtanh.pop %v2610
  %v2617 = vadd.f32 %v2611, 1.0
  %v2618 = vadd.f32 %v2612, 1.0
  %v2619 = vadd.f32 %v2613, 1.0
  %v2620 = vadd.f32 %v2614, 1.0
  %v2621 = vadd.f32 %v2615, 1.0
  %v2622 = vadd.f32 %v2616, 1.0
  %v2623 = vmul.f32 %v2575, %v2617
  %v2624 = vmul.f32 %v2576, %v2618
  %v2625 = vmul.f32 %v2577, %v2619
  %v2626 = vmul.f32 %v2578, %v2620
  %v2627 = vmul.f32 %v2579, %v2621
  %v2628 = vmul.f32 %v2580, %v2622
  %s2629 = scalar_lea.vmem %s7, 64
  %v2630 = vld [vmem:[%s2629] sm:$0xf]
  %v2631 = vld [vmem:[%s2629 + $0x4] sm:$0xf]
  %v2632 = vld [vmem:[%s2629 + $0x8] sm:$0xf]
  %v2633 = vld [vmem:[%s2629 + $0xc] sm:$0xf]
  %v2634 = vld [vmem:[%s2629 + $0x10] sm:$0xf]
  %v2635 = vld [vmem:[%s2629 + $0x14] sm:$0xf]
  %v2636 = vld [vmem:[%s2629 + $0x18] sm:$0xf]
  %v2637 = vld [vmem:[%s2629 + $0x1c] sm:$0xf]
  %v2638 = vld [vmem:[%s2629 + $0x20] sm:$0xf]
  %v2639 = vld [vmem:[%s2629 + $0x24] sm:$0xf]
  %v2640 = vld [vmem:[%s2629 + $0x28] sm:$0xf]
  %v2641 = vld [vmem:[%s2629 + $0x2c] sm:$0xf]
  %v2642 = vld [vmem:[%s2629 + $0x30] sm:$0xf]
  %v2643 = vld [vmem:[%s2629 + $0x34] sm:$0xf]
  %v2644 = vld [vmem:[%s2629 + $0x38] sm:$0xf]
  %v2645 = vld [vmem:[%s2629 + $0x3c] sm:$0xf]
  %v2646 = vpack.c.bf16 %v2624, %v2623
  %v2647 = vpack.c.bf16 %v2626, %v2625
  %v2648 = vpack.c.bf16 %v2628, %v2627
  %v2665 = vunpack.c.l.b16 %v2630
  %v2666 = vunpack.c.l.b16 %v2631
  %v2667 = vunpack.c.l.b16 %v2632
  %v2668 = vunpack.c.l.b16 %v2633
  %v2669 = vunpack.c.l.b16 %v2634
  %v2670 = vunpack.c.l.b16 %v2635
  %v2671 = vunpack.c.l.b16 %v2636
  %v2672 = vunpack.c.l.b16 %v2637
  %v2673 = vunpack.c.l.b16 %v2638
  %v2674 = vunpack.c.l.b16 %v2639
  %v2675 = vunpack.c.l.b16 %v2640
  %v2676 = vunpack.c.l.b16 %v2641
  %v2677 = vunpack.c.l.b16 %v2642
  %v2678 = vunpack.c.l.b16 %v2643
  %v2679 = vunpack.c.l.b16 %v2644
  %v2680 = vunpack.c.l.b16 %v2645
  %v2681 = vpack.c.b16 %v2666, %v2665
  %v2682 = vpack.c.b16 %v2668, %v2667
  %v2683 = vpack.c.b16 %v2670, %v2669
  %v2684 = vpack.c.b16 %v2672, %v2671
  %v2685 = vpack.c.b16 %v2674, %v2673
  %v2686 = vpack.c.b16 %v2676, %v2675
  %v2687 = vpack.c.b16 %v2678, %v2677
  %v2688 = vpack.c.b16 %v2680, %v2679
  %2697 = vmatprep.subr.bf16.mxu0 0
  %2698 = vmatpush1.bf16.msra.mxu0 %v2681
  %2699 = vmatprep.subr.bf16.mxu0 0
  %2700 = vmatpush1.bf16.msra.mxu0 %v2682
  %2701 = vmatprep.subr.bf16.mxu0 0
  %2702 = vmatpush1.bf16.msra.mxu0 %v2683
  %2703 = vmatprep.subr.bf16.mxu0 0
  %2704 = vmatpush1.bf16.msra.mxu0 %v2684
  %2705 = vmatprep.subr.bf16.mxu0 0
  %2706 = vmatpush1.bf16.msra.mxu0 %v2685
  %2707 = vmatprep.subr.bf16.mxu0 0
  %2708 = vmatpush1.bf16.msra.mxu0 %v2686
  %2709 = vmatprep.subr.bf16.mxu0 0
  %2710 = vmatpush1.bf16.msra.mxu0 %v2687
  %2711 = vmatprep.subr.bf16.mxu0 0
  %2712 = vmatpush1.bf16.msra.mxu0 %v2688
  %2713 = vmatprep.subr.bf16.mxu0 0
  %2714 = vmatpush1.bf16.msra.mxu0 0
  %2715 = vmatprep.subr.bf16.mxu0 0
  %2716 = vmatpush1.bf16.msra.mxu0 0
  %2717 = vmatprep.subr.bf16.mxu0 0
  %2718 = vmatpush1.bf16.msra.mxu0 0
  %2719 = vmatprep.subr.bf16.mxu0 0
  %2720 = vmatpush1.bf16.msra.mxu0 0
  %2721 = vmatprep.subr.bf16.mxu0 0
  %2722 = vmatpush1.bf16.msra.mxu0 0
  %2723 = vmatprep.subr.bf16.mxu0 0
  %2724 = vmatpush1.bf16.msra.mxu0 0
  %2725 = vmatprep.subr.bf16.mxu0 0
  %2726 = vmatpush1.bf16.msra.mxu0 0
  %2727 = vmatprep.subr.bf16.mxu0 0
  %2728 = vmatpush1.bf16.msra.mxu0 0
  %2729 = vmatprep.mubr.bf16.mxu0 0
  %2730 = vmatmul.mubr.bf16.gmra.mrb[0].mxu0 %v2646
  %v2731 = vpop.f32.mrb[0].mxu0
  %v2732 = vadd.f32 0.0, %v2731
  %v2733 = vpop.f32.mrb[0].mxu0
  %v2734 = vpop.f32.mrb[0].mxu0
  %v2735 = vadd.f32 0.0, %v2734
  %v2736 = vpop.f32.mrb[0].mxu0
  %2737 = vmatprep.mubr.bf16.mxu0 0
  %2738 = vmatmul.mubr.bf16.gmra.mrb[0].mxu0 %v2647
  %v2739 = vpop.f32.mrb[0].mxu0
  %v2740 = vadd.f32 0.0, %v2739
  %v2741 = vpop.f32.mrb[0].mxu0
  %v2742 = vpop.f32.mrb[0].mxu0
  %v2743 = vadd.f32 0.0, %v2742
  %v2744 = vpop.f32.mrb[0].mxu0
  %2745 = vmatprep.mubr.bf16.mxu0 0
  %2746 = vmatmul.mubr.bf16.gmra.mrb[0].mxu0 %v2648
  %v2747 = vpop.f32.mrb[0].mxu0
  %v2748 = vadd.f32 0.0, %v2747
  %v2749 = vpop.f32.mrb[0].mxu0
  %v2750 = vpop.f32.mrb[0].mxu0
  %v2751 = vadd.f32 0.0, %v2750
  %v2752 = vpop.f32.mrb[0].mxu0
  %2753 = vdwg.mxu0
  %v2754 = vadd.f32 %v2378, %v2732
  %v2755 = vadd.f32 %v2379, %v2735
  %v2756 = vadd.f32 %v2380, %v2740
  %v2757 = vadd.f32 %v2381, %v2743
  %v2758 = vadd.f32 %v2382, %v2748
  %v2759 = vadd.f32 %v2383, %v2751
  %v2760 = vld [vmem:[%s3 + $0x14] sm:$0x1]
  %v2761 = vlaneseq
  %v2762 = vshrl.u32 %v2761, 7
  %v2763 = vsub.s32 0, %v2762
  %v2764 = vrot.slane %v2760, %v2763
  %v2765 = vadd.f32 %v2754, %v2764
  %v2766 = vadd.f32 %v2755, %v2764
  %v2767 = vadd.f32 %v2756, %v2764
  %v2768 = vadd.f32 %v2757, %v2764
  %v2769 = vadd.f32 %v2758, %v2764
  %v2770 = vadd.f32 %v2759, %v2764
  %v2771 = vld [vmem:[%s3 + $0x2] sm:$0x1]
  %v2772 = vld [vmem:[%s3 + $0x3] sm:$0x1]
  %v2773 = vsel %vm165, %v2765, 0.0
  %2774 = vadd.xlane.f32.xlu0 %v2773
  %v2775 = vpop.xlane.xlu0 %2774
  %v2776 = vsel %vm165, %v2766, 0.0
  %2777 = vadd.xlane.f32.xlu0 %v2776
  %v2778 = vpop.xlane.xlu0 %2777
  %v2779 = vsel %vm165, %v2767, 0.0
  %2780 = vadd.xlane.f32.xlu0 %v2779
  %v2781 = vpop.xlane.xlu0 %2780
  %v2782 = vsel %vm165, %v2768, 0.0
  %2783 = vadd.xlane.f32.xlu0 %v2782
  %v2784 = vpop.xlane.xlu0 %2783
  %v2785 = vsel %vm165, %v2769, 0.0
  %2786 = vadd.xlane.f32.xlu0 %v2785
  %v2787 = vpop.xlane.xlu0 %2786
  %v2788 = vsel %vm165, %v2770, 0.0
  %2789 = vadd.xlane.f32.xlu0 %v2788
  %v2790 = vpop.xlane.xlu0 %2789
  %v2791 = vmul.f32 %v2775, %v184
  %v2792 = vmul.f32 %v2778, %v184
  %v2793 = vmul.f32 %v2781, %v184
  %v2794 = vmul.f32 %v2784, %v184
  %v2795 = vmul.f32 %v2787, %v184
  %v2796 = vmul.f32 %v2790, %v184
  %v2797 = vsub.f32 %v2765, %v2791
  %v2798 = vsub.f32 %v2766, %v2792
  %v2799 = vsub.f32 %v2767, %v2793
  %v2800 = vsub.f32 %v2768, %v2794
  %v2801 = vsub.f32 %v2769, %v2795
  %v2802 = vsub.f32 %v2770, %v2796
  %v2803 = vmul.f32 %v2797, %v2797
  %v2804 = vmul.f32 %v2798, %v2798
  %v2805 = vmul.f32 %v2799, %v2799
  %v2806 = vmul.f32 %v2800, %v2800
  %v2807 = vmul.f32 %v2801, %v2801
  %v2808 = vmul.f32 %v2802, %v2802
  %v2809 = vsel %vm165, %v2803, 0.0
  %2810 = vadd.xlane.f32.xlu0 %v2809
  %v2811 = vpop.xlane.xlu0 %2810
  %v2812 = vsel %vm165, %v2804, 0.0
  %2813 = vadd.xlane.f32.xlu0 %v2812
  %v2814 = vpop.xlane.xlu0 %2813
  %v2815 = vsel %vm165, %v2805, 0.0
  %2816 = vadd.xlane.f32.xlu0 %v2815
  %v2817 = vpop.xlane.xlu0 %2816
  %v2818 = vsel %vm165, %v2806, 0.0
  %2819 = vadd.xlane.f32.xlu0 %v2818
  %v2820 = vpop.xlane.xlu0 %2819
  %v2821 = vsel %vm165, %v2807, 0.0
  %2822 = vadd.xlane.f32.xlu0 %v2821
  %v2823 = vpop.xlane.xlu0 %2822
  %v2824 = vsel %vm165, %v2808, 0.0
  %2825 = vadd.xlane.f32.xlu0 %v2824
  %v2826 = vpop.xlane.xlu0 %2825
  %v2827 = vmul.f32 %v2811, %v184
  %v2828 = vmul.f32 %v2814, %v184
  %v2829 = vmul.f32 %v2817, %v184
  %v2830 = vmul.f32 %v2820, %v184
  %v2831 = vmul.f32 %v2823, %v184
  %v2832 = vmul.f32 %v2826, %v184
  %v2833 = vadd.f32 %v2827, 1e-05
  %v2834 = vadd.f32 %v2828, 1e-05
  %v2835 = vadd.f32 %v2829, 1e-05
  %v2836 = vadd.f32 %v2830, 1e-05
  %v2837 = vadd.f32 %v2831, 1e-05
  %v2838 = vadd.f32 %v2832, 1e-05
  %v2839 = vrsqrt.pop %v2833
  %v2840 = vrsqrt.pop %v2834
  %v2841 = vrsqrt.pop %v2835
  %v2842 = vrsqrt.pop %v2836
  %v2843 = vrsqrt.pop %v2837
  %v2844 = vrsqrt.pop %v2838
  %v2845 = vmul.f32 %v2797, %v2839
  %v2846 = vmul.f32 %v2798, %v2840
  %v2847 = vmul.f32 %v2799, %v2841
  %v2848 = vmul.f32 %v2800, %v2842
  %v2849 = vmul.f32 %v2801, %v2843
  %v2850 = vmul.f32 %v2802, %v2844
  %v2851 = vlaneseq
  %v2852 = vshrl.u32 %v2851, 7
  %v2853 = vsub.s32 0, %v2852
  %v2854 = vrot.slane %v2771, %v2853
  %v2855 = vmul.f32 %v2845, %v2854
  %v2856 = vmul.f32 %v2846, %v2854
  %v2857 = vmul.f32 %v2847, %v2854
  %v2858 = vmul.f32 %v2848, %v2854
  %v2859 = vmul.f32 %v2849, %v2854
  %v2860 = vmul.f32 %v2850, %v2854
  %v2861 = vlaneseq
  %v2862 = vshrl.u32 %v2861, 7
  %v2863 = vsub.s32 0, %v2862
  %v2864 = vrot.slane %v2772, %v2863
  %v2865 = vadd.f32 %v2855, %v2864
  %v2866 = vadd.f32 %v2856, %v2864
  %v2867 = vadd.f32 %v2857, %v2864
  %v2868 = vadd.f32 %v2858, %v2864
  %v2869 = vadd.f32 %v2859, %v2864
  %v2870 = vadd.f32 %v2860, %v2864
  %v2871 = vld [vmem:[%s8] sm:$0xf]
  %v2872 = vld [vmem:[%s8 + $0x4] sm:$0xf]
  %v2873 = vld [vmem:[%s8 + $0x8] sm:$0xf]
  %v2874 = vld [vmem:[%s8 + $0xc] sm:$0xf]
  %v2875 = vpack.c.bf16 %v2866, %v2865
  %v2876 = vpack.c.bf16 %v2868, %v2867
  %v2877 = vpack.c.bf16 %v2870, %v2869
  %v2878 = vld [vmem:[%s3 + $0x4] sm:$0x1]
  %v2879 = vlaneseq
  %v2880 = vshrl.u32 %v2879, 7
  %v2881 = vsub.s32 0, %v2880
  %v2882 = vrot.slane %v2878, %v2881
  %v2887 = vunpack.c.l.b16 %v2871
  %v2888 = vunpack.c.l.b16 %v2872
  %v2889 = vunpack.c.l.b16 %v2873
  %v2890 = vunpack.c.l.b16 %v2874
  %v2891 = vpack.c.b16 %v2888, %v2887
  %v2892 = vpack.c.b16 %v2890, %v2889
  %v2896 = vsel %vm165, %v2875, 0
  %v2899 = vsel %vm165, %v2876, 0
  %v2902 = vsel %vm165, %v2877, 0
  %2904 = vmatprep.subr.bf16.mxu0 0
  %2905 = vmatpush1.bf16.msra.mxu0 %v2891
  %2906 = vmatprep.subr.bf16.mxu0 0
  %2907 = vmatpush1.bf16.msra.mxu0 %v2892
  %2908 = vmatprep.subr.bf16.mxu0 0
  %2909 = vmatpush1.bf16.msra.mxu0 0
  %2910 = vmatprep.subr.bf16.mxu0 0
  %2911 = vmatpush1.bf16.msra.mxu0 0
  %2912 = vmatprep.subr.bf16.mxu0 0
  %2913 = vmatpush1.bf16.msra.mxu0 0
  %2914 = vmatprep.subr.bf16.mxu0 0
  %2915 = vmatpush1.bf16.msra.mxu0 0
  %2916 = vmatprep.subr.bf16.mxu0 0
  %2917 = vmatpush1.bf16.msra.mxu0 0
  %2918 = vmatprep.subr.bf16.mxu0 0
  %2919 = vmatpush1.bf16.msra.mxu0 0
  %2920 = vmatprep.subr.bf16.mxu0 0
  %2921 = vmatpush1.bf16.msra.mxu0 0
  %2922 = vmatprep.subr.bf16.mxu0 0
  %2923 = vmatpush1.bf16.msra.mxu0 0
  %2924 = vmatprep.subr.bf16.mxu0 0
  %2925 = vmatpush1.bf16.msra.mxu0 0
  %2926 = vmatprep.subr.bf16.mxu0 0
  %2927 = vmatpush1.bf16.msra.mxu0 0
  %2928 = vmatprep.subr.bf16.mxu0 0
  %2929 = vmatpush1.bf16.msra.mxu0 0
  %2930 = vmatprep.subr.bf16.mxu0 0
  %2931 = vmatpush1.bf16.msra.mxu0 0
  %2932 = vmatprep.subr.bf16.mxu0 0
  %2933 = vmatpush1.bf16.msra.mxu0 0
  %2934 = vmatprep.subr.bf16.mxu0 0
  %2935 = vmatpush1.bf16.msra.mxu0 0
  %2936 = vmatprep.mubr.bf16.mxu0 0
  %2937 = vmatmul.mubr.bf16.gmra.mrb[0].mxu0 %v2896
  %v2938 = vpop.f32.mrb[0].mxu0
  %v2939 = vadd.f32 %v2882, %v2938
  %v2940 = vpop.f32.mrb[0].mxu0
  %v2941 = vpop.f32.mrb[0].mxu0
  %v2942 = vadd.f32 %v2882, %v2941
  %v2943 = vpop.f32.mrb[0].mxu0
  %2944 = vmatprep.mubr.bf16.mxu0 0
  %2945 = vmatmul.mubr.bf16.gmra.mrb[0].mxu0 %v2899
  %v2946 = vpop.f32.mrb[0].mxu0
  %v2947 = vadd.f32 %v2882, %v2946
  %v2948 = vpop.f32.mrb[0].mxu0
  %v2949 = vpop.f32.mrb[0].mxu0
  %v2950 = vadd.f32 %v2882, %v2949
  %v2951 = vpop.f32.mrb[0].mxu0
  %2952 = vmatprep.mubr.bf16.mxu0 0
  %2953 = vmatmul.mubr.bf16.gmra.mrb[0].mxu0 %v2902
  %v2954 = vpop.f32.mrb[0].mxu0
  %v2955 = vadd.f32 %v2882, %v2954
  %v2956 = vpop.f32.mrb[0].mxu0
  %v2957 = vpop.f32.mrb[0].mxu0
  %v2958 = vadd.f32 %v2882, %v2957
  %v2959 = vpop.f32.mrb[0].mxu0
  %2960 = vdwg.mxu0
  %v2961 = vlaneseq
  %v2962 = vand.u32 %v2961, 127
  %vm2963 = vcmp.ge.s32.totalorder %v2962, 12
  %vm2964 = vcmp.lt.s32.totalorder %v2962, 15
  %vm2965 = vmand %vm2963, %vm2964
  %v2966 = vtanh.pop %v2939
  %v2967 = vtanh.pop %v2942
  %v2968 = vtanh.pop %v2947
  %v2969 = vtanh.pop %v2950
  %v2970 = vtanh.pop %v2955
  %v2971 = vtanh.pop %v2958
  %v2972 = vsel %vm2965, 1, 0
  %vm2973 = vcmp.eq.s32.totalorder %v2972, 1
  %v2974 = vsel %vm2973, %v2966, %v2939
  %v2975 = vsel %vm2973, %v2967, %v2942
  %v2976 = vsel %vm2973, %v2968, %v2947
  %v2977 = vsel %vm2973, %v2969, %v2950
  %v2978 = vsel %vm2973, %v2970, %v2955
  %v2979 = vsel %vm2973, %v2971, %v2958
  %2980 = vst [vmem:[%s9] sm:$0xff] %v2974
  %2981 = vst [vmem:[%s9 + $0x8] sm:$0xff] %v2975
  %2982 = vst [vmem:[%s9 + $0x10] sm:$0xff] %v2976
  %2983 = vst [vmem:[%s9 + $0x18] sm:$0xff] %v2977
  %2984 = vst [vmem:[%s9 + $0x20] sm:$0xff] %v2978
  %2985 = vst [vmem:[%s9 + $0x28] sm:$0xff] %v2979
  // Predicated region
  $region38: #{dtrans_forward.1} parent=0 // pred_check
    _
  $region39: #{dtrans_forward.1} parent=0 // pred_check_branch
    %2987 = sbr.rel (0) target = $region41
  $region40: #{dtrans_forward.1} parent=0 // pred_region
    _
  $region41: #{dtrans_forward.1} parent=0 // pred_fallthru
    _
  // Predicated region
  $region42: #{dtrans_forward.1} parent=0 // pred_check
    _
  $region43: #{dtrans_forward.1} parent=0 // pred_check_branch
    %2989 = sbr.rel (0) target = $region45
  $region44: #{dtrans_forward.1} parent=0 // pred_region
    _
  $region45: #{dtrans_forward.1} parent=0 // pred_fallthru
    _

</llo_original>
